<compile_context>
chip_gen: v7x
topology: tpu7x:2x2x1
jax: 0.10.0
libtpu: 0.0.40
codegen_flags: <defaults>
</compile_context>

<pallas_src>
import jax
import jax.numpy as jnp
from jax import lax
from jax.experimental import pallas as pl
from jax.experimental.pallas import tpu as pltpu

EPS = 1e-5
SLOPE = 0.2  # LeakyReLU negative slope


def _compiler_params(semantics, vmem_bytes):
    # Always set vmem_limit_bytes from a complete (conservative) estimate; cap at
    # 3/4 of physical VMEM: ~48 MiB on v7x (64 MiB), ~96 MiB on v5e/v6e (128 MiB).
    phys = 64 * 1024 * 1024
    try:
        info = pltpu.get_tpu_info()
        v = getattr(info, "vmem_capacity_bytes", None)
        if isinstance(v, int) and v > 0:
            phys = v
    except Exception:
        pass
    cap = (phys * 3) // 4
    limit = int(min(cap, max(32 * 1024 * 1024, int(1.25 * vmem_bytes) + (4 << 20))))
    return pltpu.CompilerParams(dimension_semantics=semantics, vmem_limit_bytes=limit)


# ---------------------------------------------------------------------------
# conv pass kernel:
#   (optional BN + LeakyReLU) + NaN-sentinel -> 0 select on the assembled halo
#   window -> 3x3 conv as 9 lane-shifted bf16 MXU matmuls accumulated in vregs ->
#   raw conv-output tile + masked per-tile sum / sumsq partials for the next BN.
# ---------------------------------------------------------------------------
def _make_conv_kernel(cin, cout, tm, halo, wp, normalize_input, use_local_acc):
    win = tm + 2 * halo
    # lane offset inside the halo window for each (ky, kx) tap of the 3x3 stencil
    shifts = [halo + (ky - 1) * wp + (kx - 1) for ky in range(3) for kx in range(3)]

    def kernel(w_ref, scale_ref, shift_ref,            # resident VMEM inputs
               left_ref, center_ref, right_ref,        # halo / core views of the plane
               out_ref, psum_ref, psumsq_ref,          # outputs
               win_ref, acc_ref):                      # scratch
        i = pl.program_id(0)
        nlast = pl.num_programs(0) - 1

        if normalize_input:
            bn_scale = scale_ref[...]
            bn_shift = shift_ref[...]

        def clean(raw, fringe_flag):
            # raw: (cin, width) bf16 block.  NaN marks padding / filler positions.
            # fringe_flag (scalar int32, 0/1): 1 => the whole block is an
            # uninitialized lead/tail fringe and must be treated as padding.
            x = raw.astype(jnp.float32)
            width = x.shape[-1]
            lane = lax.broadcasted_iota(jnp.int32, (1, width), 1)
            ok = jnp.logical_and(x == x, lane >= fringe_flag * width)
            if normalize_input:
                x = x * bn_scale + bn_shift
                x = jnp.where(x >= 0.0, x, SLOPE * x)
            # select (not multiply): garbage / NaN / inf safe
            return jnp.where(ok, x, 0.0).astype(jnp.bfloat16)

        # assemble the processed window (cin, tm + 2*halo) at lane-aligned offsets
        win_ref[:, 0:halo] = clean(left_ref[...], (i == 0).astype(jnp.int32))
        win_ref[:, halo:halo + tm] = clean(center_ref[...], 0)
        win_ref[:, halo + tm:win] = clean(right_ref[...], (i == nlast).astype(jnp.int32))

        ywin = win_ref[...]                              # (cin, win) bf16

        # 3x3 conv = sum over the 9 taps of (cout,cin)@(cin,tm) bf16 MXU matmuls
        if use_local_acc:
            acc = None
            for k, s in enumerate(shifts):
                part = jnp.dot(w_ref[k], ywin[:, s:s + tm],
                               preferred_element_type=jnp.float32)
                acc = part if acc is None else acc + part
            z = acc
        else:
            for k, s in enumerate(shifts):
                part = jnp.dot(w_ref[k], ywin[:, s:s + tm],
                               preferred_element_type=jnp.float32)
                if k == 0:
                    acc_ref[...] = part
                else:
                    acc_ref[...] += part
            z = acc_ref[...]

        # per-column validity of the core tile (NaN sentinel in the raw center block)
        c0 = center_ref[0:1, :].astype(jnp.float32)
        col_ok = c0 == c0                                # (1, tm)

        # re-mark padding columns with NaN so the next pass can recover the mask
        out_ref[...] = jnp.where(col_ok, z, jnp.nan).astype(out_ref.dtype)

        # masked partial statistics for the following BatchNorm (tiling-safe)
        zc = jnp.where(col_ok, z, 0.0)
        psum_ref[0] = jnp.sum(zc, axis=1, keepdims=True)
        psumsq_ref[0] = jnp.sum(zc * zc, axis=1, keepdims=True)

    return kernel


def _conv_pass(plane, w9, scale, shift, *, cin, cout, tm, halo, wp, nb, L,
               normalize_input):
    win = tm + 2 * halo
    R = tm // halo                                       # halo-sized blocks per tile
    # keep the f32 conv accumulator in vregs when it comfortably fits
    use_local_acc = cout * tm * 4 <= 24 * 4096
    kernel = _make_conv_kernel(cin, cout, tm, halo, wp, normalize_input, use_local_acc)

    vmem_bytes = (2 * cin * tm * 2                       # center double buffer (bf16)
                  + 4 * cin * halo * 2                   # left+right double buffers
                  + 2 * cout * tm * 2                    # pipelined output blocks
                  + cin * win * 2                        # window scratch (bf16)
                  + cout * tm * 4                        # f32 accumulator scratch
                  + 2 * 9 * cout * cin * 2               # weights (double-buffered)
                  + 4 * cin * 4 + 8 * cout * 4)          # scale/shift + stat blocks
    flops = 2 * nb * tm * 9 * cin * cout
    bytes_accessed = nb * (cin * win * 2 + cout * tm * 2 + 2 * cout * 4)

    return pl.pallas_call(
        kernel,
        grid=(nb,),
        in_specs=[
            pl.BlockSpec((9, cout, cin), lambda i: (0, 0, 0)),      # weights (resident)
            pl.BlockSpec((cin, 1), lambda i: (0, 0)),               # BN scale for input
            pl.BlockSpec((cin, 1), lambda i: (0, 0)),               # BN shift for input
            pl.BlockSpec((cin, halo), lambda i: (0, (i + 1) * R - 1)),  # left halo
            pl.BlockSpec((cin, tm), lambda i: (0, i + 1)),              # core tile
            pl.BlockSpec((cin, halo), lambda i: (0, (i + 2) * R)),      # right halo
        ],
        out_shape=(
            jax.ShapeDtypeStruct((cout, L), jnp.bfloat16),          # raw conv output
            jax.ShapeDtypeStruct((nb, cout, 1), jnp.float32),       # per-tile masked sum
            jax.ShapeDtypeStruct((nb, cout, 1), jnp.float32),       # per-tile masked sumsq
        ),
        out_specs=(
            pl.BlockSpec((cout, tm), lambda i: (0, i + 1)),
            pl.BlockSpec((1, cout, 1), lambda i: (i, 0, 0)),
            pl.BlockSpec((1, cout, 1), lambda i: (i, 0, 0)),
        ),
        scratch_shapes=[
            pltpu.VMEM((cin, win), jnp.bfloat16),                   # processed window
            pltpu.VMEM((cout, tm), jnp.float32),                    # fallback accumulator
        ],
        compiler_params=_compiler_params(("parallel",), vmem_bytes),
        cost_estimate=pl.CostEstimate(flops=flops, transcendentals=0,
                                      bytes_accessed=bytes_accessed),
    )(w9, scale, shift, plane, plane, plane)


# ---------------------------------------------------------------------------
# final pass: BN2 + residual add + LeakyReLU (elementwise, fully parallel grid)
# ---------------------------------------------------------------------------
def _bn_residual_kernel(z_ref, res_ref, scale_ref, shift_ref, out_ref):
    y = (z_ref[...].astype(jnp.float32) * scale_ref[...] + shift_ref[...]
         + res_ref[...].astype(jnp.float32))
    out_ref[...] = jnp.where(y >= 0.0, y, SLOPE * y)


def _bn_residual_pass(z, res, scale, shift, *, c, tm, nb, L):
    vmem_bytes = 2 * (c * tm * 2 + c * tm * 2 + c * tm * 4) + 4 * c * 8
    return pl.pallas_call(
        _bn_residual_kernel,
        grid=(nb,),
        in_specs=[
            pl.BlockSpec((c, tm), lambda i: (0, i + 1)),   # z2 (bf16)
            pl.BlockSpec((c, tm), lambda i: (0, i + 1)),   # residual (bf16 plane)
            pl.BlockSpec((c, 1), lambda i: (0, 0)),        # BN2 scale (resident)
            pl.BlockSpec((c, 1), lambda i: (0, 0)),        # BN2 shift (resident)
        ],
        out_shape=jax.ShapeDtypeStruct((c, L), jnp.float32),
        out_specs=pl.BlockSpec((c, tm), lambda i: (0, i + 1)),
        compiler_params=_compiler_params(("parallel",), vmem_bytes),
        cost_estimate=pl.CostEstimate(flops=5 * nb * tm * c, transcendentals=0,
                                      bytes_accessed=nb * tm * c * 8),
    )(z, res, scale, shift)


# ---------------------------------------------------------------------------
# wrapper
# ---------------------------------------------------------------------------
def residual_block(x_nchw, params, *, tm=1024):
    N, Cin, H, W = x_nchw.shape
    Cout = params["w1"].shape[0]
    assert Cin == Cout, "residual add requires in_channels == out_channels (stride=1)"

    Hp, Wp = H + 2, W + 2
    Mp = N * Hp * Wp
    halo = ((Wp + 1 + 127) // 128) * 128                 # stencil reach, lane-rounded
    tm = max(-(-tm // halo) * halo, halo)                # multiple of halo (and of 128)
    nb = -(-Mp // tm)
    L = (nb + 2) * tm                                    # 1 lead + nb core + tail tiles

    f32 = jnp.float32
    nanv = float("nan")

    # channel-major, spatially padded, flattened bf16 plane (C, L); real image data
    # occupies columns [tm, tm + Mp).  Padding / inter-image / lead-tail filler
    # positions carry a NaN sentinel (recovered in-kernel; no separate mask stream).
    xpad = jnp.pad(x_nchw.astype(f32), ((0, 0), (0, 0), (1, 1), (1, 1)),
                   constant_values=nanv)
    xp = jnp.transpose(xpad, (1, 0, 2, 3)).reshape(Cin, Mp)
    xp = jnp.pad(xp, ((0, 0), (tm, L - tm - Mp)),
                 constant_values=nanv).astype(jnp.bfloat16)

    # PyTorch OIHW weights -> (tap, Cout, Cin), tap = ky*3 + kx, bf16 for the MXU
    w1 = jnp.transpose(params["w1"], (2, 3, 0, 1)).reshape(9, Cout, Cin).astype(jnp.bfloat16)
    w2 = jnp.transpose(params["w2"], (2, 3, 0, 1)).reshape(9, Cout, Cout).astype(jnp.bfloat16)

    count = N * H * W

    def bn_affine(psum, psumsq, gamma, beta):
        # combine the tiny (nb, C, 1) per-tile partials (JAX glue between passes)
        s = jnp.sum(psum, axis=0)                        # (C, 1)
        ss = jnp.sum(psumsq, axis=0)
        mean = s / count
        var = ss / count - mean * mean                   # biased var (PyTorch training BN)
        scale = gamma.reshape(-1, 1).astype(f32) * lax.rsqrt(var + EPS)
        shift = beta.reshape(-1, 1).astype(f32) - mean * scale
        return scale, shift

    one_c = jnp.ones((Cin, 1), f32)
    zero_c = jnp.zeros((Cin, 1), f32)

    # pass 1: conv1 + BN1 partial statistics
    z1, s1, ss1 = _conv_pass(xp, w1, one_c, zero_c,
                             cin=Cin, cout=Cout, tm=tm, halo=halo, wp=Wp,
                             nb=nb, L=L, normalize_input=False)
    scale1, shift1 = bn_affine(s1, ss1, params["gamma1"], params["beta1"])

    # pass 2: BN1 + LeakyReLU in-kernel (y1 never written to HBM) + conv2 + BN2 stats
    z2, s2, ss2 = _conv_pass(z1, w2, scale1, shift1,
                             cin=Cout, cout=Cout, tm=tm, halo=halo, wp=Wp,
                             nb=nb, L=L, normalize_input=True)
    scale2, shift2 = bn_affine(s2, ss2, params["gamma2"], params["beta2"])

    # pass 3: BN2 + residual + LeakyReLU
    out_plane = _bn_residual_pass(z2, xp, scale2, shift2, c=Cout, tm=tm, nb=nb, L=L)

    out = out_plane[:, tm:tm + Mp].reshape(Cout, N, Hp, Wp)[:, :, 1:H + 1, 1:W + 1]
    return jnp.transpose(out, (1, 0, 2, 3))              # back to NCHW


# ---------------------------------------------------------------------------
# plain-JAX reference matching the PyTorch forward (training-mode BatchNorm)
# ---------------------------------------------------------------------------
def _reference(x, params):
    def conv(h, w):
        return lax.conv_general_dilated(
            h, w, window_strides=(1, 1), padding=((1, 1), (1, 1)),
            dimension_numbers=("NCHW", "OIHW", "NCHW"))

    def bn(h, g, b):
        mean = h.mean(axis=(0, 2, 3), keepdims=True)
        var = h.var(axis=(0, 2, 3), keepdims=True)
        return (h - mean) / jnp.sqrt(var + EPS) * g.reshape(1, -1, 1, 1) + b.reshape(1, -1, 1, 1)

    def lrelu(h):
        return jnp.where(h >= 0, h, SLOPE * h)

    h = lrelu(bn(conv(x, params["w1"]), params["gamma1"], params["beta1"]))
    h = bn(conv(h, params["w2"]), params["gamma2"], params["beta2"]) + x
    return lrelu(h)


if __name__ == "__main__":
    key = jax.random.PRNGKey(0)
    N, Cin, H, W = 2, 4, 16, 16
    Cout = Cin  # residual add requires in_channels == out_channels (stride=1)

    k_x, k_w1, k_w2 = jax.random.split(key, 3)
    x = jax.random.normal(k_x, (N, Cin, H, W), jnp.float32)
    params = dict(
        w1=jax.random.normal(k_w1, (Cout, Cin, 3, 3), jnp.float32) * 0.1,
        w2=jax.random.normal(k_w2, (Cout, Cout, 3, 3), jnp.float32) * 0.1,
        gamma1=jnp.ones((Cout,), jnp.float32),   # PyTorch BatchNorm2d default init
        beta1=jnp.zeros((Cout,), jnp.float32),
        gamma2=jnp.ones((Cout,), jnp.float32),
        beta2=jnp.zeros((Cout,), jnp.float32),
    )

    out = jax.jit(residual_block)(x, params)
    jax.block_until_ready(out)

    ref = _reference(x, params)
    assert out.shape == (N, Cout, H, W)
    assert jnp.allclose(out, ref, atol=3e-2, rtol=3e-2), "mismatch vs reference"
    print("KERNEL_OK")
</pallas_src>

<mosaic_0001>
module attributes {stable_mosaic.version = 11 : i64} {
  func.func @kernel(%arg0: i32, %arg1: memref<9x4x4xbf16, #tpu.memory_space<vmem>>, %arg2: memref<4x1xf32, #tpu.memory_space<vmem>>, %arg3: memref<4x1xf32, #tpu.memory_space<vmem>>, %arg4: memref<4x128xbf16, #tpu.memory_space<vmem>>, %arg5: memref<4x1024xbf16, #tpu.memory_space<vmem>>, %arg6: memref<4x128xbf16, #tpu.memory_space<vmem>>, %arg7: memref<4x1024xbf16, #tpu.memory_space<vmem>>, %arg8: memref<1x4x1xf32, #tpu.memory_space<vmem>>, %arg9: memref<1x4x1xf32, #tpu.memory_space<vmem>>, %arg10: memref<4x1280xbf16, #tpu.memory_space<vmem>>, %arg11: memref<4x1024xf32, #tpu.memory_space<vmem>>) attributes {dimension_semantics = [#tpu.dimension_semantics<parallel>], iteration_bounds = array<i64: 1>, scalar_prefetch = 0 : i64, scratch_operands = 2 : i64, tpu.core_type = #tpu.core_type<tc>, window_params = [{pipeline_mode = #tpu.pipeline_mode<synchronous>, transform_indices = @transform_0, window_bounds = array<i64: 9, 4, 4>}, {pipeline_mode = #tpu.pipeline_mode<synchronous>, transform_indices = @transform_1, window_bounds = array<i64: 4, 1>}, {pipeline_mode = #tpu.pipeline_mode<synchronous>, transform_indices = @transform_2, window_bounds = array<i64: 4, 1>}, {transform_indices = @transform_3, window_bounds = array<i64: 4, 128>}, {transform_indices = @transform_4, window_bounds = array<i64: 4, 1024>}, {transform_indices = @transform_5, window_bounds = array<i64: 4, 128>}, {transform_indices = @transform_6, window_bounds = array<i64: 4, 1024>}, {transform_indices = @transform_7, window_bounds = array<i64: 1, 4, 1>}, {transform_indices = @transform_8, window_bounds = array<i64: 1, 4, 1>}]} {
    %c0 = arith.constant 0 : index
    %c0_0 = arith.constant 0 : index
    %0 = vector.load %arg4[%c0, %c0_0] : memref<4x128xbf16, #tpu.memory_space<vmem>>, vector<4x128xbf16>
    %c0_i32 = arith.constant 0 : i32
    %1 = arith.cmpi eq, %arg0, %c0_i32 : i32
    %2 = arith.extui %1 : i1 to i32
    %3 = arith.extf %0 : vector<4x128xbf16> to vector<4x128xf32>
    %4 = tpu.iota {dimensions = array<i32: 1>} : vector<1x128xi32>
    %5 = arith.cmpf oeq, %3, %3 : vector<4x128xf32>
    %c128_i32 = arith.constant 128 : i32
    %6 = arith.muli %2, %c128_i32 : i32
    %7 = vector.broadcast %6 : i32 to vector<1x128xi32>
    %8 = arith.cmpi sge, %4, %7 : vector<1x128xi32>
    %9 = vector.broadcast %8 : vector<1x128xi1> to vector<4x128xi1>
    %10 = arith.andi %5, %9 : vector<4x128xi1>
    %cst = arith.constant 0.000000e+00 : f32
    %11 = vector.broadcast %cst : f32 to vector<4x128xf32>
    %12 = arith.select %10, %3, %11 : vector<4x128xi1>, vector<4x128xf32>
    %13 = arith.truncf %12 : vector<4x128xf32> to vector<4x128xbf16>
    %c0_1 = arith.constant 0 : index
    %c0_2 = arith.constant 0 : index
    %14 = vector.load %arg10[%c0_1, %c0_2] : memref<4x1280xbf16, #tpu.memory_space<vmem>>, vector<4x128xbf16>
    tpu.vector_store %arg10[%c0_1, %c0_2], %13 {strides = array<i32>} : memref<4x1280xbf16, #tpu.memory_space<vmem>>, vector<4x128xbf16>,
    %c0_3 = arith.constant 0 : index
    %c0_4 = arith.constant 0 : index
    %15 = vector.load %arg5[%c0_3, %c0_4] : memref<4x1024xbf16, #tpu.memory_space<vmem>>, vector<4x1024xbf16>
    %16 = arith.extf %15 : vector<4x1024xbf16> to vector<4x1024xf32>
    %17 = tpu.iota {dimensions = array<i32: 1>} : vector<1x1024xi32>
    %18 = arith.cmpf oeq, %16, %16 : vector<4x1024xf32>
    %c0_i32_5 = arith.constant 0 : i32
    %19 = vector.broadcast %c0_i32_5 : i32 to vector<1x1024xi32>
    %20 = arith.cmpi sge, %17, %19 : vector<1x1024xi32>
    %21 = vector.broadcast %20 : vector<1x1024xi1> to vector<4x1024xi1>
    %22 = arith.andi %18, %21 : vector<4x1024xi1>
    %cst_6 = arith.constant 0.000000e+00 : f32
    %23 = vector.broadcast %cst_6 : f32 to vector<4x1024xf32>
    %24 = arith.select %22, %16, %23 : vector<4x1024xi1>, vector<4x1024xf32>
    %25 = arith.truncf %24 : vector<4x1024xf32> to vector<4x1024xbf16>
    %c0_7 = arith.constant 0 : index
    %c128 = arith.constant 128 : index
    %26 = vector.load %arg10[%c0_7, %c128] : memref<4x1280xbf16, #tpu.memory_space<vmem>>, vector<4x1024xbf16>
    tpu.vector_store %arg10[%c0_7, %c128], %25 {strides = array<i32>} : memref<4x1280xbf16, #tpu.memory_space<vmem>>, vector<4x1024xbf16>,
    %c0_8 = arith.constant 0 : index
    %c0_9 = arith.constant 0 : index
    %27 = vector.load %arg6[%c0_8, %c0_9] : memref<4x128xbf16, #tpu.memory_space<vmem>>, vector<4x128xbf16>
    %c0_i32_10 = arith.constant 0 : i32
    %28 = arith.cmpi eq, %arg0, %c0_i32_10 : i32
    %29 = arith.extui %28 : i1 to i32
    %30 = arith.extf %27 : vector<4x128xbf16> to vector<4x128xf32>
    %31 = tpu.iota {dimensions = array<i32: 1>} : vector<1x128xi32>
    %32 = arith.cmpf oeq, %30, %30 : vector<4x128xf32>
    %c128_i32_11 = arith.constant 128 : i32
    %33 = arith.muli %29, %c128_i32_11 : i32
    %34 = vector.broadcast %33 : i32 to vector<1x128xi32>
    %35 = arith.cmpi sge, %31, %34 : vector<1x128xi32>
    %36 = vector.broadcast %35 : vector<1x128xi1> to vector<4x128xi1>
    %37 = arith.andi %32, %36 : vector<4x128xi1>
    %cst_12 = arith.constant 0.000000e+00 : f32
    %38 = vector.broadcast %cst_12 : f32 to vector<4x128xf32>
    %39 = arith.select %37, %30, %38 : vector<4x128xi1>, vector<4x128xf32>
    %40 = arith.truncf %39 : vector<4x128xf32> to vector<4x128xbf16>
    %c0_13 = arith.constant 0 : index
    %c1152 = arith.constant 1152 : index
    %41 = vector.load %arg10[%c0_13, %c1152] : memref<4x1280xbf16, #tpu.memory_space<vmem>>, vector<4x128xbf16>
    tpu.vector_store %arg10[%c0_13, %c1152], %40 {strides = array<i32>} : memref<4x1280xbf16, #tpu.memory_space<vmem>>, vector<4x128xbf16>,
    %c0_14 = arith.constant 0 : index
    %c0_15 = arith.constant 0 : index
    %42 = vector.load %arg10[%c0_14, %c0_15] : memref<4x1280xbf16, #tpu.memory_space<vmem>>, vector<4x1280xbf16>
    %c0_16 = arith.constant 0 : index
    %c0_17 = arith.constant 0 : index
    %c0_18 = arith.constant 0 : index
    %43 = vector.load %arg1[%c0_16, %c0_17, %c0_18] : memref<9x4x4xbf16, #tpu.memory_space<vmem>>, vector<1x4x4xbf16>
    %44 = vector.shape_cast %43 : vector<1x4x4xbf16> to vector<4x4xbf16>
    %45 = vector.extract_strided_slice %42 {offsets = [0, 109], sizes = [4, 1024], strides = [1, 1]} : vector<4x1280xbf16> to vector<4x1024xbf16>
    %cst_19 = arith.constant dense<0.000000e+00> : vector<4x1024xf32>
    %46 = tpu.matmul %44, %45, %cst_19 {dimension_numbers = #tpu.dot_dimension_numbers<[1], [0], [0], [1], [0, 0, 1, 1], [], []>} : vector<4x4xbf16>, vector<4x1024xbf16>, vector<4x1024xf32> -> vector<4x1024xf32>
    %c1 = arith.constant 1 : index
    %c0_20 = arith.constant 0 : index
    %c0_21 = arith.constant 0 : index
    %47 = vector.load %arg1[%c1, %c0_20, %c0_21] : memref<9x4x4xbf16, #tpu.memory_space<vmem>>, vector<1x4x4xbf16>
    %48 = vector.shape_cast %47 : vector<1x4x4xbf16> to vector<4x4xbf16>
    %49 = vector.extract_strided_slice %42 {offsets = [0, 110], sizes = [4, 1024], strides = [1, 1]} : vector<4x1280xbf16> to vector<4x1024xbf16>
    %cst_22 = arith.constant dense<0.000000e+00> : vector<4x1024xf32>
    %50 = tpu.matmul %48, %49, %cst_22 {dimension_numbers = #tpu.dot_dimension_numbers<[1], [0], [0], [1], [0, 0, 1, 1], [], []>} : vector<4x4xbf16>, vector<4x1024xbf16>, vector<4x1024xf32> -> vector<4x1024xf32>
    %51 = arith.addf %46, %50 : vector<4x1024xf32>
    %c2 = arith.constant 2 : index
    %c0_23 = arith.constant 0 : index
    %c0_24 = arith.constant 0 : index
    %52 = vector.load %arg1[%c2, %c0_23, %c0_24] : memref<9x4x4xbf16, #tpu.memory_space<vmem>>, vector<1x4x4xbf16>
    %53 = vector.shape_cast %52 : vector<1x4x4xbf16> to vector<4x4xbf16>
    %54 = vector.extract_strided_slice %42 {offsets = [0, 111], sizes = [4, 1024], strides = [1, 1]} : vector<4x1280xbf16> to vector<4x1024xbf16>
    %cst_25 = arith.constant dense<0.000000e+00> : vector<4x1024xf32>
    %55 = tpu.matmul %53, %54, %cst_25 {dimension_numbers = #tpu.dot_dimension_numbers<[1], [0], [0], [1], [0, 0, 1, 1], [], []>} : vector<4x4xbf16>, vector<4x1024xbf16>, vector<4x1024xf32> -> vector<4x1024xf32>
    %56 = arith.addf %51, %55 : vector<4x1024xf32>
    %c3 = arith.constant 3 : index
    %c0_26 = arith.constant 0 : index
    %c0_27 = arith.constant 0 : index
    %57 = vector.load %arg1[%c3, %c0_26, %c0_27] : memref<9x4x4xbf16, #tpu.memory_space<vmem>>, vector<1x4x4xbf16>
    %58 = vector.shape_cast %57 : vector<1x4x4xbf16> to vector<4x4xbf16>
    %59 = vector.extract_strided_slice %42 {offsets = [0, 127], sizes = [4, 1024], strides = [1, 1]} : vector<4x1280xbf16> to vector<4x1024xbf16>
    %cst_28 = arith.constant dense<0.000000e+00> : vector<4x1024xf32>
    %60 = tpu.matmul %58, %59, %cst_28 {dimension_numbers = #tpu.dot_dimension_numbers<[1], [0], [0], [1], [0, 0, 1, 1], [], []>} : vector<4x4xbf16>, vector<4x1024xbf16>, vector<4x1024xf32> -> vector<4x1024xf32>
    %61 = arith.addf %56, %60 : vector<4x1024xf32>
    %c4 = arith.constant 4 : index
    %c0_29 = arith.constant 0 : index
    %c0_30 = arith.constant 0 : index
    %62 = vector.load %arg1[%c4, %c0_29, %c0_30] : memref<9x4x4xbf16, #tpu.memory_space<vmem>>, vector<1x4x4xbf16>
    %63 = vector.shape_cast %62 : vector<1x4x4xbf16> to vector<4x4xbf16>
    %64 = vector.extract_strided_slice %42 {offsets = [0, 128], sizes = [4, 1024], strides = [1, 1]} : vector<4x1280xbf16> to vector<4x1024xbf16>
    %cst_31 = arith.constant dense<0.000000e+00> : vector<4x1024xf32>
    %65 = tpu.matmul %63, %64, %cst_31 {dimension_numbers = #tpu.dot_dimension_numbers<[1], [0], [0], [1], [0, 0, 1, 1], [], []>} : vector<4x4xbf16>, vector<4x1024xbf16>, vector<4x1024xf32> -> vector<4x1024xf32>
    %66 = arith.addf %61, %65 : vector<4x1024xf32>
    %c5 = arith.constant 5 : index
    %c0_32 = arith.constant 0 : index
    %c0_33 = arith.constant 0 : index
    %67 = vector.load %arg1[%c5, %c0_32, %c0_33] : memref<9x4x4xbf16, #tpu.memory_space<vmem>>, vector<1x4x4xbf16>
    %68 = vector.shape_cast %67 : vector<1x4x4xbf16> to vector<4x4xbf16>
    %69 = vector.extract_strided_slice %42 {offsets = [0, 129], sizes = [4, 1024], strides = [1, 1]} : vector<4x1280xbf16> to vector<4x1024xbf16>
    %cst_34 = arith.constant dense<0.000000e+00> : vector<4x1024xf32>
    %70 = tpu.matmul %68, %69, %cst_34 {dimension_numbers = #tpu.dot_dimension_numbers<[1], [0], [0], [1], [0, 0, 1, 1], [], []>} : vector<4x4xbf16>, vector<4x1024xbf16>, vector<4x1024xf32> -> vector<4x1024xf32>
    %71 = arith.addf %66, %70 : vector<4x1024xf32>
    %c6 = arith.constant 6 : index
    %c0_35 = arith.constant 0 : index
    %c0_36 = arith.constant 0 : index
    %72 = vector.load %arg1[%c6, %c0_35, %c0_36] : memref<9x4x4xbf16, #tpu.memory_space<vmem>>, vector<1x4x4xbf16>
    %73 = vector.shape_cast %72 : vector<1x4x4xbf16> to vector<4x4xbf16>
    %74 = vector.extract_strided_slice %42 {offsets = [0, 145], sizes = [4, 1024], strides = [1, 1]} : vector<4x1280xbf16> to vector<4x1024xbf16>
    %cst_37 = arith.constant dense<0.000000e+00> : vector<4x1024xf32>
    %75 = tpu.matmul %73, %74, %cst_37 {dimension_numbers = #tpu.dot_dimension_numbers<[1], [0], [0], [1], [0, 0, 1, 1], [], []>} : vector<4x4xbf16>, vector<4x1024xbf16>, vector<4x1024xf32> -> vector<4x1024xf32>
    %76 = arith.addf %71, %75 : vector<4x1024xf32>
    %c7 = arith.constant 7 : index
    %c0_38 = arith.constant 0 : index
    %c0_39 = arith.constant 0 : index
    %77 = vector.load %arg1[%c7, %c0_38, %c0_39] : memref<9x4x4xbf16, #tpu.memory_space<vmem>>, vector<1x4x4xbf16>
    %78 = vector.shape_cast %77 : vector<1x4x4xbf16> to vector<4x4xbf16>
    %79 = vector.extract_strided_slice %42 {offsets = [0, 146], sizes = [4, 1024], strides = [1, 1]} : vector<4x1280xbf16> to vector<4x1024xbf16>
    %cst_40 = arith.constant dense<0.000000e+00> : vector<4x1024xf32>
    %80 = tpu.matmul %78, %79, %cst_40 {dimension_numbers = #tpu.dot_dimension_numbers<[1], [0], [0], [1], [0, 0, 1, 1], [], []>} : vector<4x4xbf16>, vector<4x1024xbf16>, vector<4x1024xf32> -> vector<4x1024xf32>
    %81 = arith.addf %76, %80 : vector<4x1024xf32>
    %c8 = arith.constant 8 : index
    %c0_41 = arith.constant 0 : index
    %c0_42 = arith.constant 0 : index
    %82 = vector.load %arg1[%c8, %c0_41, %c0_42] : memref<9x4x4xbf16, #tpu.memory_space<vmem>>, vector<1x4x4xbf16>
    %83 = vector.shape_cast %82 : vector<1x4x4xbf16> to vector<4x4xbf16>
    %84 = vector.extract_strided_slice %42 {offsets = [0, 147], sizes = [4, 1024], strides = [1, 1]} : vector<4x1280xbf16> to vector<4x1024xbf16>
    %cst_43 = arith.constant dense<0.000000e+00> : vector<4x1024xf32>
    %85 = tpu.matmul %83, %84, %cst_43 {dimension_numbers = #tpu.dot_dimension_numbers<[1], [0], [0], [1], [0, 0, 1, 1], [], []>} : vector<4x4xbf16>, vector<4x1024xbf16>, vector<4x1024xf32> -> vector<4x1024xf32>
    %86 = arith.addf %81, %85 : vector<4x1024xf32>
    %c0_44 = arith.constant 0 : index
    %c0_45 = arith.constant 0 : index
    %87 = vector.load %arg5[%c0_44, %c0_45] : memref<4x1024xbf16, #tpu.memory_space<vmem>>, vector<1x1024xbf16>
    %88 = arith.extf %87 : vector<1x1024xbf16> to vector<1x1024xf32>
    %89 = arith.cmpf oeq, %88, %88 : vector<1x1024xf32>
    %cst_46 = arith.constant 0x7FC00000 : f32
    %90 = vector.shape_cast %89 : vector<1x1024xi1> to vector<1x1024xi1>
    %91 = vector.broadcast %90 : vector<1x1024xi1> to vector<4x1024xi1>
    %92 = vector.broadcast %cst_46 : f32 to vector<4x1024xf32>
    %93 = arith.select %91, %86, %92 : vector<4x1024xi1>, vector<4x1024xf32>
    %94 = arith.truncf %93 : vector<4x1024xf32> to vector<4x1024xbf16>
    %c0_47 = arith.constant 0 : index
    %c0_48 = arith.constant 0 : index
    %95 = vector.load %arg7[%c0_47, %c0_48] : memref<4x1024xbf16, #tpu.memory_space<vmem>>, vector<4x1024xbf16>
    tpu.vector_store %arg7[%c0_47, %c0_48], %94 {strides = array<i32>} : memref<4x1024xbf16, #tpu.memory_space<vmem>>, vector<4x1024xbf16>,
    %cst_49 = arith.constant 0.000000e+00 : f32
    %96 = vector.shape_cast %89 : vector<1x1024xi1> to vector<1x1024xi1>
    %97 = vector.broadcast %96 : vector<1x1024xi1> to vector<4x1024xi1>
    %98 = vector.broadcast %cst_49 : f32 to vector<4x1024xf32>
    %99 = arith.select %97, %86, %98 : vector<4x1024xi1>, vector<4x1024xf32>
    %cst_50 = arith.constant dense<0.000000e+00> : vector<4xf32>
    %100 = vector.multi_reduction <add>, %99, %cst_50 [1] : vector<4x1024xf32> to vector<4xf32>
    %101 = vector.shape_cast %100 : vector<4xf32> to vector<4x1xf32>
    %c0_51 = arith.constant 0 : index
    %c0_52 = arith.constant 0 : index
    %c0_53 = arith.constant 0 : index
    %102 = vector.load %arg8[%c0_51, %c0_52, %c0_53] : memref<1x4x1xf32, #tpu.memory_space<vmem>>, vector<1x4x1xf32>
    %103 = vector.shape_cast %102 : vector<1x4x1xf32> to vector<4x1xf32>
    %104 = vector.shape_cast %101 : vector<4x1xf32> to vector<1x4x1xf32>
    tpu.vector_store %arg8[%c0_51, %c0_52, %c0_53], %104 {strides = array<i32>} : memref<1x4x1xf32, #tpu.memory_space<vmem>>, vector<1x4x1xf32>,
    %105 = arith.mulf %99, %99 : vector<4x1024xf32>
    %cst_54 = arith.constant dense<0.000000e+00> : vector<4xf32>
    %106 = vector.multi_reduction <add>, %105, %cst_54 [1] : vector<4x1024xf32> to vector<4xf32>
    %107 = vector.shape_cast %106 : vector<4xf32> to vector<4x1xf32>
    %c0_55 = arith.constant 0 : index
    %c0_56 = arith.constant 0 : index
    %c0_57 = arith.constant 0 : index
    %108 = vector.load %arg9[%c0_55, %c0_56, %c0_57] : memref<1x4x1xf32, #tpu.memory_space<vmem>>, vector<1x4x1xf32>
    %109 = vector.shape_cast %108 : vector<1x4x1xf32> to vector<4x1xf32>
    %110 = vector.shape_cast %107 : vector<4x1xf32> to vector<1x4x1xf32>
    tpu.vector_store %arg9[%c0_55, %c0_56, %c0_57], %110 {strides = array<i32>} : memref<1x4x1xf32, #tpu.memory_space<vmem>>, vector<1x4x1xf32>,
    return
  }
  func.func @transform_0(%arg0: i32) -> (i32, i32, i32) {
    %c0_i32 = arith.constant 0 : i32
    %c0_i32_0 = arith.constant 0 : i32
    %c0_i32_1 = arith.constant 0 : i32
    %c0_i32_2 = arith.constant 0 : i32
    return %c0_i32, %c0_i32_0, %c0_i32_1 : i32, i32, i32
  }
  func.func @transform_1(%arg0: i32) -> (i32, i32) {
    %c0_i32 = arith.constant 0 : i32
    %c0_i32_0 = arith.constant 0 : i32
    %c0_i32_1 = arith.constant 0 : i32
    return %c0_i32, %c0_i32_0 : i32, i32
  }
  func.func @transform_2(%arg0: i32) -> (i32, i32) {
    %c0_i32 = arith.constant 0 : i32
    %c0_i32_0 = arith.constant 0 : i32
    %c0_i32_1 = arith.constant 0 : i32
    return %c0_i32, %c0_i32_0 : i32, i32
  }
  func.func @transform_3(%arg0: i32) -> (i32, i32) {
    %c1_i32 = arith.constant 1 : i32
    %0 = arith.addi %arg0, %c1_i32 : i32
    %c8_i32 = arith.constant 8 : i32
    %1 = arith.muli %0, %c8_i32 : i32
    %c1_i32_0 = arith.constant 1 : i32
    %2 = arith.subi %1, %c1_i32_0 : i32
    %c0_i32 = arith.constant 0 : i32
    %c0_i32_1 = arith.constant 0 : i32
    return %c0_i32, %2 : i32, i32
  }
  func.func @transform_4(%arg0: i32) -> (i32, i32) {
    %c1_i32 = arith.constant 1 : i32
    %0 = arith.addi %arg0, %c1_i32 : i32
    %c0_i32 = arith.constant 0 : i32
    %c0_i32_0 = arith.constant 0 : i32
    return %c0_i32, %0 : i32, i32
  }
  func.func @transform_5(%arg0: i32) -> (i32, i32) {
    %c2_i32 = arith.constant 2 : i32
    %0 = arith.addi %arg0, %c2_i32 : i32
    %c8_i32 = arith.constant 8 : i32
    %1 = arith.muli %0, %c8_i32 : i32
    %c0_i32 = arith.constant 0 : i32
    %c0_i32_0 = arith.constant 0 : i32
    return %c0_i32, %1 : i32, i32
  }
  func.func @transform_6(%arg0: i32) -> (i32, i32) {
    %c1_i32 = arith.constant 1 : i32
    %0 = arith.addi %arg0, %c1_i32 : i32
    %c0_i32 = arith.constant 0 : i32
    %c0_i32_0 = arith.constant 0 : i32
    return %c0_i32, %0 : i32, i32
  }
  func.func @transform_7(%arg0: i32) -> (i32, i32, i32) {
    %c0_i32 = arith.constant 0 : i32
    %c0_i32_0 = arith.constant 0 : i32
    %c0_i32_1 = arith.constant 0 : i32
    return %arg0, %c0_i32, %c0_i32_0 : i32, i32, i32
  }
  func.func @transform_8(%arg0: i32) -> (i32, i32, i32) {
    %c0_i32 = arith.constant 0 : i32
    %c0_i32_0 = arith.constant 0 : i32
    %c0_i32_1 = arith.constant 0 : i32
    return %arg0, %c0_i32, %c0_i32_0 : i32, i32, i32
  }
}

module attributes {stable_mosaic.version = 11 : i64} {
  func.func @kernel(%arg0: i32, %arg1: memref<9x4x4xbf16, #tpu.memory_space<vmem>>, %arg2: memref<4x1xf32, #tpu.memory_space<vmem>>, %arg3: memref<4x1xf32, #tpu.memory_space<vmem>>, %arg4: memref<4x128xbf16, #tpu.memory_space<vmem>>, %arg5: memref<4x1024xbf16, #tpu.memory_space<vmem>>, %arg6: memref<4x128xbf16, #tpu.memory_space<vmem>>, %arg7: memref<4x1024xbf16, #tpu.memory_space<vmem>>, %arg8: memref<1x4x1xf32, #tpu.memory_space<vmem>>, %arg9: memref<1x4x1xf32, #tpu.memory_space<vmem>>, %arg10: memref<4x1280xbf16, #tpu.memory_space<vmem>>, %arg11: memref<4x1024xf32, #tpu.memory_space<vmem>>) attributes {dimension_semantics = [#tpu.dimension_semantics<parallel>], iteration_bounds = array<i64: 1>, scalar_prefetch = 0 : i64, scratch_operands = 2 : i64, tpu.core_type = #tpu.core_type<tc>, window_params = [{pipeline_mode = #tpu.pipeline_mode<synchronous>, transform_indices = @transform_0, window_bounds = array<i64: 9, 4, 4>}, {pipeline_mode = #tpu.pipeline_mode<synchronous>, transform_indices = @transform_1, window_bounds = array<i64: 4, 1>}, {pipeline_mode = #tpu.pipeline_mode<synchronous>, transform_indices = @transform_2, window_bounds = array<i64: 4, 1>}, {transform_indices = @transform_3, window_bounds = array<i64: 4, 128>}, {transform_indices = @transform_4, window_bounds = array<i64: 4, 1024>}, {transform_indices = @transform_5, window_bounds = array<i64: 4, 128>}, {transform_indices = @transform_6, window_bounds = array<i64: 4, 1024>}, {transform_indices = @transform_7, window_bounds = array<i64: 1, 4, 1>}, {transform_indices = @transform_8, window_bounds = array<i64: 1, 4, 1>}]} {
    %c0 = arith.constant 0 : index
    %c0_0 = arith.constant 0 : index
    %0 = vector.load %arg2[%c0, %c0_0] : memref<4x1xf32, #tpu.memory_space<vmem>>, vector<4x1xf32>
    %c0_1 = arith.constant 0 : index
    %c0_2 = arith.constant 0 : index
    %1 = vector.load %arg3[%c0_1, %c0_2] : memref<4x1xf32, #tpu.memory_space<vmem>>, vector<4x1xf32>
    %c0_3 = arith.constant 0 : index
    %c0_4 = arith.constant 0 : index
    %2 = vector.load %arg4[%c0_3, %c0_4] : memref<4x128xbf16, #tpu.memory_space<vmem>>, vector<4x128xbf16>
    %c0_i32 = arith.constant 0 : i32
    %3 = arith.cmpi eq, %arg0, %c0_i32 : i32
    %4 = arith.extui %3 : i1 to i32
    %5 = arith.extf %2 : vector<4x128xbf16> to vector<4x128xf32>
    %6 = tpu.iota {dimensions = array<i32: 1>} : vector<1x128xi32>
    %7 = arith.cmpf oeq, %5, %5 : vector<4x128xf32>
    %c128_i32 = arith.constant 128 : i32
    %8 = arith.muli %4, %c128_i32 : i32
    %9 = vector.broadcast %8 : i32 to vector<1x128xi32>
    %10 = arith.cmpi sge, %6, %9 : vector<1x128xi32>
    %11 = vector.broadcast %10 : vector<1x128xi1> to vector<4x128xi1>
    %12 = arith.andi %7, %11 : vector<4x128xi1>
    %13 = vector.broadcast %0 : vector<4x1xf32> to vector<4x128xf32>
    %14 = arith.mulf %5, %13 : vector<4x128xf32>
    %15 = vector.broadcast %1 : vector<4x1xf32> to vector<4x128xf32>
    %16 = arith.addf %14, %15 : vector<4x128xf32>
    %cst = arith.constant 0.000000e+00 : f32
    %17 = vector.broadcast %cst : f32 to vector<4x128xf32>
    %18 = arith.cmpf oge, %16, %17 : vector<4x128xf32>
    %cst_5 = arith.constant 2.000000e-01 : f32
    %19 = vector.broadcast %cst_5 : f32 to vector<4x128xf32>
    %20 = arith.mulf %19, %16 : vector<4x128xf32>
    %21 = arith.select %18, %16, %20 : vector<4x128xi1>, vector<4x128xf32>
    %cst_6 = arith.constant 0.000000e+00 : f32
    %22 = vector.broadcast %cst_6 : f32 to vector<4x128xf32>
    %23 = arith.select %12, %21, %22 : vector<4x128xi1>, vector<4x128xf32>
    %24 = arith.truncf %23 : vector<4x128xf32> to vector<4x128xbf16>
    %c0_7 = arith.constant 0 : index
    %c0_8 = arith.constant 0 : index
    %25 = vector.load %arg10[%c0_7, %c0_8] : memref<4x1280xbf16, #tpu.memory_space<vmem>>, vector<4x128xbf16>
    tpu.vector_store %arg10[%c0_7, %c0_8], %24 {strides = array<i32>} : memref<4x1280xbf16, #tpu.memory_space<vmem>>, vector<4x128xbf16>,
    %c0_9 = arith.constant 0 : index
    %c0_10 = arith.constant 0 : index
    %26 = vector.load %arg5[%c0_9, %c0_10] : memref<4x1024xbf16, #tpu.memory_space<vmem>>, vector<4x1024xbf16>
    %27 = arith.extf %26 : vector<4x1024xbf16> to vector<4x1024xf32>
    %28 = tpu.iota {dimensions = array<i32: 1>} : vector<1x1024xi32>
    %29 = arith.cmpf oeq, %27, %27 : vector<4x1024xf32>
    %c0_i32_11 = arith.constant 0 : i32
    %30 = vector.broadcast %c0_i32_11 : i32 to vector<1x1024xi32>
    %31 = arith.cmpi sge, %28, %30 : vector<1x1024xi32>
    %32 = vector.broadcast %31 : vector<1x1024xi1> to vector<4x1024xi1>
    %33 = arith.andi %29, %32 : vector<4x1024xi1>
    %34 = vector.broadcast %0 : vector<4x1xf32> to vector<4x1024xf32>
    %35 = arith.mulf %27, %34 : vector<4x1024xf32>
    %36 = vector.broadcast %1 : vector<4x1xf32> to vector<4x1024xf32>
    %37 = arith.addf %35, %36 : vector<4x1024xf32>
    %cst_12 = arith.constant 0.000000e+00 : f32
    %38 = vector.broadcast %cst_12 : f32 to vector<4x1024xf32>
    %39 = arith.cmpf oge, %37, %38 : vector<4x1024xf32>
    %cst_13 = arith.constant 2.000000e-01 : f32
    %40 = vector.broadcast %cst_13 : f32 to vector<4x1024xf32>
    %41 = arith.mulf %40, %37 : vector<4x1024xf32>
    %42 = arith.select %39, %37, %41 : vector<4x1024xi1>, vector<4x1024xf32>
    %cst_14 = arith.constant 0.000000e+00 : f32
    %43 = vector.broadcast %cst_14 : f32 to vector<4x1024xf32>
    %44 = arith.select %33, %42, %43 : vector<4x1024xi1>, vector<4x1024xf32>
    %45 = arith.truncf %44 : vector<4x1024xf32> to vector<4x1024xbf16>
    %c0_15 = arith.constant 0 : index
    %c128 = arith.constant 128 : index
    %46 = vector.load %arg10[%c0_15, %c128] : memref<4x1280xbf16, #tpu.memory_space<vmem>>, vector<4x1024xbf16>
    tpu.vector_store %arg10[%c0_15, %c128], %45 {strides = array<i32>} : memref<4x1280xbf16, #tpu.memory_space<vmem>>, vector<4x1024xbf16>,
    %c0_16 = arith.constant 0 : index
    %c0_17 = arith.constant 0 : index
    %47 = vector.load %arg6[%c0_16, %c0_17] : memref<4x128xbf16, #tpu.memory_space<vmem>>, vector<4x128xbf16>
    %c0_i32_18 = arith.constant 0 : i32
    %48 = arith.cmpi eq, %arg0, %c0_i32_18 : i32
    %49 = arith.extui %48 : i1 to i32
    %50 = arith.extf %47 : vector<4x128xbf16> to vector<4x128xf32>
    %51 = tpu.iota {dimensions = array<i32: 1>} : vector<1x128xi32>
    %52 = arith.cmpf oeq, %50, %50 : vector<4x128xf32>
    %c128_i32_19 = arith.constant 128 : i32
    %53 = arith.muli %49, %c128_i32_19 : i32
    %54 = vector.broadcast %53 : i32 to vector<1x128xi32>
    %55 = arith.cmpi sge, %51, %54 : vector<1x128xi32>
    %56 = vector.broadcast %55 : vector<1x128xi1> to vector<4x128xi1>
    %57 = arith.andi %52, %56 : vector<4x128xi1>
    %58 = vector.broadcast %0 : vector<4x1xf32> to vector<4x128xf32>
    %59 = arith.mulf %50, %58 : vector<4x128xf32>
    %60 = vector.broadcast %1 : vector<4x1xf32> to vector<4x128xf32>
    %61 = arith.addf %59, %60 : vector<4x128xf32>
    %cst_20 = arith.constant 0.000000e+00 : f32
    %62 = vector.broadcast %cst_20 : f32 to vector<4x128xf32>
    %63 = arith.cmpf oge, %61, %62 : vector<4x128xf32>
    %cst_21 = arith.constant 2.000000e-01 : f32
    %64 = vector.broadcast %cst_21 : f32 to vector<4x128xf32>
    %65 = arith.mulf %64, %61 : vector<4x128xf32>
    %66 = arith.select %63, %61, %65 : vector<4x128xi1>, vector<4x128xf32>
    %cst_22 = arith.constant 0.000000e+00 : f32
    %67 = vector.broadcast %cst_22 : f32 to vector<4x128xf32>
    %68 = arith.select %57, %66, %67 : vector<4x128xi1>, vector<4x128xf32>
    %69 = arith.truncf %68 : vector<4x128xf32> to vector<4x128xbf16>
    %c0_23 = arith.constant 0 : index
    %c1152 = arith.constant 1152 : index
    %70 = vector.load %arg10[%c0_23, %c1152] : memref<4x1280xbf16, #tpu.memory_space<vmem>>, vector<4x128xbf16>
    tpu.vector_store %arg10[%c0_23, %c1152], %69 {strides = array<i32>} : memref<4x1280xbf16, #tpu.memory_space<vmem>>, vector<4x128xbf16>,
    %c0_24 = arith.constant 0 : index
    %c0_25 = arith.constant 0 : index
    %71 = vector.load %arg10[%c0_24, %c0_25] : memref<4x1280xbf16, #tpu.memory_space<vmem>>, vector<4x1280xbf16>
    %c0_26 = arith.constant 0 : index
    %c0_27 = arith.constant 0 : index
    %c0_28 = arith.constant 0 : index
    %72 = vector.load %arg1[%c0_26, %c0_27, %c0_28] : memref<9x4x4xbf16, #tpu.memory_space<vmem>>, vector<1x4x4xbf16>
    %73 = vector.shape_cast %72 : vector<1x4x4xbf16> to vector<4x4xbf16>
    %74 = vector.extract_strided_slice %71 {offsets = [0, 109], sizes = [4, 1024], strides = [1, 1]} : vector<4x1280xbf16> to vector<4x1024xbf16>
    %cst_29 = arith.constant dense<0.000000e+00> : vector<4x1024xf32>
    %75 = tpu.matmul %73, %74, %cst_29 {dimension_numbers = #tpu.dot_dimension_numbers<[1], [0], [0], [1], [0, 0, 1, 1], [], []>} : vector<4x4xbf16>, vector<4x1024xbf16>, vector<4x1024xf32> -> vector<4x1024xf32>
    %c1 = arith.constant 1 : index
    %c0_30 = arith.constant 0 : index
    %c0_31 = arith.constant 0 : index
    %76 = vector.load %arg1[%c1, %c0_30, %c0_31] : memref<9x4x4xbf16, #tpu.memory_space<vmem>>, vector<1x4x4xbf16>
    %77 = vector.shape_cast %76 : vector<1x4x4xbf16> to vector<4x4xbf16>
    %78 = vector.extract_strided_slice %71 {offsets = [0, 110], sizes = [4, 1024], strides = [1, 1]} : vector<4x1280xbf16> to vector<4x1024xbf16>
    %cst_32 = arith.constant dense<0.000000e+00> : vector<4x1024xf32>
    %79 = tpu.matmul %77, %78, %cst_32 {dimension_numbers = #tpu.dot_dimension_numbers<[1], [0], [0], [1], [0, 0, 1, 1], [], []>} : vector<4x4xbf16>, vector<4x1024xbf16>, vector<4x1024xf32> -> vector<4x1024xf32>
    %80 = arith.addf %75, %79 : vector<4x1024xf32>
    %c2 = arith.constant 2 : index
    %c0_33 = arith.constant 0 : index
    %c0_34 = arith.constant 0 : index
    %81 = vector.load %arg1[%c2, %c0_33, %c0_34] : memref<9x4x4xbf16, #tpu.memory_space<vmem>>, vector<1x4x4xbf16>
    %82 = vector.shape_cast %81 : vector<1x4x4xbf16> to vector<4x4xbf16>
    %83 = vector.extract_strided_slice %71 {offsets = [0, 111], sizes = [4, 1024], strides = [1, 1]} : vector<4x1280xbf16> to vector<4x1024xbf16>
    %cst_35 = arith.constant dense<0.000000e+00> : vector<4x1024xf32>
    %84 = tpu.matmul %82, %83, %cst_35 {dimension_numbers = #tpu.dot_dimension_numbers<[1], [0], [0], [1], [0, 0, 1, 1], [], []>} : vector<4x4xbf16>, vector<4x1024xbf16>, vector<4x1024xf32> -> vector<4x1024xf32>
    %85 = arith.addf %80, %84 : vector<4x1024xf32>
    %c3 = arith.constant 3 : index
    %c0_36 = arith.constant 0 : index
    %c0_37 = arith.constant 0 : index
    %86 = vector.load %arg1[%c3, %c0_36, %c0_37] : memref<9x4x4xbf16, #tpu.memory_space<vmem>>, vector<1x4x4xbf16>
    %87 = vector.shape_cast %86 : vector<1x4x4xbf16> to vector<4x4xbf16>
    %88 = vector.extract_strided_slice %71 {offsets = [0, 127], sizes = [4, 1024], strides = [1, 1]} : vector<4x1280xbf16> to vector<4x1024xbf16>
    %cst_38 = arith.constant dense<0.000000e+00> : vector<4x1024xf32>
    %89 = tpu.matmul %87, %88, %cst_38 {dimension_numbers = #tpu.dot_dimension_numbers<[1], [0], [0], [1], [0, 0, 1, 1], [], []>} : vector<4x4xbf16>, vector<4x1024xbf16>, vector<4x1024xf32> -> vector<4x1024xf32>
    %90 = arith.addf %85, %89 : vector<4x1024xf32>
    %c4 = arith.constant 4 : index
    %c0_39 = arith.constant 0 : index
    %c0_40 = arith.constant 0 : index
    %91 = vector.load %arg1[%c4, %c0_39, %c0_40] : memref<9x4x4xbf16, #tpu.memory_space<vmem>>, vector<1x4x4xbf16>
    %92 = vector.shape_cast %91 : vector<1x4x4xbf16> to vector<4x4xbf16>
    %93 = vector.extract_strided_slice %71 {offsets = [0, 128], sizes = [4, 1024], strides = [1, 1]} : vector<4x1280xbf16> to vector<4x1024xbf16>
    %cst_41 = arith.constant dense<0.000000e+00> : vector<4x1024xf32>
    %94 = tpu.matmul %92, %93, %cst_41 {dimension_numbers = #tpu.dot_dimension_numbers<[1], [0], [0], [1], [0, 0, 1, 1], [], []>} : vector<4x4xbf16>, vector<4x1024xbf16>, vector<4x1024xf32> -> vector<4x1024xf32>
    %95 = arith.addf %90, %94 : vector<4x1024xf32>
    %c5 = arith.constant 5 : index
    %c0_42 = arith.constant 0 : index
    %c0_43 = arith.constant 0 : index
    %96 = vector.load %arg1[%c5, %c0_42, %c0_43] : memref<9x4x4xbf16, #tpu.memory_space<vmem>>, vector<1x4x4xbf16>
    %97 = vector.shape_cast %96 : vector<1x4x4xbf16> to vector<4x4xbf16>
    %98 = vector.extract_strided_slice %71 {offsets = [0, 129], sizes = [4, 1024], strides = [1, 1]} : vector<4x1280xbf16> to vector<4x1024xbf16>
    %cst_44 = arith.constant dense<0.000000e+00> : vector<4x1024xf32>
    %99 = tpu.matmul %97, %98, %cst_44 {dimension_numbers = #tpu.dot_dimension_numbers<[1], [0], [0], [1], [0, 0, 1, 1], [], []>} : vector<4x4xbf16>, vector<4x1024xbf16>, vector<4x1024xf32> -> vector<4x1024xf32>
    %100 = arith.addf %95, %99 : vector<4x1024xf32>
    %c6 = arith.constant 6 : index
    %c0_45 = arith.constant 0 : index
    %c0_46 = arith.constant 0 : index
    %101 = vector.load %arg1[%c6, %c0_45, %c0_46] : memref<9x4x4xbf16, #tpu.memory_space<vmem>>, vector<1x4x4xbf16>
    %102 = vector.shape_cast %101 : vector<1x4x4xbf16> to vector<4x4xbf16>
    %103 = vector.extract_strided_slice %71 {offsets = [0, 145], sizes = [4, 1024], strides = [1, 1]} : vector<4x1280xbf16> to vector<4x1024xbf16>
    %cst_47 = arith.constant dense<0.000000e+00> : vector<4x1024xf32>
    %104 = tpu.matmul %102, %103, %cst_47 {dimension_numbers = #tpu.dot_dimension_numbers<[1], [0], [0], [1], [0, 0, 1, 1], [], []>} : vector<4x4xbf16>, vector<4x1024xbf16>, vector<4x1024xf32> -> vector<4x1024xf32>
    %105 = arith.addf %100, %104 : vector<4x1024xf32>
    %c7 = arith.constant 7 : index
    %c0_48 = arith.constant 0 : index
    %c0_49 = arith.constant 0 : index
    %106 = vector.load %arg1[%c7, %c0_48, %c0_49] : memref<9x4x4xbf16, #tpu.memory_space<vmem>>, vector<1x4x4xbf16>
    %107 = vector.shape_cast %106 : vector<1x4x4xbf16> to vector<4x4xbf16>
    %108 = vector.extract_strided_slice %71 {offsets = [0, 146], sizes = [4, 1024], strides = [1, 1]} : vector<4x1280xbf16> to vector<4x1024xbf16>
    %cst_50 = arith.constant dense<0.000000e+00> : vector<4x1024xf32>
    %109 = tpu.matmul %107, %108, %cst_50 {dimension_numbers = #tpu.dot_dimension_numbers<[1], [0], [0], [1], [0, 0, 1, 1], [], []>} : vector<4x4xbf16>, vector<4x1024xbf16>, vector<4x1024xf32> -> vector<4x1024xf32>
    %110 = arith.addf %105, %109 : vector<4x1024xf32>
    %c8 = arith.constant 8 : index
    %c0_51 = arith.constant 0 : index
    %c0_52 = arith.constant 0 : index
    %111 = vector.load %arg1[%c8, %c0_51, %c0_52] : memref<9x4x4xbf16, #tpu.memory_space<vmem>>, vector<1x4x4xbf16>
    %112 = vector.shape_cast %111 : vector<1x4x4xbf16> to vector<4x4xbf16>
    %113 = vector.extract_strided_slice %71 {offsets = [0, 147], sizes = [4, 1024], strides = [1, 1]} : vector<4x1280xbf16> to vector<4x1024xbf16>
    %cst_53 = arith.constant dense<0.000000e+00> : vector<4x1024xf32>
    %114 = tpu.matmul %112, %113, %cst_53 {dimension_numbers = #tpu.dot_dimension_numbers<[1], [0], [0], [1], [0, 0, 1, 1], [], []>} : vector<4x4xbf16>, vector<4x1024xbf16>, vector<4x1024xf32> -> vector<4x1024xf32>
    %115 = arith.addf %110, %114 : vector<4x1024xf32>
    %c0_54 = arith.constant 0 : index
    %c0_55 = arith.constant 0 : index
    %116 = vector.load %arg5[%c0_54, %c0_55] : memref<4x1024xbf16, #tpu.memory_space<vmem>>, vector<1x1024xbf16>
    %117 = arith.extf %116 : vector<1x1024xbf16> to vector<1x1024xf32>
    %118 = arith.cmpf oeq, %117, %117 : vector<1x1024xf32>
    %cst_56 = arith.constant 0x7FC00000 : f32
    %119 = vector.shape_cast %118 : vector<1x1024xi1> to vector<1x1024xi1>
    %120 = vector.broadcast %119 : vector<1x1024xi1> to vector<4x1024xi1>
    %121 = vector.broadcast %cst_56 : f32 to vector<4x1024xf32>
    %122 = arith.select %120, %115, %121 : vector<4x1024xi1>, vector<4x1024xf32>
    %123 = arith.truncf %122 : vector<4x1024xf32> to vector<4x1024xbf16>
    %c0_57 = arith.constant 0 : index
    %c0_58 = arith.constant 0 : index
    %124 = vector.load %arg7[%c0_57, %c0_58] : memref<4x1024xbf16, #tpu.memory_space<vmem>>, vector<4x1024xbf16>
    tpu.vector_store %arg7[%c0_57, %c0_58], %123 {strides = array<i32>} : memref<4x1024xbf16, #tpu.memory_space<vmem>>, vector<4x1024xbf16>,
    %cst_59 = arith.constant 0.000000e+00 : f32
    %125 = vector.shape_cast %118 : vector<1x1024xi1> to vector<1x1024xi1>
    %126 = vector.broadcast %125 : vector<1x1024xi1> to vector<4x1024xi1>
    %127 = vector.broadcast %cst_59 : f32 to vector<4x1024xf32>
    %128 = arith.select %126, %115, %127 : vector<4x1024xi1>, vector<4x1024xf32>
    %cst_60 = arith.constant dense<0.000000e+00> : vector<4xf32>
    %129 = vector.multi_reduction <add>, %128, %cst_60 [1] : vector<4x1024xf32> to vector<4xf32>
    %130 = vector.shape_cast %129 : vector<4xf32> to vector<4x1xf32>
    %c0_61 = arith.constant 0 : index
    %c0_62 = arith.constant 0 : index
    %c0_63 = arith.constant 0 : index
    %131 = vector.load %arg8[%c0_61, %c0_62, %c0_63] : memref<1x4x1xf32, #tpu.memory_space<vmem>>, vector<1x4x1xf32>
    %132 = vector.shape_cast %131 : vector<1x4x1xf32> to vector<4x1xf32>
    %133 = vector.shape_cast %130 : vector<4x1xf32> to vector<1x4x1xf32>
    tpu.vector_store %arg8[%c0_61, %c0_62, %c0_63], %133 {strides = array<i32>} : memref<1x4x1xf32, #tpu.memory_space<vmem>>, vector<1x4x1xf32>,
    %134 = arith.mulf %128, %128 : vector<4x1024xf32>
    %cst_64 = arith.constant dense<0.000000e+00> : vector<4xf32>
    %135 = vector.multi_reduction <add>, %134, %cst_64 [1] : vector<4x1024xf32> to vector<4xf32>
    %136 = vector.shape_cast %135 : vector<4xf32> to vector<4x1xf32>
    %c0_65 = arith.constant 0 : index
    %c0_66 = arith.constant 0 : index
    %c0_67 = arith.constant 0 : index
    %137 = vector.load %arg9[%c0_65, %c0_66, %c0_67] : memref<1x4x1xf32, #tpu.memory_space<vmem>>, vector<1x4x1xf32>
    %138 = vector.shape_cast %137 : vector<1x4x1xf32> to vector<4x1xf32>
    %139 = vector.shape_cast %136 : vector<4x1xf32> to vector<1x4x1xf32>
    tpu.vector_store %arg9[%c0_65, %c0_66, %c0_67], %139 {strides = array<i32>} : memref<1x4x1xf32, #tpu.memory_space<vmem>>, vector<1x4x1xf32>,
    return
  }
  func.func @transform_0(%arg0: i32) -> (i32, i32, i32) {
    %c0_i32 = arith.constant 0 : i32
    %c0_i32_0 = arith.constant 0 : i32
    %c0_i32_1 = arith.constant 0 : i32
    %c0_i32_2 = arith.constant 0 : i32
    return %c0_i32, %c0_i32_0, %c0_i32_1 : i32, i32, i32
  }
  func.func @transform_1(%arg0: i32) -> (i32, i32) {
    %c0_i32 = arith.constant 0 : i32
    %c0_i32_0 = arith.constant 0 : i32
    %c0_i32_1 = arith.constant 0 : i32
    return %c0_i32, %c0_i32_0 : i32, i32
  }
  func.func @transform_2(%arg0: i32) -> (i32, i32) {
    %c0_i32 = arith.constant 0 : i32
    %c0_i32_0 = arith.constant 0 : i32
    %c0_i32_1 = arith.constant 0 : i32
    return %c0_i32, %c0_i32_0 : i32, i32
  }
  func.func @transform_3(%arg0: i32) -> (i32, i32) {
    %c1_i32 = arith.constant 1 : i32
    %0 = arith.addi %arg0, %c1_i32 : i32
    %c8_i32 = arith.constant 8 : i32
    %1 = arith.muli %0, %c8_i32 : i32
    %c1_i32_0 = arith.constant 1 : i32
    %2 = arith.subi %1, %c1_i32_0 : i32
    %c0_i32 = arith.constant 0 : i32
    %c0_i32_1 = arith.constant 0 : i32
    return %c0_i32, %2 : i32, i32
  }
  func.func @transform_4(%arg0: i32) -> (i32, i32) {
    %c1_i32 = arith.constant 1 : i32
    %0 = arith.addi %arg0, %c1_i32 : i32
    %c0_i32 = arith.constant 0 : i32
    %c0_i32_0 = arith.constant 0 : i32
    return %c0_i32, %0 : i32, i32
  }
  func.func @transform_5(%arg0: i32) -> (i32, i32) {
    %c2_i32 = arith.constant 2 : i32
    %0 = arith.addi %arg0, %c2_i32 : i32
    %c8_i32 = arith.constant 8 : i32
    %1 = arith.muli %0, %c8_i32 : i32
    %c0_i32 = arith.constant 0 : i32
    %c0_i32_0 = arith.constant 0 : i32
    return %c0_i32, %1 : i32, i32
  }
  func.func @transform_6(%arg0: i32) -> (i32, i32) {
    %c1_i32 = arith.constant 1 : i32
    %0 = arith.addi %arg0, %c1_i32 : i32
    %c0_i32 = arith.constant 0 : i32
    %c0_i32_0 = arith.constant 0 : i32
    return %c0_i32, %0 : i32, i32
  }
  func.func @transform_7(%arg0: i32) -> (i32, i32, i32) {
    %c0_i32 = arith.constant 0 : i32
    %c0_i32_0 = arith.constant 0 : i32
    %c0_i32_1 = arith.constant 0 : i32
    return %arg0, %c0_i32, %c0_i32_0 : i32, i32, i32
  }
  func.func @transform_8(%arg0: i32) -> (i32, i32, i32) {
    %c0_i32 = arith.constant 0 : i32
    %c0_i32_0 = arith.constant 0 : i32
    %c0_i32_1 = arith.constant 0 : i32
    return %arg0, %c0_i32, %c0_i32_0 : i32, i32, i32
  }
}

module attributes {stable_mosaic.version = 11 : i64} {
  func.func @_bn_residual_kernel(%arg0: i32, %arg1: memref<4x1024xbf16, #tpu.memory_space<vmem>>, %arg2: memref<4x1024xbf16, #tpu.memory_space<vmem>>, %arg3: memref<4x1xf32, #tpu.memory_space<vmem>>, %arg4: memref<4x1xf32, #tpu.memory_space<vmem>>, %arg5: memref<4x1024xf32, #tpu.memory_space<vmem>>) attributes {dimension_semantics = [#tpu.dimension_semantics<parallel>], iteration_bounds = array<i64: 1>, scalar_prefetch = 0 : i64, scratch_operands = 0 : i64, tpu.core_type = #tpu.core_type<tc>, window_params = [{transform_indices = @transform_0, window_bounds = array<i64: 4, 1024>}, {transform_indices = @transform_1, window_bounds = array<i64: 4, 1024>}, {pipeline_mode = #tpu.pipeline_mode<synchronous>, transform_indices = @transform_2, window_bounds = array<i64: 4, 1>}, {pipeline_mode = #tpu.pipeline_mode<synchronous>, transform_indices = @transform_3, window_bounds = array<i64: 4, 1>}, {transform_indices = @transform_4, window_bounds = array<i64: 4, 1024>}]} {
    %c0 = arith.constant 0 : index
    %c0_0 = arith.constant 0 : index
    %0 = vector.load %arg1[%c0, %c0_0] : memref<4x1024xbf16, #tpu.memory_space<vmem>>, vector<4x1024xbf16>
    %1 = arith.extf %0 : vector<4x1024xbf16> to vector<4x1024xf32>
    %c0_1 = arith.constant 0 : index
    %c0_2 = arith.constant 0 : index
    %2 = vector.load %arg3[%c0_1, %c0_2] : memref<4x1xf32, #tpu.memory_space<vmem>>, vector<4x1xf32>
    %3 = vector.broadcast %2 : vector<4x1xf32> to vector<4x1024xf32>
    %4 = arith.mulf %1, %3 : vector<4x1024xf32>
    %c0_3 = arith.constant 0 : index
    %c0_4 = arith.constant 0 : index
    %5 = vector.load %arg4[%c0_3, %c0_4] : memref<4x1xf32, #tpu.memory_space<vmem>>, vector<4x1xf32>
    %6 = vector.broadcast %5 : vector<4x1xf32> to vector<4x1024xf32>
    %7 = arith.addf %4, %6 : vector<4x1024xf32>
    %c0_5 = arith.constant 0 : index
    %c0_6 = arith.constant 0 : index
    %8 = vector.load %arg2[%c0_5, %c0_6] : memref<4x1024xbf16, #tpu.memory_space<vmem>>, vector<4x1024xbf16>
    %9 = arith.extf %8 : vector<4x1024xbf16> to vector<4x1024xf32>
    %10 = arith.addf %7, %9 : vector<4x1024xf32>
    %cst = arith.constant 0.000000e+00 : f32
    %11 = vector.broadcast %cst : f32 to vector<4x1024xf32>
    %12 = arith.cmpf oge, %10, %11 : vector<4x1024xf32>
    %cst_7 = arith.constant 2.000000e-01 : f32
    %13 = vector.broadcast %cst_7 : f32 to vector<4x1024xf32>
    %14 = arith.mulf %13, %10 : vector<4x1024xf32>
    %15 = arith.select %12, %10, %14 : vector<4x1024xi1>, vector<4x1024xf32>
    %c0_8 = arith.constant 0 : index
    %c0_9 = arith.constant 0 : index
    %16 = vector.load %arg5[%c0_8, %c0_9] : memref<4x1024xf32, #tpu.memory_space<vmem>>, vector<4x1024xf32>
    tpu.vector_store %arg5[%c0_8, %c0_9], %15 {strides = array<i32>} : memref<4x1024xf32, #tpu.memory_space<vmem>>, vector<4x1024xf32>,
    return
  }
  func.func @transform_0(%arg0: i32) -> (i32, i32) {
    %c1_i32 = arith.constant 1 : i32
    %0 = arith.addi %arg0, %c1_i32 : i32
    %c0_i32 = arith.constant 0 : i32
    %c0_i32_0 = arith.constant 0 : i32
    return %c0_i32, %0 : i32, i32
  }
  func.func @transform_1(%arg0: i32) -> (i32, i32) {
    %c1_i32 = arith.constant 1 : i32
    %0 = arith.addi %arg0, %c1_i32 : i32
    %c0_i32 = arith.constant 0 : i32
    %c0_i32_0 = arith.constant 0 : i32
    return %c0_i32, %0 : i32, i32
  }
  func.func @transform_2(%arg0: i32) -> (i32, i32) {
    %c0_i32 = arith.constant 0 : i32
    %c0_i32_0 = arith.constant 0 : i32
    %c0_i32_1 = arith.constant 0 : i32
    return %c0_i32, %c0_i32_0 : i32, i32
  }
  func.func @transform_3(%arg0: i32) -> (i32, i32) {
    %c0_i32 = arith.constant 0 : i32
    %c0_i32_0 = arith.constant 0 : i32
    %c0_i32_1 = arith.constant 0 : i32
    return %c0_i32, %c0_i32_0 : i32, i32
  }
  func.func @transform_4(%arg0: i32) -> (i32, i32) {
    %c1_i32 = arith.constant 1 : i32
    %0 = arith.addi %arg0, %c1_i32 : i32
    %c0_i32 = arith.constant 0 : i32
    %c0_i32_0 = arith.constant 0 : i32
    return %c0_i32, %0 : i32, i32
  }
}

</mosaic_0001>

<llo_original>
// kernel: residual_block.5
$region0: #{residual_block.5}
  #allocation0 [shape = 'u32[]', space=smem, size = 0x4, offset = 0x4, fixed_abs, tag = 'smem constant byte address 0x4 - core index']
  #allocation1 [shape = 'u32[144,128]{1,0:T(1,128)}', space=vmem, size = 0x12000, scoped, tag = 'internal scratch']
  %s0 = inlined_call_operand.vmem [shape: bf16[4,3072], index: 0, kind: input, shape index: {}]
  %s1 = inlined_call_operand.vmem [shape: bf16[4,3072], index: 1, kind: input, shape index: {}]
  %s2 = inlined_call_operand.vmem [shape: f32[4,1], index: 2, kind: input, shape index: {}]
  %s3 = inlined_call_operand.vmem [shape: f32[4,1], index: 3, kind: input, shape index: {}]
  %s4 = inlined_call_operand.vmem [shape: f32[4,3072], index: 4, kind: output, shape index: {}]
  %s5 = sld [smem:[#allocation0]]
  $region26: #{residual_block.5} parent=0
    _
  %s7 = ssub.s32 1, %s5
  %s8 = scalar_select 0, %s7, %s5
  // Predicated region
  $region2: #{residual_block.5} parent=0 // pred_check
    _
  $region3: #{residual_block.5} parent=0 // pred_check_branch
    %10 = sbr.rel (0) target = $region5
  $region4: #{residual_block.5} parent=0 // pred_region
    %s11 = sadd.s32 0, 1
    %s12 = smul.u32 8, %s11
    %p13 = scmp.lt.s32.totalorder %s12, 23
    %s14 = scalar_select %p13, %s12, 23
    %s15 = smul.addr %s14, 2
    %s16 = scalar_lea.vmem %s0, %s15
    %s17 = sadd.s32 0, 1
    %s18 = smul.u32 8, %s17
  $region5: #{residual_block.5} parent=0 // pred_fallthru
    _
  // Predicated region
  $region6: #{residual_block.5} parent=0 // pred_check
    _
  $region7: #{residual_block.5} parent=0 // pred_check_branch
    %20 = sbr.rel (0) target = $region9
  $region8: #{residual_block.5} parent=0 // pred_region
    %s21 = sadd.s32 0, 1
    %s22 = smul.u32 8, %s21
    %p23 = scmp.lt.s32.totalorder %s22, 23
    %s24 = scalar_select %p23, %s22, 23
    %s25 = smul.addr %s24, 2
    %s26 = scalar_lea.vmem %s1, %s25
    %s27 = sadd.s32 0, 1
    %s28 = smul.u32 8, %s27
  $region9: #{residual_block.5} parent=0 // pred_fallthru
    _
  // Predicated region
  $region10: #{residual_block.5} parent=0 // pred_check
    _
  $region11: #{residual_block.5} parent=0 // pred_check_branch
    %30 = sbr.rel (0) target = $region13
  $region12: #{residual_block.5} parent=0 // pred_region
    _
  $region13: #{residual_block.5} parent=0 // pred_fallthru
    _
  // Predicated region
  $region14: #{residual_block.5} parent=0 // pred_check
    _
  $region15: #{residual_block.5} parent=0 // pred_check_branch
    %32 = sbr.rel (0) target = $region17
  $region16: #{residual_block.5} parent=0 // pred_region
    _
  $region17: #{residual_block.5} parent=0 // pred_fallthru
    _
  %s33 = sadd.s32 0, 1
  %s34 = smul.u32 8, %s33
  %p35 = scmp.lt.s32.totalorder %s34, 23
  %s36 = scalar_select %p35, %s34, 23
  %s37 = smul.addr %s36, 2
  %s38 = scalar_lea.vmem %s0, %s37
  %s39 = sadd.s32 0, 1
  %s40 = smul.u32 8, %s39
  %p41 = scmp.lt.s32.totalorder %s40, 23
  %s42 = scalar_select %p41, %s40, 23
  %s43 = smul.addr %s42, 2
  %s44 = scalar_lea.vmem %s1, %s43
  %s45 = sadd.s32 0, 1
  %s46 = smul.u32 8, %s45
  %p47 = scmp.lt.s32.totalorder %s46, 23
  %s48 = scalar_select %p47, %s46, 23
  %s49 = smul.addr %s48, 4
  %s50 = scalar_lea.vmem %s4, %s49
  %s51 = sadd.s32 0, 1
  %s52 = smul.u32 8, %s51
  %p53 = scmp.lt.s32.totalorder %s52, 23
  %s54 = scalar_select %p53, %s52, 23
  %s55 = smul.addr %s54, 2
  %s56 = scalar_lea.vmem %s0, %s55
  %s57 = sadd.s32 0, 1
  %s58 = smul.u32 8, %s57
  %s59 = sadd.s32 0, 1
  %s60 = smul.u32 8, %s59
  %p61 = scmp.lt.s32.totalorder %s60, 23
  %s62 = scalar_select %p61, %s60, 23
  %s63 = smul.addr %s62, 2
  %s64 = scalar_lea.vmem %s1, %s63
  %s65 = sadd.s32 0, 1
  %s66 = smul.u32 8, %s65
  %s67 = sadd.s32 0, 1
  %s68 = smul.u32 8, %s67
  %p69 = scmp.lt.s32.totalorder %s68, 23
  %s70 = scalar_select %p69, %s68, 23
  %s71 = smul.addr %s70, 4
  %s72 = scalar_lea.vmem %s4, %s71
  %s73 = sadd.s32 0, 1
  %s74 = smul.u32 8, %s73
  %v75 = vld [vmem:[%s56] sm:$0xff]
  %v76 = vld [vmem:[%s56 + $0x8] sm:$0xff]
  %v77 = vunpack.c.l.bf16 %v75
  %v78 = vunpack.c.h.bf16 %v75
  %v79 = vunpack.c.l.bf16 %v76
  %v80 = vunpack.c.h.bf16 %v76
  %v81 = vld [vmem:[%s2] sm:$0xf]
  %83 = vset.pattern.permute.xlu0 0
  %84 = vperm.xlu0 %83, %v81
  %v85 = vpop.permute.xlu0 %84
  %v87 = vunpack.c.l.s4 839922192
  %v88 = vunpack.c.0.s8 %v87
  %v89 = vlaneseq
  %v90 = vshrl.u32 %v89, 7
  %v91 = vsub.s32 %v88, %v90
  %v92 = vrot.slane %v85, %v91
  %v94 = vmul.f32 %v77, %v92
  %v95 = vmul.f32 %v78, %v92
  %v96 = vmul.f32 %v79, %v92
  %v97 = vmul.f32 %v80, %v92
  %v98 = vld [vmem:[%s3] sm:$0xf]
  %100 = vset.pattern.permute.xlu0 0
  %101 = vperm.xlu0 %100, %v98
  %v102 = vpop.permute.xlu0 %101
  %v104 = vunpack.c.l.s4 839922192
  %v105 = vunpack.c.0.s8 %v104
  %v106 = vlaneseq
  %v107 = vshrl.u32 %v106, 7
  %v108 = vsub.s32 %v105, %v107
  %v109 = vrot.slane %v102, %v108
  %v111 = vadd.f32 %v94, %v109
  %v112 = vadd.f32 %v95, %v109
  %v113 = vadd.f32 %v96, %v109
  %v114 = vadd.f32 %v97, %v109
  %v115 = vld [vmem:[%s64] sm:$0xff]
  %v116 = vld [vmem:[%s64 + $0x8] sm:$0xff]
  %v117 = vunpack.c.l.bf16 %v115
  %v118 = vunpack.c.h.bf16 %v115
  %v119 = vunpack.c.l.bf16 %v116
  %v120 = vunpack.c.h.bf16 %v116
  %v121 = vadd.f32 %v111, %v117
  %v122 = vadd.f32 %v112, %v118
  %v123 = vadd.f32 %v113, %v119
  %v124 = vadd.f32 %v114, %v120
  %vm125 = vcmp.ge.f32.partialorder %v121, 0.0
  %vm126 = vcmp.ge.f32.partialorder %v122, 0.0
  %vm127 = vcmp.ge.f32.partialorder %v123, 0.0
  %vm128 = vcmp.ge.f32.partialorder %v124, 0.0
  %v129 = vmul.f32 %v121, 0.2
  %v130 = vmul.f32 %v122, 0.2
  %v131 = vmul.f32 %v123, 0.2
  %v132 = vmul.f32 %v124, 0.2
  %v133 = vsel %vm125, %v121, %v129
  %v134 = vsel %vm126, %v122, %v130
  %v135 = vsel %vm127, %v123, %v131
  %v136 = vsel %vm128, %v124, %v132
  %137 = vst [vmem:[%s72] sm:$0xff] %v133
  %138 = vst [vmem:[%s72 + $0x8] sm:$0xff] %v134
  %139 = vst [vmem:[%s72 + $0x10] sm:$0xff] %v135
  %140 = vst [vmem:[%s72 + $0x18] sm:$0xff] %v136
  %s141 = sadd.s32 0, 1
  %s142 = smul.u32 8, %s141
  %p143 = scmp.lt.s32.totalorder %s142, 23
  %s144 = scalar_select %p143, %s142, 23
  %s145 = smul.addr %s144, 4
  %s146 = scalar_lea.vmem %s4, %s145
  // Predicated region
  $region18: #{residual_block.5} parent=0 // pred_check
    _
  $region19: #{residual_block.5} parent=0 // pred_check_branch
    %148 = sbr.rel (0) target = $region21
  $region20: #{residual_block.5} parent=0 // pred_region
    %s149 = sadd.s32 0, 1
    %s150 = smul.u32 8, %s149
  $region21: #{residual_block.5} parent=0 // pred_fallthru
    _
  // Predicated region
  $region22: #{residual_block.5} parent=0 // pred_check
    _
  $region23: #{residual_block.5} parent=0 // pred_check_branch
    %152 = sbr.rel (0) target = $region25
  $region24: #{residual_block.5} parent=0 // pred_region
    %s153 = sadd.s32 0, 1
    %s154 = smul.u32 8, %s153
    %p155 = scmp.lt.s32.totalorder %s154, 23
    %s156 = scalar_select %p155, %s154, 23
    %s157 = smul.addr %s156, 4
    %s158 = scalar_lea.vmem %s4, %s157
  $region25: #{residual_block.5} parent=0 // pred_fallthru
    _

// kernel: residual_block.3
$region0: #{residual_block.3}
  #allocation0 [shape = 'u32[]', space=smem, size = 0x4, offset = 0x4, fixed_abs, tag = 'smem constant byte address 0x4 - core index']
  #allocation1 [shape = 'u32[144,128]{1,0:T(1,128)}', space=vmem, size = 0x12000, scoped, tag = 'internal scratch']
  #allocation2 [shape = 'bf16[4,1280]{1,0:T(4,128)(2,1)}', space=vmem, size = 0x2800, scoped, tag = 'scratch operand']
  #allocation3 [shape = 'f32[4,1024]{1,0:T(4,128)}', space=vmem, size = 0x4000, scoped, tag = 'scratch operand']
  %s0 = inlined_call_operand.vmem [shape: bf16[9,4,4], index: 0, kind: input, shape index: {}]
  %s1 = inlined_call_operand.vmem [shape: f32[4,1], index: 1, kind: input, shape index: {}]
  %s2 = inlined_call_operand.vmem [shape: f32[4,1], index: 2, kind: input, shape index: {}]
  %s3 = inlined_call_operand.vmem [shape: bf16[4,3072], index: 3, kind: input, shape index: {}, may-alias: {3,4,5}]
  %s4 = inlined_call_operand.vmem [shape: bf16[4,3072], index: 4, kind: input, shape index: {}, may-alias: {3,4,5}]
  %s5 = inlined_call_operand.vmem [shape: bf16[4,3072], index: 5, kind: input, shape index: {}, may-alias: {3,4,5}]
  %s6 = inlined_call_operand.vmem [shape: bf16[4,3072], index: 6, kind: output, shape index: {0}]
  %s7 = inlined_call_operand.vmem [shape: f32[1,4,1], index: 7, kind: output, shape index: {1}]
  %s8 = inlined_call_operand.vmem [shape: f32[1,4,1], index: 8, kind: output, shape index: {2}]
  %9 = xla_tuple %s6, %s7, %s8
  %s10 = sld [smem:[#allocation0]]
  $region50: #{residual_block.3} parent=0
    _
  %s12 = ssub.s32 1, %s10
  %s13 = scalar_select 0, %s12, %s10
  // Predicated region
  $region2: #{residual_block.3} parent=0 // pred_check
    _
  $region3: #{residual_block.3} parent=0 // pred_check_branch
    %15 = sbr.rel (0) target = $region5
  $region4: #{residual_block.3} parent=0 // pred_region
    _
  $region5: #{residual_block.3} parent=0 // pred_fallthru
    _
  // Predicated region
  $region6: #{residual_block.3} parent=0 // pred_check
    _
  $region7: #{residual_block.3} parent=0 // pred_check_branch
    %17 = sbr.rel (0) target = $region9
  $region8: #{residual_block.3} parent=0 // pred_region
    _
  $region9: #{residual_block.3} parent=0 // pred_fallthru
    _
  // Predicated region
  $region10: #{residual_block.3} parent=0 // pred_check
    _
  $region11: #{residual_block.3} parent=0 // pred_check_branch
    %19 = sbr.rel (0) target = $region13
  $region12: #{residual_block.3} parent=0 // pred_region
    _
  $region13: #{residual_block.3} parent=0 // pred_fallthru
    _
  // Predicated region
  $region14: #{residual_block.3} parent=0 // pred_check
    _
  $region15: #{residual_block.3} parent=0 // pred_check_branch
    %21 = sbr.rel (0) target = $region17
  $region16: #{residual_block.3} parent=0 // pred_region
    %s22 = sadd.s32 0, 1
    %s23 = smul.u32 %s22, 8
    %s24 = ssub.s32 %s23, 1
    %p25 = scmp.lt.s32.totalorder %s24, 23
    %s26 = scalar_select %p25, %s24, 23
    %s27 = smul.addr %s26, 2
    %s28 = scalar_lea.vmem %s3, %s27
    %s29 = sadd.s32 0, 1
    %s30 = smul.u32 %s29, 8
    %s31 = ssub.s32 %s30, 1
  $region17: #{residual_block.3} parent=0 // pred_fallthru
    _
  // Predicated region
  $region18: #{residual_block.3} parent=0 // pred_check
    _
  $region19: #{residual_block.3} parent=0 // pred_check_branch
    %33 = sbr.rel (0) target = $region21
  $region20: #{residual_block.3} parent=0 // pred_region
    %s34 = sadd.s32 0, 1
    %s35 = smul.u32 8, %s34
    %p36 = scmp.lt.s32.totalorder %s35, 23
    %s37 = scalar_select %p36, %s35, 23
    %s38 = smul.addr %s37, 2
    %s39 = scalar_lea.vmem %s4, %s38
    %s40 = sadd.s32 0, 1
    %s41 = smul.u32 8, %s40
  $region21: #{residual_block.3} parent=0 // pred_fallthru
    _
  // Predicated region
  $region22: #{residual_block.3} parent=0 // pred_check
    _
  $region23: #{residual_block.3} parent=0 // pred_check_branch
    %43 = sbr.rel (0) target = $region25
  $region24: #{residual_block.3} parent=0 // pred_region
    %s44 = sadd.s32 0, 2
    %s45 = smul.u32 %s44, 8
    %p46 = scmp.lt.s32.totalorder %s45, 23
    %s47 = scalar_select %p46, %s45, 23
    %s48 = smul.addr %s47, 2
    %s49 = scalar_lea.vmem %s5, %s48
    %s50 = sadd.s32 0, 2
    %s51 = smul.u32 %s50, 8
  $region25: #{residual_block.3} parent=0 // pred_fallthru
    _
  %s52 = sadd.s32 0, 1
  %s53 = smul.u32 %s52, 8
  %s54 = ssub.s32 %s53, 1
  %p55 = scmp.lt.s32.totalorder %s54, 23
  %s56 = scalar_select %p55, %s54, 23
  %s57 = smul.addr %s56, 2
  %s58 = scalar_lea.vmem %s3, %s57
  %s59 = sadd.s32 0, 1
  %s60 = smul.u32 8, %s59
  %p61 = scmp.lt.s32.totalorder %s60, 23
  %s62 = scalar_select %p61, %s60, 23
  %s63 = smul.addr %s62, 2
  %s64 = scalar_lea.vmem %s4, %s63
  %s65 = sadd.s32 0, 2
  %s66 = smul.u32 %s65, 8
  %p67 = scmp.lt.s32.totalorder %s66, 23
  %s68 = scalar_select %p67, %s66, 23
  %s69 = smul.addr %s68, 2
  %s70 = scalar_lea.vmem %s5, %s69
  %s71 = sadd.s32 0, 1
  %s72 = smul.u32 8, %s71
  %p73 = scmp.lt.s32.totalorder %s72, 23
  %s74 = scalar_select %p73, %s72, 23
  %s75 = smul.addr %s74, 2
  %s76 = scalar_lea.vmem %s6, %s75
  %s77 = sadd.s32 0, 1
  %s78 = smul.u32 %s77, 8
  %s79 = ssub.s32 %s78, 1
  %p80 = scmp.lt.s32.totalorder %s79, 23
  %s81 = scalar_select %p80, %s79, 23
  %s82 = smul.addr %s81, 2
  %s83 = scalar_lea.vmem %s3, %s82
  %s84 = sadd.s32 0, 1
  %s85 = smul.u32 %s84, 8
  %s86 = ssub.s32 %s85, 1
  %s87 = sadd.s32 0, 1
  %s88 = smul.u32 8, %s87
  %p89 = scmp.lt.s32.totalorder %s88, 23
  %s90 = scalar_select %p89, %s88, 23
  %s91 = smul.addr %s90, 2
  %s92 = scalar_lea.vmem %s4, %s91
  %s93 = sadd.s32 0, 1
  %s94 = smul.u32 8, %s93
  %s95 = sadd.s32 0, 2
  %s96 = smul.u32 %s95, 8
  %p97 = scmp.lt.s32.totalorder %s96, 23
  %s98 = scalar_select %p97, %s96, 23
  %s99 = smul.addr %s98, 2
  %s100 = scalar_lea.vmem %s5, %s99
  %s101 = sadd.s32 0, 2
  %s102 = smul.u32 %s101, 8
  %s103 = sadd.s32 0, 1
  %s104 = smul.u32 8, %s103
  %p105 = scmp.lt.s32.totalorder %s104, 23
  %s106 = scalar_select %p105, %s104, 23
  %s107 = smul.addr %s106, 2
  %s108 = scalar_lea.vmem %s6, %s107
  %s109 = sadd.s32 0, 1
  %s110 = smul.u32 8, %s109
  %v112 = vld [vmem:[%s83] sm:$0x3]
  %p113 = scmp.eq.s32.totalorder 0, 0
  %s114 = scalar_select %p113, 1, 0
  %v115 = vunpack.c.l.bf16 %v112
  %v116 = vlaneseq
  %v117 = vand.u32 %v116, 127
  %vm118 = vcmp.eq.f32.partialorder %v115, %v115
  %s119 = smul.u32 %s114, 128
  %v120 = vstv %s119
  %vm121 = vcmp.ge.s32.totalorder %v117, %v120
  %v122 = vsel %vm121, 1, 0
  %vm123 = vcmp.eq.s32.totalorder %v122, 1
  %vm124 = vmand %vm118, %vm123
  %v125 = vsel %vm124, %v115, 0.0
  %v126 = vpack.c.bf16 %v125, %v125
  %127 = vst [vmem:[#allocation2] sm:$0x3] %v126
  %v128 = vld [vmem:[%s92] sm:$0xff]
  %v129 = vld [vmem:[%s92 + $0x8] sm:$0xff]
  %v130 = vunpack.c.l.bf16 %v128
  %v131 = vunpack.c.h.bf16 %v128
  %v132 = vunpack.c.l.bf16 %v129
  %v133 = vunpack.c.h.bf16 %v129
  %v134 = vadd.s32 %v117, 128
  %v135 = vadd.s32 %v117, 256
  %v136 = vadd.s32 %v117, 384
  %v137 = vadd.s32 %v117, 512
  %v138 = vadd.s32 %v117, 640
  %v139 = vadd.s32 %v117, 768
  %v140 = vadd.s32 %v117, 896
  %vm141 = vcmp.eq.f32.partialorder %v130, %v130
  %vm142 = vcmp.eq.f32.partialorder %v131, %v131
  %vm143 = vcmp.eq.f32.partialorder %v132, %v132
  %vm144 = vcmp.eq.f32.partialorder %v133, %v133
  %vm145 = vcmp.ge.s32.totalorder %v117, 0
  %vm146 = vcmp.ge.s32.totalorder %v134, 0
  %vm147 = vcmp.ge.s32.totalorder %v135, 0
  %vm148 = vcmp.ge.s32.totalorder %v136, 0
  %vm149 = vcmp.ge.s32.totalorder %v137, 0
  %vm150 = vcmp.ge.s32.totalorder %v138, 0
  %vm151 = vcmp.ge.s32.totalorder %v139, 0
  %vm152 = vcmp.ge.s32.totalorder %v140, 0
  %v153 = vsel %vm145, 1, 0
  %v154 = vsel %vm146, 1, 0
  %v155 = vsel %vm147, 1, 0
  %v156 = vsel %vm148, 1, 0
  %v157 = vsel %vm149, 1, 0
  %v158 = vsel %vm150, 1, 0
  %v159 = vsel %vm151, 1, 0
  %v160 = vsel %vm152, 1, 0
  %vm161 = vcmp.eq.s32.totalorder %v153, 1
  %vm162 = vcmp.eq.s32.totalorder %v154, 1
  %vm163 = vcmp.eq.s32.totalorder %v155, 1
  %vm164 = vcmp.eq.s32.totalorder %v156, 1
  %vm165 = vcmp.eq.s32.totalorder %v157, 1
  %vm166 = vcmp.eq.s32.totalorder %v158, 1
  %vm167 = vcmp.eq.s32.totalorder %v159, 1
  %vm168 = vcmp.eq.s32.totalorder %v160, 1
  %v169 = vsel %vm161, 1, 0
  %v170 = vsel %vm162, 1, 0
  %v171 = vsel %vm163, 1, 0
  %v172 = vsel %vm164, 1, 0
  %v173 = vsel %vm165, 1, 0
  %v174 = vsel %vm166, 1, 0
  %v175 = vsel %vm167, 1, 0
  %v176 = vsel %vm168, 1, 0
  %v177 = vcombine.low %v169, %v170
  %v178 = vcombine.low %v171, %v172
  %v179 = vcombine.low %v173, %v174
  %v180 = vcombine.low %v175, %v176
  %vm181 = vcmp.ne.s32.totalorder %v177, 0
  %vm182 = vcmp.ne.s32.totalorder %v178, 0
  %vm183 = vcmp.ne.s32.totalorder %v179, 0
  %vm184 = vcmp.ne.s32.totalorder %v180, 0
  %vm185 = vmand %vm141, %vm181
  %vm186 = vmand %vm142, %vm182
  %vm187 = vmand %vm143, %vm183
  %vm188 = vmand %vm144, %vm184
  %v189 = vsel %vm185, %v130, 0.0
  %v190 = vsel %vm186, %v131, 0.0
  %v191 = vsel %vm187, %v132, 0.0
  %v192 = vsel %vm188, %v133, 0.0
  %v197 = vcombine.high %v189, %v189
  %v198 = vcombine.high %v190, %v190
  %v199 = vcombine.high %v191, %v191
  %v200 = vcombine.high %v192, %v192
  %v205 = vpack.c.bf16 %v189, %v189
  %v206 = vpack.c.bf16 %v197, %v197
  %v207 = vpack.c.bf16 %v190, %v190
  %v208 = vpack.c.bf16 %v198, %v198
  %v209 = vpack.c.bf16 %v191, %v191
  %v210 = vpack.c.bf16 %v199, %v199
  %v211 = vpack.c.bf16 %v192, %v192
  %v212 = vpack.c.bf16 %v200, %v200
  %v221 = vcombine.low %v205, %v206
  %v222 = vcombine.low %v207, %v208
  %v224 = vunpack.c.l.s4 1983009808
  %v225 = vunpack.c.0.s8 %v224
  %v226 = vlaneseq
  %v227 = vshrl.u32 %v226, 7
  %v228 = vsub.s32 %v225, %v227
  %v229 = vrot.slane %v221, %v228
  %v231 = vunpack.c.l.s4 1983009808
  %v232 = vunpack.c.0.s8 %v231
  %v233 = vlaneseq
  %v234 = vshrl.u32 %v233, 7
  %v235 = vsub.s32 %v232, %v234
  %v236 = vrot.slane %v222, %v235
  %v237 = vcombine.low %v229, %v236
  %v238 = vcombine.low %v209, %v210
  %v239 = vcombine.low %v211, %v212
  %v241 = vunpack.c.l.s4 1983009808
  %v242 = vunpack.c.0.s8 %v241
  %v243 = vlaneseq
  %v244 = vshrl.u32 %v243, 7
  %v245 = vsub.s32 %v242, %v244
  %v246 = vrot.slane %v238, %v245
  %v248 = vunpack.c.l.s4 1983009808
  %v249 = vunpack.c.0.s8 %v248
  %v250 = vlaneseq
  %v251 = vshrl.u32 %v250, 7
  %v252 = vsub.s32 %v249, %v251
  %v253 = vrot.slane %v239, %v252
  %v254 = vcombine.low %v246, %v253
  %257 = vst [vmem:[#allocation2 + $0x2] sm:$0xff] %v237
  %258 = vst [vmem:[#allocation2 + $0xa] sm:$0xff] %v254
  %v259 = vld [vmem:[%s100] sm:$0x3]
  %v260 = vunpack.c.l.bf16 %v259
  %vm261 = vcmp.eq.f32.partialorder %v260, %v260
  %vm262 = vmand %vm261, %vm123
  %v263 = vsel %vm262, %v260, 0.0
  %v264 = vpack.c.bf16 %v263, %v263
  %265 = vst [vmem:[#allocation2 + $0x12] sm:$0x3] %v264
  %v266 = vld [vmem:[#allocation2] sm:$0xff]
  %v267 = vld [vmem:[#allocation2 + $0x8] sm:$0xff]
  %v268 = vld [vmem:[#allocation2 + $0x10] sm:$0xf]
  %v269 = vld [vmem:[%s0] sm:$0x3]
  %s270 = scalar_lea.vmem %s0, 2
  %v271 = vld [vmem:[%s270] sm:$0x3]
  %v275 = vcombine.high %v266, %v266
  %v277 = vunpack.c.l.s4 1983009808
  %v278 = vunpack.c.0.s8 %v277
  %v279 = vlaneseq
  %v280 = vshrl.u32 %v279, 7
  %v281 = vsub.s32 %v278, %v280
  %v282 = vrot.slane %v266, %v281
  %v284 = vunpack.c.l.s4 1983009808
  %v285 = vunpack.c.0.s8 %v284
  %v286 = vlaneseq
  %v287 = vshrl.u32 %v286, 7
  %v288 = vsub.s32 %v285, %v287
  %v289 = vrot.slane %v275, %v288
  %v290 = vcombine.high %v282, %v282
  %v291 = vcombine.high %v289, %v289
  %v292 = vcombine.high %v267, %v267
  %v294 = vunpack.c.l.s4 1983009808
  %v295 = vunpack.c.0.s8 %v294
  %v296 = vlaneseq
  %v297 = vshrl.u32 %v296, 7
  %v298 = vsub.s32 %v295, %v297
  %v299 = vrot.slane %v267, %v298
  %v301 = vunpack.c.l.s4 1983009808
  %v302 = vunpack.c.0.s8 %v301
  %v303 = vlaneseq
  %v304 = vshrl.u32 %v303, 7
  %v305 = vsub.s32 %v302, %v304
  %v306 = vrot.slane %v292, %v305
  %v307 = vcombine.high %v299, %v299
  %v308 = vcombine.high %v306, %v306
  %v310 = vunpack.c.l.s4 1983009808
  %v311 = vunpack.c.0.s8 %v310
  %v312 = vlaneseq
  %v313 = vshrl.u32 %v312, 7
  %v314 = vsub.s32 %v311, %v313
  %v315 = vrot.slane %v268, %v314
  %316 = vrot.lane.b32.xlu0 %v282, 18
  %v317 = vpop.permute.xlu0 %316
  %318 = vrot.lane.b32.xlu0 %v290, 18
  %v319 = vpop.permute.xlu0 %318
  %320 = vrot.lane.b32.xlu0 %v289, 18
  %v321 = vpop.permute.xlu0 %320
  %322 = vrot.lane.b32.xlu0 %v291, 18
  %v323 = vpop.permute.xlu0 %322
  %324 = vrot.lane.b32.xlu0 %v299, 18
  %v325 = vpop.permute.xlu0 %324
  %326 = vrot.lane.b32.xlu0 %v307, 18
  %v327 = vpop.permute.xlu0 %326
  %328 = vrot.lane.b32.xlu0 %v306, 18
  %v329 = vpop.permute.xlu0 %328
  %330 = vrot.lane.b32.xlu0 %v308, 18
  %v331 = vpop.permute.xlu0 %330
  %332 = vrot.lane.b32.xlu0 %v315, 18
  %v333 = vpop.permute.xlu0 %332
  %vm334 = vcmask 146432
  %v335 = vsel %vm334, %v317, %v319
  %v336 = vsel %vm334, %v319, %v321
  %v337 = vsel %vm334, %v321, %v323
  %v338 = vsel %vm334, %v323, %v325
  %v339 = vsel %vm334, %v325, %v327
  %v340 = vsel %vm334, %v327, %v329
  %v341 = vsel %vm334, %v329, %v331
  %v342 = vsel %vm334, %v331, %v333
  %vm343 = vcmask 31744
  %v345 = vsel %vm343, %v271, 0
  %vm347 = vcmask 1041408
  %v349 = vsel %vm347, %v335, 0
  %v352 = vsel %vm347, %v336, 0
  %v355 = vsel %vm347, %v337, 0
  %v358 = vsel %vm347, %v338, 0
  %v361 = vsel %vm347, %v339, 0
  %v364 = vsel %vm347, %v340, 0
  %v367 = vsel %vm347, %v341, 0
  %v370 = vsel %vm347, %v342, 0
  %372 = vmatprep.subr.bf16.mxu0 %v352
  %373 = vmatpush1.bf16.msra.mxu0 %v349
  %374 = vmatprep.subr.bf16.mxu0 0
  %375 = vmatpush1.bf16.msra.mxu0 0
  %376 = vmatprep.subr.bf16.mxu0 0
  %377 = vmatpush1.bf16.msra.mxu0 0
  %378 = vmatprep.subr.bf16.mxu0 0
  %379 = vmatpush1.bf16.msra.mxu0 0
  %380 = vmatprep.subr.bf16.mxu0 0
  %381 = vmatpush1.bf16.msra.mxu0 0
  %382 = vmatprep.subr.bf16.mxu0 0
  %383 = vmatpush1.bf16.msra.mxu0 0
  %384 = vmatprep.subr.bf16.mxu0 0
  %385 = vmatpush1.bf16.msra.mxu0 0
  %386 = vmatprep.subr.bf16.mxu0 0
  %387 = vmatpush1.bf16.msra.mxu0 0
  %388 = vmatprep.subr.bf16.mxu0 0
  %389 = vmatpush1.bf16.msra.mxu0 0
  %390 = vmatprep.subr.bf16.mxu0 0
  %391 = vmatpush1.bf16.msra.mxu0 0
  %392 = vmatprep.subr.bf16.mxu0 0
  %393 = vmatpush1.bf16.msra.mxu0 0
  %394 = vmatprep.subr.bf16.mxu0 0
  %395 = vmatpush1.bf16.msra.mxu0 0
  %396 = vmatprep.subr.bf16.mxu0 0
  %397 = vmatpush1.bf16.msra.mxu0 0
  %398 = vmatprep.subr.bf16.mxu0 0
  %399 = vmatpush1.bf16.msra.mxu0 0
  %400 = vmatprep.subr.bf16.mxu0 0
  %401 = vmatpush1.bf16.msra.mxu0 0
  %402 = vmatprep.subr.bf16.mxu0 0
  %403 = vmatpush1.bf16.msra.mxu0 0
  %404 = vmatprep.mubr.bf16.mxu0 0
  %405 = vmatmul.mubr.bf16.gmra.mrb[0].mxu0 %v345
  %v406 = vpop.f32.mrb[0].mxu0
  %v407 = vadd.f32 0.0, %v406
  %v408 = vpop.f32.mrb[0].mxu0
  %v409 = vadd.f32 0.0, %v408
  %v410 = vpop.f32.mrb[0].mxu0
  %v411 = vpop.f32.mrb[0].mxu0
  %412 = vdwg.mxu0
  %413 = vmatprep.subr.bf16.mxu0 %v358
  %414 = vmatpush1.bf16.msra.mxu0 %v355
  %415 = vmatprep.subr.bf16.mxu0 0
  %416 = vmatpush1.bf16.msra.mxu0 0
  %417 = vmatprep.subr.bf16.mxu0 0
  %418 = vmatpush1.bf16.msra.mxu0 0
  %419 = vmatprep.subr.bf16.mxu0 0
  %420 = vmatpush1.bf16.msra.mxu0 0
  %421 = vmatprep.subr.bf16.mxu0 0
  %422 = vmatpush1.bf16.msra.mxu0 0
  %423 = vmatprep.subr.bf16.mxu0 0
  %424 = vmatpush1.bf16.msra.mxu0 0
  %425 = vmatprep.subr.bf16.mxu0 0
  %426 = vmatpush1.bf16.msra.mxu0 0
  %427 = vmatprep.subr.bf16.mxu0 0
  %428 = vmatpush1.bf16.msra.mxu0 0
  %429 = vmatprep.subr.bf16.mxu0 0
  %430 = vmatpush1.bf16.msra.mxu0 0
  %431 = vmatprep.subr.bf16.mxu0 0
  %432 = vmatpush1.bf16.msra.mxu0 0
  %433 = vmatprep.subr.bf16.mxu0 0
  %434 = vmatpush1.bf16.msra.mxu0 0
  %435 = vmatprep.subr.bf16.mxu0 0
  %436 = vmatpush1.bf16.msra.mxu0 0
  %437 = vmatprep.subr.bf16.mxu0 0
  %438 = vmatpush1.bf16.msra.mxu0 0
  %439 = vmatprep.subr.bf16.mxu0 0
  %440 = vmatpush1.bf16.msra.mxu0 0
  %441 = vmatprep.subr.bf16.mxu0 0
  %442 = vmatpush1.bf16.msra.mxu0 0
  %443 = vmatprep.subr.bf16.mxu0 0
  %444 = vmatpush1.bf16.msra.mxu0 0
  %445 = vmatprep.mubr.bf16.mxu0 0
  %446 = vmatmul.mubr.bf16.gmra.mrb[0].mxu0 %v345
  %v447 = vpop.f32.mrb[0].mxu0
  %v448 = vadd.f32 0.0, %v447
  %v449 = vpop.f32.mrb[0].mxu0
  %v450 = vadd.f32 0.0, %v449
  %v451 = vpop.f32.mrb[0].mxu0
  %v452 = vpop.f32.mrb[0].mxu0
  %453 = vdwg.mxu0
  %454 = vmatprep.subr.bf16.mxu0 %v364
  %455 = vmatpush1.bf16.msra.mxu0 %v361
  %456 = vmatprep.subr.bf16.mxu0 0
  %457 = vmatpush1.bf16.msra.mxu0 0
  %458 = vmatprep.subr.bf16.mxu0 0
  %459 = vmatpush1.bf16.msra.mxu0 0
  %460 = vmatprep.subr.bf16.mxu0 0
  %461 = vmatpush1.bf16.msra.mxu0 0
  %462 = vmatprep.subr.bf16.mxu0 0
  %463 = vmatpush1.bf16.msra.mxu0 0
  %464 = vmatprep.subr.bf16.mxu0 0
  %465 = vmatpush1.bf16.msra.mxu0 0
  %466 = vmatprep.subr.bf16.mxu0 0
  %467 = vmatpush1.bf16.msra.mxu0 0
  %468 = vmatprep.subr.bf16.mxu0 0
  %469 = vmatpush1.bf16.msra.mxu0 0
  %470 = vmatprep.subr.bf16.mxu0 0
  %471 = vmatpush1.bf16.msra.mxu0 0
  %472 = vmatprep.subr.bf16.mxu0 0
  %473 = vmatpush1.bf16.msra.mxu0 0
  %474 = vmatprep.subr.bf16.mxu0 0
  %475 = vmatpush1.bf16.msra.mxu0 0
  %476 = vmatprep.subr.bf16.mxu0 0
  %477 = vmatpush1.bf16.msra.mxu0 0
  %478 = vmatprep.subr.bf16.mxu0 0
  %479 = vmatpush1.bf16.msra.mxu0 0
  %480 = vmatprep.subr.bf16.mxu0 0
  %481 = vmatpush1.bf16.msra.mxu0 0
  %482 = vmatprep.subr.bf16.mxu0 0
  %483 = vmatpush1.bf16.msra.mxu0 0
  %484 = vmatprep.subr.bf16.mxu0 0
  %485 = vmatpush1.bf16.msra.mxu0 0
  %486 = vmatprep.mubr.bf16.mxu0 0
  %487 = vmatmul.mubr.bf16.gmra.mrb[0].mxu0 %v345
  %v488 = vpop.f32.mrb[0].mxu0
  %v489 = vadd.f32 0.0, %v488
  %v490 = vpop.f32.mrb[0].mxu0
  %v491 = vadd.f32 0.0, %v490
  %v492 = vpop.f32.mrb[0].mxu0
  %v493 = vpop.f32.mrb[0].mxu0
  %494 = vdwg.mxu0
  %495 = vmatprep.subr.bf16.mxu0 %v370
  %496 = vmatpush1.bf16.msra.mxu0 %v367
  %497 = vmatprep.subr.bf16.mxu0 0
  %498 = vmatpush1.bf16.msra.mxu0 0
  %499 = vmatprep.subr.bf16.mxu0 0
  %500 = vmatpush1.bf16.msra.mxu0 0
  %501 = vmatprep.subr.bf16.mxu0 0
  %502 = vmatpush1.bf16.msra.mxu0 0
  %503 = vmatprep.subr.bf16.mxu0 0
  %504 = vmatpush1.bf16.msra.mxu0 0
  %505 = vmatprep.subr.bf16.mxu0 0
  %506 = vmatpush1.bf16.msra.mxu0 0
  %507 = vmatprep.subr.bf16.mxu0 0
  %508 = vmatpush1.bf16.msra.mxu0 0
  %509 = vmatprep.subr.bf16.mxu0 0
  %510 = vmatpush1.bf16.msra.mxu0 0
  %511 = vmatprep.subr.bf16.mxu0 0
  %512 = vmatpush1.bf16.msra.mxu0 0
  %513 = vmatprep.subr.bf16.mxu0 0
  %514 = vmatpush1.bf16.msra.mxu0 0
  %515 = vmatprep.subr.bf16.mxu0 0
  %516 = vmatpush1.bf16.msra.mxu0 0
  %517 = vmatprep.subr.bf16.mxu0 0
  %518 = vmatpush1.bf16.msra.mxu0 0
  %519 = vmatprep.subr.bf16.mxu0 0
  %520 = vmatpush1.bf16.msra.mxu0 0
  %521 = vmatprep.subr.bf16.mxu0 0
  %522 = vmatpush1.bf16.msra.mxu0 0
  %523 = vmatprep.subr.bf16.mxu0 0
  %524 = vmatpush1.bf16.msra.mxu0 0
  %525 = vmatprep.subr.bf16.mxu0 0
  %526 = vmatpush1.bf16.msra.mxu0 0
  %527 = vmatprep.mubr.bf16.mxu0 0
  %528 = vmatmul.mubr.bf16.gmra.mrb[0].mxu0 %v345
  %v529 = vpop.f32.mrb[0].mxu0
  %v530 = vadd.f32 0.0, %v529
  %v531 = vpop.f32.mrb[0].mxu0
  %v532 = vadd.f32 0.0, %v531
  %v533 = vpop.f32.mrb[0].mxu0
  %v534 = vpop.f32.mrb[0].mxu0
  %535 = vdwg.mxu0
  %536 = vrot.lane.b32.xlu0 %v282, 19
  %v537 = vpop.permute.xlu0 %536
  %538 = vrot.lane.b32.xlu0 %v290, 19
  %v539 = vpop.permute.xlu0 %538
  %540 = vrot.lane.b32.xlu0 %v289, 19
  %v541 = vpop.permute.xlu0 %540
  %542 = vrot.lane.b32.xlu0 %v291, 19
  %v543 = vpop.permute.xlu0 %542
  %544 = vrot.lane.b32.xlu0 %v299, 19
  %v545 = vpop.permute.xlu0 %544
  %546 = vrot.lane.b32.xlu0 %v307, 19
  %v547 = vpop.permute.xlu0 %546
  %548 = vrot.lane.b32.xlu0 %v306, 19
  %v549 = vpop.permute.xlu0 %548
  %550 = vrot.lane.b32.xlu0 %v308, 19
  %v551 = vpop.permute.xlu0 %550
  %552 = vrot.lane.b32.xlu0 %v315, 19
  %v553 = vpop.permute.xlu0 %552
  %vm554 = vcmask 154624
  %v555 = vsel %vm554, %v537, %v539
  %v556 = vsel %vm554, %v539, %v541
  %v557 = vsel %vm554, %v541, %v543
  %v558 = vsel %vm554, %v543, %v545
  %v559 = vsel %vm554, %v545, %v547
  %v560 = vsel %vm554, %v547, %v549
  %v561 = vsel %vm554, %v549, %v551
  %v562 = vsel %vm554, %v551, %v553
  %v564 = vsel %vm343, %v269, 0
  %v567 = vsel %vm347, %v555, 0
  %v570 = vsel %vm347, %v556, 0
  %v573 = vsel %vm347, %v557, 0
  %v576 = vsel %vm347, %v558, 0
  %v579 = vsel %vm347, %v559, 0
  %v582 = vsel %vm347, %v560, 0
  %v585 = vsel %vm347, %v561, 0
  %v588 = vsel %vm347, %v562, 0
  %590 = vmatprep.subr.bf16.mxu0 %v570
  %591 = vmatpush1.bf16.msra.mxu0 %v567
  %592 = vmatprep.subr.bf16.mxu0 0
  %593 = vmatpush1.bf16.msra.mxu0 0
  %594 = vmatprep.subr.bf16.mxu0 0
  %595 = vmatpush1.bf16.msra.mxu0 0
  %596 = vmatprep.subr.bf16.mxu0 0
  %597 = vmatpush1.bf16.msra.mxu0 0
  %598 = vmatprep.subr.bf16.mxu0 0
  %599 = vmatpush1.bf16.msra.mxu0 0
  %600 = vmatprep.subr.bf16.mxu0 0
  %601 = vmatpush1.bf16.msra.mxu0 0
  %602 = vmatprep.subr.bf16.mxu0 0
  %603 = vmatpush1.bf16.msra.mxu0 0
  %604 = vmatprep.subr.bf16.mxu0 0
  %605 = vmatpush1.bf16.msra.mxu0 0
  %606 = vmatprep.subr.bf16.mxu0 0
  %607 = vmatpush1.bf16.msra.mxu0 0
  %608 = vmatprep.subr.bf16.mxu0 0
  %609 = vmatpush1.bf16.msra.mxu0 0
  %610 = vmatprep.subr.bf16.mxu0 0
  %611 = vmatpush1.bf16.msra.mxu0 0
  %612 = vmatprep.subr.bf16.mxu0 0
  %613 = vmatpush1.bf16.msra.mxu0 0
  %614 = vmatprep.subr.bf16.mxu0 0
  %615 = vmatpush1.bf16.msra.mxu0 0
  %616 = vmatprep.subr.bf16.mxu0 0
  %617 = vmatpush1.bf16.msra.mxu0 0
  %618 = vmatprep.subr.bf16.mxu0 0
  %619 = vmatpush1.bf16.msra.mxu0 0
  %620 = vmatprep.subr.bf16.mxu0 0
  %621 = vmatpush1.bf16.msra.mxu0 0
  %622 = vmatprep.mubr.bf16.mxu0 0
  %623 = vmatmul.mubr.bf16.gmra.mrb[0].mxu0 %v564
  %v624 = vpop.f32.mrb[0].mxu0
  %v625 = vadd.f32 %v407, %v624
  %v626 = vpop.f32.mrb[0].mxu0
  %v627 = vadd.f32 %v409, %v626
  %v628 = vpop.f32.mrb[0].mxu0
  %v629 = vpop.f32.mrb[0].mxu0
  %630 = vdwg.mxu0
  %631 = vmatprep.subr.bf16.mxu0 %v576
  %632 = vmatpush1.bf16.msra.mxu0 %v573
  %633 = vmatprep.subr.bf16.mxu0 0
  %634 = vmatpush1.bf16.msra.mxu0 0
  %635 = vmatprep.subr.bf16.mxu0 0
  %636 = vmatpush1.bf16.msra.mxu0 0
  %637 = vmatprep.subr.bf16.mxu0 0
  %638 = vmatpush1.bf16.msra.mxu0 0
  %639 = vmatprep.subr.bf16.mxu0 0
  %640 = vmatpush1.bf16.msra.mxu0 0
  %641 = vmatprep.subr.bf16.mxu0 0
  %642 = vmatpush1.bf16.msra.mxu0 0
  %643 = vmatprep.subr.bf16.mxu0 0
  %644 = vmatpush1.bf16.msra.mxu0 0
  %645 = vmatprep.subr.bf16.mxu0 0
  %646 = vmatpush1.bf16.msra.mxu0 0
  %647 = vmatprep.subr.bf16.mxu0 0
  %648 = vmatpush1.bf16.msra.mxu0 0
  %649 = vmatprep.subr.bf16.mxu0 0
  %650 = vmatpush1.bf16.msra.mxu0 0
  %651 = vmatprep.subr.bf16.mxu0 0
  %652 = vmatpush1.bf16.msra.mxu0 0
  %653 = vmatprep.subr.bf16.mxu0 0
  %654 = vmatpush1.bf16.msra.mxu0 0
  %655 = vmatprep.subr.bf16.mxu0 0
  %656 = vmatpush1.bf16.msra.mxu0 0
  %657 = vmatprep.subr.bf16.mxu0 0
  %658 = vmatpush1.bf16.msra.mxu0 0
  %659 = vmatprep.subr.bf16.mxu0 0
  %660 = vmatpush1.bf16.msra.mxu0 0
  %661 = vmatprep.subr.bf16.mxu0 0
  %662 = vmatpush1.bf16.msra.mxu0 0
  %663 = vmatprep.mubr.bf16.mxu0 0
  %664 = vmatmul.mubr.bf16.gmra.mrb[0].mxu0 %v564
  %v665 = vpop.f32.mrb[0].mxu0
  %v666 = vadd.f32 %v448, %v665
  %v667 = vpop.f32.mrb[0].mxu0
  %v668 = vadd.f32 %v450, %v667
  %v669 = vpop.f32.mrb[0].mxu0
  %v670 = vpop.f32.mrb[0].mxu0
  %671 = vdwg.mxu0
  %672 = vmatprep.subr.bf16.mxu0 %v582
  %673 = vmatpush1.bf16.msra.mxu0 %v579
  %674 = vmatprep.subr.bf16.mxu0 0
  %675 = vmatpush1.bf16.msra.mxu0 0
  %676 = vmatprep.subr.bf16.mxu0 0
  %677 = vmatpush1.bf16.msra.mxu0 0
  %678 = vmatprep.subr.bf16.mxu0 0
  %679 = vmatpush1.bf16.msra.mxu0 0
  %680 = vmatprep.subr.bf16.mxu0 0
  %681 = vmatpush1.bf16.msra.mxu0 0
  %682 = vmatprep.subr.bf16.mxu0 0
  %683 = vmatpush1.bf16.msra.mxu0 0
  %684 = vmatprep.subr.bf16.mxu0 0
  %685 = vmatpush1.bf16.msra.mxu0 0
  %686 = vmatprep.subr.bf16.mxu0 0
  %687 = vmatpush1.bf16.msra.mxu0 0
  %688 = vmatprep.subr.bf16.mxu0 0
  %689 = vmatpush1.bf16.msra.mxu0 0
  %690 = vmatprep.subr.bf16.mxu0 0
  %691 = vmatpush1.bf16.msra.mxu0 0
  %692 = vmatprep.subr.bf16.mxu0 0
  %693 = vmatpush1.bf16.msra.mxu0 0
  %694 = vmatprep.subr.bf16.mxu0 0
  %695 = vmatpush1.bf16.msra.mxu0 0
  %696 = vmatprep.subr.bf16.mxu0 0
  %697 = vmatpush1.bf16.msra.mxu0 0
  %698 = vmatprep.subr.bf16.mxu0 0
  %699 = vmatpush1.bf16.msra.mxu0 0
  %700 = vmatprep.subr.bf16.mxu0 0
  %701 = vmatpush1.bf16.msra.mxu0 0
  %702 = vmatprep.subr.bf16.mxu0 0
  %703 = vmatpush1.bf16.msra.mxu0 0
  %704 = vmatprep.mubr.bf16.mxu0 0
  %705 = vmatmul.mubr.bf16.gmra.mrb[0].mxu0 %v564
  %v706 = vpop.f32.mrb[0].mxu0
  %v707 = vadd.f32 %v489, %v706
  %v708 = vpop.f32.mrb[0].mxu0
  %v709 = vadd.f32 %v491, %v708
  %v710 = vpop.f32.mrb[0].mxu0
  %v711 = vpop.f32.mrb[0].mxu0
  %712 = vdwg.mxu0
  %713 = vmatprep.subr.bf16.mxu0 %v588
  %714 = vmatpush1.bf16.msra.mxu0 %v585
  %715 = vmatprep.subr.bf16.mxu0 0
  %716 = vmatpush1.bf16.msra.mxu0 0
  %717 = vmatprep.subr.bf16.mxu0 0
  %718 = vmatpush1.bf16.msra.mxu0 0
  %719 = vmatprep.subr.bf16.mxu0 0
  %720 = vmatpush1.bf16.msra.mxu0 0
  %721 = vmatprep.subr.bf16.mxu0 0
  %722 = vmatpush1.bf16.msra.mxu0 0
  %723 = vmatprep.subr.bf16.mxu0 0
  %724 = vmatpush1.bf16.msra.mxu0 0
  %725 = vmatprep.subr.bf16.mxu0 0
  %726 = vmatpush1.bf16.msra.mxu0 0
  %727 = vmatprep.subr.bf16.mxu0 0
  %728 = vmatpush1.bf16.msra.mxu0 0
  %729 = vmatprep.subr.bf16.mxu0 0
  %730 = vmatpush1.bf16.msra.mxu0 0
  %731 = vmatprep.subr.bf16.mxu0 0
  %732 = vmatpush1.bf16.msra.mxu0 0
  %733 = vmatprep.subr.bf16.mxu0 0
  %734 = vmatpush1.bf16.msra.mxu0 0
  %735 = vmatprep.subr.bf16.mxu0 0
  %736 = vmatpush1.bf16.msra.mxu0 0
  %737 = vmatprep.subr.bf16.mxu0 0
  %738 = vmatpush1.bf16.msra.mxu0 0
  %739 = vmatprep.subr.bf16.mxu0 0
  %740 = vmatpush1.bf16.msra.mxu0 0
  %741 = vmatprep.subr.bf16.mxu0 0
  %742 = vmatpush1.bf16.msra.mxu0 0
  %743 = vmatprep.subr.bf16.mxu0 0
  %744 = vmatpush1.bf16.msra.mxu0 0
  %745 = vmatprep.mubr.bf16.mxu0 0
  %746 = vmatmul.mubr.bf16.gmra.mrb[0].mxu0 %v564
  %v747 = vpop.f32.mrb[0].mxu0
  %v748 = vadd.f32 %v530, %v747
  %v749 = vpop.f32.mrb[0].mxu0
  %v750 = vadd.f32 %v532, %v749
  %v751 = vpop.f32.mrb[0].mxu0
  %v752 = vpop.f32.mrb[0].mxu0
  %753 = vdwg.mxu0
  %s754 = scalar_lea.vmem %s0, 4
  %v755 = vld [vmem:[%s754] sm:$0x3]
  %756 = vrot.lane.b32.xlu0 %v282, 17
  %v757 = vpop.permute.xlu0 %756
  %758 = vrot.lane.b32.xlu0 %v290, 17
  %v759 = vpop.permute.xlu0 %758
  %760 = vrot.lane.b32.xlu0 %v289, 17
  %v761 = vpop.permute.xlu0 %760
  %762 = vrot.lane.b32.xlu0 %v291, 17
  %v763 = vpop.permute.xlu0 %762
  %764 = vrot.lane.b32.xlu0 %v299, 17
  %v765 = vpop.permute.xlu0 %764
  %766 = vrot.lane.b32.xlu0 %v307, 17
  %v767 = vpop.permute.xlu0 %766
  %768 = vrot.lane.b32.xlu0 %v306, 17
  %v769 = vpop.permute.xlu0 %768
  %770 = vrot.lane.b32.xlu0 %v308, 17
  %v771 = vpop.permute.xlu0 %770
  %772 = vrot.lane.b32.xlu0 %v315, 17
  %v773 = vpop.permute.xlu0 %772
  %vm774 = vcmask 138240
  %v775 = vsel %vm774, %v757, %v759
  %v776 = vsel %vm774, %v759, %v761
  %v777 = vsel %vm774, %v761, %v763
  %v778 = vsel %vm774, %v763, %v765
  %v779 = vsel %vm774, %v765, %v767
  %v780 = vsel %vm774, %v767, %v769
  %v781 = vsel %vm774, %v769, %v771
  %v782 = vsel %vm774, %v771, %v773
  %v784 = vsel %vm343, %v755, 0
  %v787 = vsel %vm347, %v775, 0
  %v790 = vsel %vm347, %v776, 0
  %v793 = vsel %vm347, %v777, 0
  %v796 = vsel %vm347, %v778, 0
  %v799 = vsel %vm347, %v779, 0
  %v802 = vsel %vm347, %v780, 0
  %v805 = vsel %vm347, %v781, 0
  %v808 = vsel %vm347, %v782, 0
  %810 = vmatprep.subr.bf16.mxu0 %v790
  %811 = vmatpush1.bf16.msra.mxu0 %v787
  %812 = vmatprep.subr.bf16.mxu0 0
  %813 = vmatpush1.bf16.msra.mxu0 0
  %814 = vmatprep.subr.bf16.mxu0 0
  %815 = vmatpush1.bf16.msra.mxu0 0
  %816 = vmatprep.subr.bf16.mxu0 0
  %817 = vmatpush1.bf16.msra.mxu0 0
  %818 = vmatprep.subr.bf16.mxu0 0
  %819 = vmatpush1.bf16.msra.mxu0 0
  %820 = vmatprep.subr.bf16.mxu0 0
  %821 = vmatpush1.bf16.msra.mxu0 0
  %822 = vmatprep.subr.bf16.mxu0 0
  %823 = vmatpush1.bf16.msra.mxu0 0
  %824 = vmatprep.subr.bf16.mxu0 0
  %825 = vmatpush1.bf16.msra.mxu0 0
  %826 = vmatprep.subr.bf16.mxu0 0
  %827 = vmatpush1.bf16.msra.mxu0 0
  %828 = vmatprep.subr.bf16.mxu0 0
  %829 = vmatpush1.bf16.msra.mxu0 0
  %830 = vmatprep.subr.bf16.mxu0 0
  %831 = vmatpush1.bf16.msra.mxu0 0
  %832 = vmatprep.subr.bf16.mxu0 0
  %833 = vmatpush1.bf16.msra.mxu0 0
  %834 = vmatprep.subr.bf16.mxu0 0
  %835 = vmatpush1.bf16.msra.mxu0 0
  %836 = vmatprep.subr.bf16.mxu0 0
  %837 = vmatpush1.bf16.msra.mxu0 0
  %838 = vmatprep.subr.bf16.mxu0 0
  %839 = vmatpush1.bf16.msra.mxu0 0
  %840 = vmatprep.subr.bf16.mxu0 0
  %841 = vmatpush1.bf16.msra.mxu0 0
  %842 = vmatprep.mubr.bf16.mxu0 0
  %843 = vmatmul.mubr.bf16.gmra.mrb[0].mxu0 %v784
  %v844 = vpop.f32.mrb[0].mxu0
  %v845 = vadd.f32 0.0, %v844
  %v846 = vpop.f32.mrb[0].mxu0
  %v847 = vadd.f32 0.0, %v846
  %v848 = vpop.f32.mrb[0].mxu0
  %v849 = vpop.f32.mrb[0].mxu0
  %850 = vdwg.mxu0
  %851 = vmatprep.subr.bf16.mxu0 %v796
  %852 = vmatpush1.bf16.msra.mxu0 %v793
  %853 = vmatprep.subr.bf16.mxu0 0
  %854 = vmatpush1.bf16.msra.mxu0 0
  %855 = vmatprep.subr.bf16.mxu0 0
  %856 = vmatpush1.bf16.msra.mxu0 0
  %857 = vmatprep.subr.bf16.mxu0 0
  %858 = vmatpush1.bf16.msra.mxu0 0
  %859 = vmatprep.subr.bf16.mxu0 0
  %860 = vmatpush1.bf16.msra.mxu0 0
  %861 = vmatprep.subr.bf16.mxu0 0
  %862 = vmatpush1.bf16.msra.mxu0 0
  %863 = vmatprep.subr.bf16.mxu0 0
  %864 = vmatpush1.bf16.msra.mxu0 0
  %865 = vmatprep.subr.bf16.mxu0 0
  %866 = vmatpush1.bf16.msra.mxu0 0
  %867 = vmatprep.subr.bf16.mxu0 0
  %868 = vmatpush1.bf16.msra.mxu0 0
  %869 = vmatprep.subr.bf16.mxu0 0
  %870 = vmatpush1.bf16.msra.mxu0 0
  %871 = vmatprep.subr.bf16.mxu0 0
  %872 = vmatpush1.bf16.msra.mxu0 0
  %873 = vmatprep.subr.bf16.mxu0 0
  %874 = vmatpush1.bf16.msra.mxu0 0
  %875 = vmatprep.subr.bf16.mxu0 0
  %876 = vmatpush1.bf16.msra.mxu0 0
  %877 = vmatprep.subr.bf16.mxu0 0
  %878 = vmatpush1.bf16.msra.mxu0 0
  %879 = vmatprep.subr.bf16.mxu0 0
  %880 = vmatpush1.bf16.msra.mxu0 0
  %881 = vmatprep.subr.bf16.mxu0 0
  %882 = vmatpush1.bf16.msra.mxu0 0
  %883 = vmatprep.mubr.bf16.mxu0 0
  %884 = vmatmul.mubr.bf16.gmra.mrb[0].mxu0 %v784
  %v885 = vpop.f32.mrb[0].mxu0
  %v886 = vadd.f32 0.0, %v885
  %v887 = vpop.f32.mrb[0].mxu0
  %v888 = vadd.f32 0.0, %v887
  %v889 = vpop.f32.mrb[0].mxu0
  %v890 = vpop.f32.mrb[0].mxu0
  %891 = vdwg.mxu0
  %892 = vmatprep.subr.bf16.mxu0 %v802
  %893 = vmatpush1.bf16.msra.mxu0 %v799
  %894 = vmatprep.subr.bf16.mxu0 0
  %895 = vmatpush1.bf16.msra.mxu0 0
  %896 = vmatprep.subr.bf16.mxu0 0
  %897 = vmatpush1.bf16.msra.mxu0 0
  %898 = vmatprep.subr.bf16.mxu0 0
  %899 = vmatpush1.bf16.msra.mxu0 0
  %900 = vmatprep.subr.bf16.mxu0 0
  %901 = vmatpush1.bf16.msra.mxu0 0
  %902 = vmatprep.subr.bf16.mxu0 0
  %903 = vmatpush1.bf16.msra.mxu0 0
  %904 = vmatprep.subr.bf16.mxu0 0
  %905 = vmatpush1.bf16.msra.mxu0 0
  %906 = vmatprep.subr.bf16.mxu0 0
  %907 = vmatpush1.bf16.msra.mxu0 0
  %908 = vmatprep.subr.bf16.mxu0 0
  %909 = vmatpush1.bf16.msra.mxu0 0
  %910 = vmatprep.subr.bf16.mxu0 0
  %911 = vmatpush1.bf16.msra.mxu0 0
  %912 = vmatprep.subr.bf16.mxu0 0
  %913 = vmatpush1.bf16.msra.mxu0 0
  %914 = vmatprep.subr.bf16.mxu0 0
  %915 = vmatpush1.bf16.msra.mxu0 0
  %916 = vmatprep.subr.bf16.mxu0 0
  %917 = vmatpush1.bf16.msra.mxu0 0
  %918 = vmatprep.subr.bf16.mxu0 0
  %919 = vmatpush1.bf16.msra.mxu0 0
  %920 = vmatprep.subr.bf16.mxu0 0
  %921 = vmatpush1.bf16.msra.mxu0 0
  %922 = vmatprep.subr.bf16.mxu0 0
  %923 = vmatpush1.bf16.msra.mxu0 0
  %924 = vmatprep.mubr.bf16.mxu0 0
  %925 = vmatmul.mubr.bf16.gmra.mrb[0].mxu0 %v784
  %v926 = vpop.f32.mrb[0].mxu0
  %v927 = vadd.f32 0.0, %v926
  %v928 = vpop.f32.mrb[0].mxu0
  %v929 = vadd.f32 0.0, %v928
  %v930 = vpop.f32.mrb[0].mxu0
  %v931 = vpop.f32.mrb[0].mxu0
  %932 = vdwg.mxu0
  %933 = vmatprep.subr.bf16.mxu0 %v808
  %934 = vmatpush1.bf16.msra.mxu0 %v805
  %935 = vmatprep.subr.bf16.mxu0 0
  %936 = vmatpush1.bf16.msra.mxu0 0
  %937 = vmatprep.subr.bf16.mxu0 0
  %938 = vmatpush1.bf16.msra.mxu0 0
  %939 = vmatprep.subr.bf16.mxu0 0
  %940 = vmatpush1.bf16.msra.mxu0 0
  %941 = vmatprep.subr.bf16.mxu0 0
  %942 = vmatpush1.bf16.msra.mxu0 0
  %943 = vmatprep.subr.bf16.mxu0 0
  %944 = vmatpush1.bf16.msra.mxu0 0
  %945 = vmatprep.subr.bf16.mxu0 0
  %946 = vmatpush1.bf16.msra.mxu0 0
  %947 = vmatprep.subr.bf16.mxu0 0
  %948 = vmatpush1.bf16.msra.mxu0 0
  %949 = vmatprep.subr.bf16.mxu0 0
  %950 = vmatpush1.bf16.msra.mxu0 0
  %951 = vmatprep.subr.bf16.mxu0 0
  %952 = vmatpush1.bf16.msra.mxu0 0
  %953 = vmatprep.subr.bf16.mxu0 0
  %954 = vmatpush1.bf16.msra.mxu0 0
  %955 = vmatprep.subr.bf16.mxu0 0
  %956 = vmatpush1.bf16.msra.mxu0 0
  %957 = vmatprep.subr.bf16.mxu0 0
  %958 = vmatpush1.bf16.msra.mxu0 0
  %959 = vmatprep.subr.bf16.mxu0 0
  %960 = vmatpush1.bf16.msra.mxu0 0
  %961 = vmatprep.subr.bf16.mxu0 0
  %962 = vmatpush1.bf16.msra.mxu0 0
  %963 = vmatprep.subr.bf16.mxu0 0
  %964 = vmatpush1.bf16.msra.mxu0 0
  %965 = vmatprep.mubr.bf16.mxu0 0
  %966 = vmatmul.mubr.bf16.gmra.mrb[0].mxu0 %v784
  %v967 = vpop.f32.mrb[0].mxu0
  %v968 = vadd.f32 0.0, %v967
  %v969 = vpop.f32.mrb[0].mxu0
  %v970 = vadd.f32 0.0, %v969
  %v971 = vpop.f32.mrb[0].mxu0
  %v972 = vpop.f32.mrb[0].mxu0
  %973 = vdwg.mxu0
  %v974 = vadd.f32 %v625, %v845
  %v975 = vadd.f32 %v627, %v847
  %v976 = vadd.f32 %v666, %v886
  %v977 = vadd.f32 %v668, %v888
  %v978 = vadd.f32 %v707, %v927
  %v979 = vadd.f32 %v709, %v929
  %v980 = vadd.f32 %v748, %v968
  %v981 = vadd.f32 %v750, %v970
  %s982 = scalar_lea.vmem %s0, 6
  %v983 = vld [vmem:[%s982] sm:$0x3]
  %984 = vrot.lane.b32.xlu0 %v282, 1
  %v985 = vpop.permute.xlu0 %984
  %986 = vrot.lane.b32.xlu0 %v290, 1
  %v987 = vpop.permute.xlu0 %986
  %988 = vrot.lane.b32.xlu0 %v289, 1
  %v989 = vpop.permute.xlu0 %988
  %990 = vrot.lane.b32.xlu0 %v291, 1
  %v991 = vpop.permute.xlu0 %990
  %992 = vrot.lane.b32.xlu0 %v299, 1
  %v993 = vpop.permute.xlu0 %992
  %994 = vrot.lane.b32.xlu0 %v307, 1
  %v995 = vpop.permute.xlu0 %994
  %996 = vrot.lane.b32.xlu0 %v306, 1
  %v997 = vpop.permute.xlu0 %996
  %998 = vrot.lane.b32.xlu0 %v308, 1
  %v999 = vpop.permute.xlu0 %998
  %1000 = vrot.lane.b32.xlu0 %v315, 1
  %v1001 = vpop.permute.xlu0 %1000
  %vm1002 = vcmask 7168
  %v1003 = vsel %vm1002, %v985, %v987
  %v1004 = vsel %vm1002, %v987, %v989
  %v1005 = vsel %vm1002, %v989, %v991
  %v1006 = vsel %vm1002, %v991, %v993
  %v1007 = vsel %vm1002, %v993, %v995
  %v1008 = vsel %vm1002, %v995, %v997
  %v1009 = vsel %vm1002, %v997, %v999
  %v1010 = vsel %vm1002, %v999, %v1001
  %v1012 = vsel %vm343, %v983, 0
  %v1015 = vsel %vm347, %v1003, 0
  %v1018 = vsel %vm347, %v1004, 0
  %v1021 = vsel %vm347, %v1005, 0
  %v1024 = vsel %vm347, %v1006, 0
  %v1027 = vsel %vm347, %v1007, 0
  %v1030 = vsel %vm347, %v1008, 0
  %v1033 = vsel %vm347, %v1009, 0
  %v1036 = vsel %vm347, %v1010, 0
  %1038 = vmatprep.subr.bf16.mxu0 %v1018
  %1039 = vmatpush1.bf16.msra.mxu0 %v1015
  %1040 = vmatprep.subr.bf16.mxu0 0
  %1041 = vmatpush1.bf16.msra.mxu0 0
  %1042 = vmatprep.subr.bf16.mxu0 0
  %1043 = vmatpush1.bf16.msra.mxu0 0
  %1044 = vmatprep.subr.bf16.mxu0 0
  %1045 = vmatpush1.bf16.msra.mxu0 0
  %1046 = vmatprep.subr.bf16.mxu0 0
  %1047 = vmatpush1.bf16.msra.mxu0 0
  %1048 = vmatprep.subr.bf16.mxu0 0
  %1049 = vmatpush1.bf16.msra.mxu0 0
  %1050 = vmatprep.subr.bf16.mxu0 0
  %1051 = vmatpush1.bf16.msra.mxu0 0
  %1052 = vmatprep.subr.bf16.mxu0 0
  %1053 = vmatpush1.bf16.msra.mxu0 0
  %1054 = vmatprep.subr.bf16.mxu0 0
  %1055 = vmatpush1.bf16.msra.mxu0 0
  %1056 = vmatprep.subr.bf16.mxu0 0
  %1057 = vmatpush1.bf16.msra.mxu0 0
  %1058 = vmatprep.subr.bf16.mxu0 0
  %1059 = vmatpush1.bf16.msra.mxu0 0
  %1060 = vmatprep.subr.bf16.mxu0 0
  %1061 = vmatpush1.bf16.msra.mxu0 0
  %1062 = vmatprep.subr.bf16.mxu0 0
  %1063 = vmatpush1.bf16.msra.mxu0 0
  %1064 = vmatprep.subr.bf16.mxu0 0
  %1065 = vmatpush1.bf16.msra.mxu0 0
  %1066 = vmatprep.subr.bf16.mxu0 0
  %1067 = vmatpush1.bf16.msra.mxu0 0
  %1068 = vmatprep.subr.bf16.mxu0 0
  %1069 = vmatpush1.bf16.msra.mxu0 0
  %1070 = vmatprep.mubr.bf16.mxu0 0
  %1071 = vmatmul.mubr.bf16.gmra.mrb[0].mxu0 %v1012
  %v1072 = vpop.f32.mrb[0].mxu0
  %v1073 = vadd.f32 0.0, %v1072
  %v1074 = vpop.f32.mrb[0].mxu0
  %v1075 = vadd.f32 0.0, %v1074
  %v1076 = vpop.f32.mrb[0].mxu0
  %v1077 = vpop.f32.mrb[0].mxu0
  %1078 = vdwg.mxu0
  %1079 = vmatprep.subr.bf16.mxu0 %v1024
  %1080 = vmatpush1.bf16.msra.mxu0 %v1021
  %1081 = vmatprep.subr.bf16.mxu0 0
  %1082 = vmatpush1.bf16.msra.mxu0 0
  %1083 = vmatprep.subr.bf16.mxu0 0
  %1084 = vmatpush1.bf16.msra.mxu0 0
  %1085 = vmatprep.subr.bf16.mxu0 0
  %1086 = vmatpush1.bf16.msra.mxu0 0
  %1087 = vmatprep.subr.bf16.mxu0 0
  %1088 = vmatpush1.bf16.msra.mxu0 0
  %1089 = vmatprep.subr.bf16.mxu0 0
  %1090 = vmatpush1.bf16.msra.mxu0 0
  %1091 = vmatprep.subr.bf16.mxu0 0
  %1092 = vmatpush1.bf16.msra.mxu0 0
  %1093 = vmatprep.subr.bf16.mxu0 0
  %1094 = vmatpush1.bf16.msra.mxu0 0
  %1095 = vmatprep.subr.bf16.mxu0 0
  %1096 = vmatpush1.bf16.msra.mxu0 0
  %1097 = vmatprep.subr.bf16.mxu0 0
  %1098 = vmatpush1.bf16.msra.mxu0 0
  %1099 = vmatprep.subr.bf16.mxu0 0
  %1100 = vmatpush1.bf16.msra.mxu0 0
  %1101 = vmatprep.subr.bf16.mxu0 0
  %1102 = vmatpush1.bf16.msra.mxu0 0
  %1103 = vmatprep.subr.bf16.mxu0 0
  %1104 = vmatpush1.bf16.msra.mxu0 0
  %1105 = vmatprep.subr.bf16.mxu0 0
  %1106 = vmatpush1.bf16.msra.mxu0 0
  %1107 = vmatprep.subr.bf16.mxu0 0
  %1108 = vmatpush1.bf16.msra.mxu0 0
  %1109 = vmatprep.subr.bf16.mxu0 0
  %1110 = vmatpush1.bf16.msra.mxu0 0
  %1111 = vmatprep.mubr.bf16.mxu0 0
  %1112 = vmatmul.mubr.bf16.gmra.mrb[0].mxu0 %v1012
  %v1113 = vpop.f32.mrb[0].mxu0
  %v1114 = vadd.f32 0.0, %v1113
  %v1115 = vpop.f32.mrb[0].mxu0
  %v1116 = vadd.f32 0.0, %v1115
  %v1117 = vpop.f32.mrb[0].mxu0
  %v1118 = vpop.f32.mrb[0].mxu0
  %1119 = vdwg.mxu0
  %1120 = vmatprep.subr.bf16.mxu0 %v1030
  %1121 = vmatpush1.bf16.msra.mxu0 %v1027
  %1122 = vmatprep.subr.bf16.mxu0 0
  %1123 = vmatpush1.bf16.msra.mxu0 0
  %1124 = vmatprep.subr.bf16.mxu0 0
  %1125 = vmatpush1.bf16.msra.mxu0 0
  %1126 = vmatprep.subr.bf16.mxu0 0
  %1127 = vmatpush1.bf16.msra.mxu0 0
  %1128 = vmatprep.subr.bf16.mxu0 0
  %1129 = vmatpush1.bf16.msra.mxu0 0
  %1130 = vmatprep.subr.bf16.mxu0 0
  %1131 = vmatpush1.bf16.msra.mxu0 0
  %1132 = vmatprep.subr.bf16.mxu0 0
  %1133 = vmatpush1.bf16.msra.mxu0 0
  %1134 = vmatprep.subr.bf16.mxu0 0
  %1135 = vmatpush1.bf16.msra.mxu0 0
  %1136 = vmatprep.subr.bf16.mxu0 0
  %1137 = vmatpush1.bf16.msra.mxu0 0
  %1138 = vmatprep.subr.bf16.mxu0 0
  %1139 = vmatpush1.bf16.msra.mxu0 0
  %1140 = vmatprep.subr.bf16.mxu0 0
  %1141 = vmatpush1.bf16.msra.mxu0 0
  %1142 = vmatprep.subr.bf16.mxu0 0
  %1143 = vmatpush1.bf16.msra.mxu0 0
  %1144 = vmatprep.subr.bf16.mxu0 0
  %1145 = vmatpush1.bf16.msra.mxu0 0
  %1146 = vmatprep.subr.bf16.mxu0 0
  %1147 = vmatpush1.bf16.msra.mxu0 0
  %1148 = vmatprep.subr.bf16.mxu0 0
  %1149 = vmatpush1.bf16.msra.mxu0 0
  %1150 = vmatprep.subr.bf16.mxu0 0
  %1151 = vmatpush1.bf16.msra.mxu0 0
  %1152 = vmatprep.mubr.bf16.mxu0 0
  %1153 = vmatmul.mubr.bf16.gmra.mrb[0].mxu0 %v1012
  %v1154 = vpop.f32.mrb[0].mxu0
  %v1155 = vadd.f32 0.0, %v1154
  %v1156 = vpop.f32.mrb[0].mxu0
  %v1157 = vadd.f32 0.0, %v1156
  %v1158 = vpop.f32.mrb[0].mxu0
  %v1159 = vpop.f32.mrb[0].mxu0
  %1160 = vdwg.mxu0
  %1161 = vmatprep.subr.bf16.mxu0 %v1036
  %1162 = vmatpush1.bf16.msra.mxu0 %v1033
  %1163 = vmatprep.subr.bf16.mxu0 0
  %1164 = vmatpush1.bf16.msra.mxu0 0
  %1165 = vmatprep.subr.bf16.mxu0 0
  %1166 = vmatpush1.bf16.msra.mxu0 0
  %1167 = vmatprep.subr.bf16.mxu0 0
  %1168 = vmatpush1.bf16.msra.mxu0 0
  %1169 = vmatprep.subr.bf16.mxu0 0
  %1170 = vmatpush1.bf16.msra.mxu0 0
  %1171 = vmatprep.subr.bf16.mxu0 0
  %1172 = vmatpush1.bf16.msra.mxu0 0
  %1173 = vmatprep.subr.bf16.mxu0 0
  %1174 = vmatpush1.bf16.msra.mxu0 0
  %1175 = vmatprep.subr.bf16.mxu0 0
  %1176 = vmatpush1.bf16.msra.mxu0 0
  %1177 = vmatprep.subr.bf16.mxu0 0
  %1178 = vmatpush1.bf16.msra.mxu0 0
  %1179 = vmatprep.subr.bf16.mxu0 0
  %1180 = vmatpush1.bf16.msra.mxu0 0
  %1181 = vmatprep.subr.bf16.mxu0 0
  %1182 = vmatpush1.bf16.msra.mxu0 0
  %1183 = vmatprep.subr.bf16.mxu0 0
  %1184 = vmatpush1.bf16.msra.mxu0 0
  %1185 = vmatprep.subr.bf16.mxu0 0
  %1186 = vmatpush1.bf16.msra.mxu0 0
  %1187 = vmatprep.subr.bf16.mxu0 0
  %1188 = vmatpush1.bf16.msra.mxu0 0
  %1189 = vmatprep.subr.bf16.mxu0 0
  %1190 = vmatpush1.bf16.msra.mxu0 0
  %1191 = vmatprep.subr.bf16.mxu0 0
  %1192 = vmatpush1.bf16.msra.mxu0 0
  %1193 = vmatprep.mubr.bf16.mxu0 0
  %1194 = vmatmul.mubr.bf16.gmra.mrb[0].mxu0 %v1012
  %v1195 = vpop.f32.mrb[0].mxu0
  %v1196 = vadd.f32 0.0, %v1195
  %v1197 = vpop.f32.mrb[0].mxu0
  %v1198 = vadd.f32 0.0, %v1197
  %v1199 = vpop.f32.mrb[0].mxu0
  %v1200 = vpop.f32.mrb[0].mxu0
  %1201 = vdwg.mxu0
  %v1202 = vadd.f32 %v974, %v1073
  %v1203 = vadd.f32 %v975, %v1075
  %v1204 = vadd.f32 %v976, %v1114
  %v1205 = vadd.f32 %v977, %v1116
  %v1206 = vadd.f32 %v978, %v1155
  %v1207 = vadd.f32 %v979, %v1157
  %v1208 = vadd.f32 %v980, %v1196
  %v1209 = vadd.f32 %v981, %v1198
  %s1210 = scalar_lea.vmem %s0, 8
  %v1211 = vld [vmem:[%s1210] sm:$0x3]
  %v1213 = vsel %vm343, %v1211, 0
  %v1216 = vsel %vm347, %v290, 0
  %v1219 = vsel %vm347, %v289, 0
  %v1222 = vsel %vm347, %v291, 0
  %v1225 = vsel %vm347, %v299, 0
  %v1228 = vsel %vm347, %v307, 0
  %v1231 = vsel %vm347, %v306, 0
  %v1234 = vsel %vm347, %v308, 0
  %v1237 = vsel %vm347, %v315, 0
  %1239 = vmatprep.subr.bf16.mxu0 %v1219
  %1240 = vmatpush1.bf16.msra.mxu0 %v1216
  %1241 = vmatprep.subr.bf16.mxu0 0
  %1242 = vmatpush1.bf16.msra.mxu0 0
  %1243 = vmatprep.subr.bf16.mxu0 0
  %1244 = vmatpush1.bf16.msra.mxu0 0
  %1245 = vmatprep.subr.bf16.mxu0 0
  %1246 = vmatpush1.bf16.msra.mxu0 0
  %1247 = vmatprep.subr.bf16.mxu0 0
  %1248 = vmatpush1.bf16.msra.mxu0 0
  %1249 = vmatprep.subr.bf16.mxu0 0
  %1250 = vmatpush1.bf16.msra.mxu0 0
  %1251 = vmatprep.subr.bf16.mxu0 0
  %1252 = vmatpush1.bf16.msra.mxu0 0
  %1253 = vmatprep.subr.bf16.mxu0 0
  %1254 = vmatpush1.bf16.msra.mxu0 0
  %1255 = vmatprep.subr.bf16.mxu0 0
  %1256 = vmatpush1.bf16.msra.mxu0 0
  %1257 = vmatprep.subr.bf16.mxu0 0
  %1258 = vmatpush1.bf16.msra.mxu0 0
  %1259 = vmatprep.subr.bf16.mxu0 0
  %1260 = vmatpush1.bf16.msra.mxu0 0
  %1261 = vmatprep.subr.bf16.mxu0 0
  %1262 = vmatpush1.bf16.msra.mxu0 0
  %1263 = vmatprep.subr.bf16.mxu0 0
  %1264 = vmatpush1.bf16.msra.mxu0 0
  %1265 = vmatprep.subr.bf16.mxu0 0
  %1266 = vmatpush1.bf16.msra.mxu0 0
  %1267 = vmatprep.subr.bf16.mxu0 0
  %1268 = vmatpush1.bf16.msra.mxu0 0
  %1269 = vmatprep.subr.bf16.mxu0 0
  %1270 = vmatpush1.bf16.msra.mxu0 0
  %1271 = vmatprep.mubr.bf16.mxu0 0
  %1272 = vmatmul.mubr.bf16.gmra.mrb[0].mxu0 %v1213
  %v1273 = vpop.f32.mrb[0].mxu0
  %v1274 = vadd.f32 0.0, %v1273
  %v1275 = vpop.f32.mrb[0].mxu0
  %v1276 = vadd.f32 0.0, %v1275
  %v1277 = vpop.f32.mrb[0].mxu0
  %v1278 = vpop.f32.mrb[0].mxu0
  %1279 = vdwg.mxu0
  %1280 = vmatprep.subr.bf16.mxu0 %v1225
  %1281 = vmatpush1.bf16.msra.mxu0 %v1222
  %1282 = vmatprep.subr.bf16.mxu0 0
  %1283 = vmatpush1.bf16.msra.mxu0 0
  %1284 = vmatprep.subr.bf16.mxu0 0
  %1285 = vmatpush1.bf16.msra.mxu0 0
  %1286 = vmatprep.subr.bf16.mxu0 0
  %1287 = vmatpush1.bf16.msra.mxu0 0
  %1288 = vmatprep.subr.bf16.mxu0 0
  %1289 = vmatpush1.bf16.msra.mxu0 0
  %1290 = vmatprep.subr.bf16.mxu0 0
  %1291 = vmatpush1.bf16.msra.mxu0 0
  %1292 = vmatprep.subr.bf16.mxu0 0
  %1293 = vmatpush1.bf16.msra.mxu0 0
  %1294 = vmatprep.subr.bf16.mxu0 0
  %1295 = vmatpush1.bf16.msra.mxu0 0
  %1296 = vmatprep.subr.bf16.mxu0 0
  %1297 = vmatpush1.bf16.msra.mxu0 0
  %1298 = vmatprep.subr.bf16.mxu0 0
  %1299 = vmatpush1.bf16.msra.mxu0 0
  %1300 = vmatprep.subr.bf16.mxu0 0
  %1301 = vmatpush1.bf16.msra.mxu0 0
  %1302 = vmatprep.subr.bf16.mxu0 0
  %1303 = vmatpush1.bf16.msra.mxu0 0
  %1304 = vmatprep.subr.bf16.mxu0 0
  %1305 = vmatpush1.bf16.msra.mxu0 0
  %1306 = vmatprep.subr.bf16.mxu0 0
  %1307 = vmatpush1.bf16.msra.mxu0 0
  %1308 = vmatprep.subr.bf16.mxu0 0
  %1309 = vmatpush1.bf16.msra.mxu0 0
  %1310 = vmatprep.subr.bf16.mxu0 0
  %1311 = vmatpush1.bf16.msra.mxu0 0
  %1312 = vmatprep.mubr.bf16.mxu0 0
  %1313 = vmatmul.mubr.bf16.gmra.mrb[0].mxu0 %v1213
  %v1314 = vpop.f32.mrb[0].mxu0
  %v1315 = vadd.f32 0.0, %v1314
  %v1316 = vpop.f32.mrb[0].mxu0
  %v1317 = vadd.f32 0.0, %v1316
  %v1318 = vpop.f32.mrb[0].mxu0
  %v1319 = vpop.f32.mrb[0].mxu0
  %1320 = vdwg.mxu0
  %1321 = vmatprep.subr.bf16.mxu0 %v1231
  %1322 = vmatpush1.bf16.msra.mxu0 %v1228
  %1323 = vmatprep.subr.bf16.mxu0 0
  %1324 = vmatpush1.bf16.msra.mxu0 0
  %1325 = vmatprep.subr.bf16.mxu0 0
  %1326 = vmatpush1.bf16.msra.mxu0 0
  %1327 = vmatprep.subr.bf16.mxu0 0
  %1328 = vmatpush1.bf16.msra.mxu0 0
  %1329 = vmatprep.subr.bf16.mxu0 0
  %1330 = vmatpush1.bf16.msra.mxu0 0
  %1331 = vmatprep.subr.bf16.mxu0 0
  %1332 = vmatpush1.bf16.msra.mxu0 0
  %1333 = vmatprep.subr.bf16.mxu0 0
  %1334 = vmatpush1.bf16.msra.mxu0 0
  %1335 = vmatprep.subr.bf16.mxu0 0
  %1336 = vmatpush1.bf16.msra.mxu0 0
  %1337 = vmatprep.subr.bf16.mxu0 0
  %1338 = vmatpush1.bf16.msra.mxu0 0
  %1339 = vmatprep.subr.bf16.mxu0 0
  %1340 = vmatpush1.bf16.msra.mxu0 0
  %1341 = vmatprep.subr.bf16.mxu0 0
  %1342 = vmatpush1.bf16.msra.mxu0 0
  %1343 = vmatprep.subr.bf16.mxu0 0
  %1344 = vmatpush1.bf16.msra.mxu0 0
  %1345 = vmatprep.subr.bf16.mxu0 0
  %1346 = vmatpush1.bf16.msra.mxu0 0
  %1347 = vmatprep.subr.bf16.mxu0 0
  %1348 = vmatpush1.bf16.msra.mxu0 0
  %1349 = vmatprep.subr.bf16.mxu0 0
  %1350 = vmatpush1.bf16.msra.mxu0 0
  %1351 = vmatprep.subr.bf16.mxu0 0
  %1352 = vmatpush1.bf16.msra.mxu0 0
  %1353 = vmatprep.mubr.bf16.mxu0 0
  %1354 = vmatmul.mubr.bf16.gmra.mrb[0].mxu0 %v1213
  %v1355 = vpop.f32.mrb[0].mxu0
  %v1356 = vadd.f32 0.0, %v1355
  %v1357 = vpop.f32.mrb[0].mxu0
  %v1358 = vadd.f32 0.0, %v1357
  %v1359 = vpop.f32.mrb[0].mxu0
  %v1360 = vpop.f32.mrb[0].mxu0
  %1361 = vdwg.mxu0
  %1362 = vmatprep.subr.bf16.mxu0 %v1237
  %1363 = vmatpush1.bf16.msra.mxu0 %v1234
  %1364 = vmatprep.subr.bf16.mxu0 0
  %1365 = vmatpush1.bf16.msra.mxu0 0
  %1366 = vmatprep.subr.bf16.mxu0 0
  %1367 = vmatpush1.bf16.msra.mxu0 0
  %1368 = vmatprep.subr.bf16.mxu0 0
  %1369 = vmatpush1.bf16.msra.mxu0 0
  %1370 = vmatprep.subr.bf16.mxu0 0
  %1371 = vmatpush1.bf16.msra.mxu0 0
  %1372 = vmatprep.subr.bf16.mxu0 0
  %1373 = vmatpush1.bf16.msra.mxu0 0
  %1374 = vmatprep.subr.bf16.mxu0 0
  %1375 = vmatpush1.bf16.msra.mxu0 0
  %1376 = vmatprep.subr.bf16.mxu0 0
  %1377 = vmatpush1.bf16.msra.mxu0 0
  %1378 = vmatprep.subr.bf16.mxu0 0
  %1379 = vmatpush1.bf16.msra.mxu0 0
  %1380 = vmatprep.subr.bf16.mxu0 0
  %1381 = vmatpush1.bf16.msra.mxu0 0
  %1382 = vmatprep.subr.bf16.mxu0 0
  %1383 = vmatpush1.bf16.msra.mxu0 0
  %1384 = vmatprep.subr.bf16.mxu0 0
  %1385 = vmatpush1.bf16.msra.mxu0 0
  %1386 = vmatprep.subr.bf16.mxu0 0
  %1387 = vmatpush1.bf16.msra.mxu0 0
  %1388 = vmatprep.subr.bf16.mxu0 0
  %1389 = vmatpush1.bf16.msra.mxu0 0
  %1390 = vmatprep.subr.bf16.mxu0 0
  %1391 = vmatpush1.bf16.msra.mxu0 0
  %1392 = vmatprep.subr.bf16.mxu0 0
  %1393 = vmatpush1.bf16.msra.mxu0 0
  %1394 = vmatprep.mubr.bf16.mxu0 0
  %1395 = vmatmul.mubr.bf16.gmra.mrb[0].mxu0 %v1213
  %v1396 = vpop.f32.mrb[0].mxu0
  %v1397 = vadd.f32 0.0, %v1396
  %v1398 = vpop.f32.mrb[0].mxu0
  %v1399 = vadd.f32 0.0, %v1398
  %v1400 = vpop.f32.mrb[0].mxu0
  %v1401 = vpop.f32.mrb[0].mxu0
  %1402 = vdwg.mxu0
  %v1403 = vadd.f32 %v1202, %v1274
  %v1404 = vadd.f32 %v1203, %v1276
  %v1405 = vadd.f32 %v1204, %v1315
  %v1406 = vadd.f32 %v1205, %v1317
  %v1407 = vadd.f32 %v1206, %v1356
  %v1408 = vadd.f32 %v1207, %v1358
  %v1409 = vadd.f32 %v1208, %v1397
  %v1410 = vadd.f32 %v1209, %v1399
  %s1411 = scalar_lea.vmem %s0, 10
  %v1412 = vld [vmem:[%s1411] sm:$0x3]
  %v1413 = vcombine.high %v315, %v315
  %1414 = vrot.lane.b32.xlu0 %v290, 127
  %v1415 = vpop.permute.xlu0 %1414
  %1416 = vrot.lane.b32.xlu0 %v289, 127
  %v1417 = vpop.permute.xlu0 %1416
  %1418 = vrot.lane.b32.xlu0 %v291, 127
  %v1419 = vpop.permute.xlu0 %1418
  %1420 = vrot.lane.b32.xlu0 %v299, 127
  %v1421 = vpop.permute.xlu0 %1420
  %1422 = vrot.lane.b32.xlu0 %v307, 127
  %v1423 = vpop.permute.xlu0 %1422
  %1424 = vrot.lane.b32.xlu0 %v306, 127
  %v1425 = vpop.permute.xlu0 %1424
  %1426 = vrot.lane.b32.xlu0 %v308, 127
  %v1427 = vpop.permute.xlu0 %1426
  %1428 = vrot.lane.b32.xlu0 %v315, 127
  %v1429 = vpop.permute.xlu0 %1428
  %1430 = vrot.lane.b32.xlu0 %v1413, 127
  %v1431 = vpop.permute.xlu0 %1430
  %vm1432 = vcmask 1039360
  %v1433 = vsel %vm1432, %v1415, %v1417
  %v1434 = vsel %vm1432, %v1417, %v1419
  %v1435 = vsel %vm1432, %v1419, %v1421
  %v1436 = vsel %vm1432, %v1421, %v1423
  %v1437 = vsel %vm1432, %v1423, %v1425
  %v1438 = vsel %vm1432, %v1425, %v1427
  %v1439 = vsel %vm1432, %v1427, %v1429
  %v1440 = vsel %vm1432, %v1429, %v1431
  %v1442 = vsel %vm343, %v1412, 0
  %v1445 = vsel %vm347, %v1433, 0
  %v1448 = vsel %vm347, %v1434, 0
  %v1451 = vsel %vm347, %v1435, 0
  %v1454 = vsel %vm347, %v1436, 0
  %v1457 = vsel %vm347, %v1437, 0
  %v1460 = vsel %vm347, %v1438, 0
  %v1463 = vsel %vm347, %v1439, 0
  %v1466 = vsel %vm347, %v1440, 0
  %1468 = vmatprep.subr.bf16.mxu0 %v1448
  %1469 = vmatpush1.bf16.msra.mxu0 %v1445
  %1470 = vmatprep.subr.bf16.mxu0 0
  %1471 = vmatpush1.bf16.msra.mxu0 0
  %1472 = vmatprep.subr.bf16.mxu0 0
  %1473 = vmatpush1.bf16.msra.mxu0 0
  %1474 = vmatprep.subr.bf16.mxu0 0
  %1475 = vmatpush1.bf16.msra.mxu0 0
  %1476 = vmatprep.subr.bf16.mxu0 0
  %1477 = vmatpush1.bf16.msra.mxu0 0
  %1478 = vmatprep.subr.bf16.mxu0 0
  %1479 = vmatpush1.bf16.msra.mxu0 0
  %1480 = vmatprep.subr.bf16.mxu0 0
  %1481 = vmatpush1.bf16.msra.mxu0 0
  %1482 = vmatprep.subr.bf16.mxu0 0
  %1483 = vmatpush1.bf16.msra.mxu0 0
  %1484 = vmatprep.subr.bf16.mxu0 0
  %1485 = vmatpush1.bf16.msra.mxu0 0
  %1486 = vmatprep.subr.bf16.mxu0 0
  %1487 = vmatpush1.bf16.msra.mxu0 0
  %1488 = vmatprep.subr.bf16.mxu0 0
  %1489 = vmatpush1.bf16.msra.mxu0 0
  %1490 = vmatprep.subr.bf16.mxu0 0
  %1491 = vmatpush1.bf16.msra.mxu0 0
  %1492 = vmatprep.subr.bf16.mxu0 0
  %1493 = vmatpush1.bf16.msra.mxu0 0
  %1494 = vmatprep.subr.bf16.mxu0 0
  %1495 = vmatpush1.bf16.msra.mxu0 0
  %1496 = vmatprep.subr.bf16.mxu0 0
  %1497 = vmatpush1.bf16.msra.mxu0 0
  %1498 = vmatprep.subr.bf16.mxu0 0
  %1499 = vmatpush1.bf16.msra.mxu0 0
  %1500 = vmatprep.mubr.bf16.mxu0 0
  %1501 = vmatmul.mubr.bf16.gmra.mrb[0].mxu0 %v1442
  %v1502 = vpop.f32.mrb[0].mxu0
  %v1503 = vadd.f32 0.0, %v1502
  %v1504 = vpop.f32.mrb[0].mxu0
  %v1505 = vadd.f32 0.0, %v1504
  %v1506 = vpop.f32.mrb[0].mxu0
  %v1507 = vpop.f32.mrb[0].mxu0
  %1508 = vdwg.mxu0
  %1509 = vmatprep.subr.bf16.mxu0 %v1454
  %1510 = vmatpush1.bf16.msra.mxu0 %v1451
  %1511 = vmatprep.subr.bf16.mxu0 0
  %1512 = vmatpush1.bf16.msra.mxu0 0
  %1513 = vmatprep.subr.bf16.mxu0 0
  %1514 = vmatpush1.bf16.msra.mxu0 0
  %1515 = vmatprep.subr.bf16.mxu0 0
  %1516 = vmatpush1.bf16.msra.mxu0 0
  %1517 = vmatprep.subr.bf16.mxu0 0
  %1518 = vmatpush1.bf16.msra.mxu0 0
  %1519 = vmatprep.subr.bf16.mxu0 0
  %1520 = vmatpush1.bf16.msra.mxu0 0
  %1521 = vmatprep.subr.bf16.mxu0 0
  %1522 = vmatpush1.bf16.msra.mxu0 0
  %1523 = vmatprep.subr.bf16.mxu0 0
  %1524 = vmatpush1.bf16.msra.mxu0 0
  %1525 = vmatprep.subr.bf16.mxu0 0
  %1526 = vmatpush1.bf16.msra.mxu0 0
  %1527 = vmatprep.subr.bf16.mxu0 0
  %1528 = vmatpush1.bf16.msra.mxu0 0
  %1529 = vmatprep.subr.bf16.mxu0 0
  %1530 = vmatpush1.bf16.msra.mxu0 0
  %1531 = vmatprep.subr.bf16.mxu0 0
  %1532 = vmatpush1.bf16.msra.mxu0 0
  %1533 = vmatprep.subr.bf16.mxu0 0
  %1534 = vmatpush1.bf16.msra.mxu0 0
  %1535 = vmatprep.subr.bf16.mxu0 0
  %1536 = vmatpush1.bf16.msra.mxu0 0
  %1537 = vmatprep.subr.bf16.mxu0 0
  %1538 = vmatpush1.bf16.msra.mxu0 0
  %1539 = vmatprep.subr.bf16.mxu0 0
  %1540 = vmatpush1.bf16.msra.mxu0 0
  %1541 = vmatprep.mubr.bf16.mxu0 0
  %1542 = vmatmul.mubr.bf16.gmra.mrb[0].mxu0 %v1442
  %v1543 = vpop.f32.mrb[0].mxu0
  %v1544 = vadd.f32 0.0, %v1543
  %v1545 = vpop.f32.mrb[0].mxu0
  %v1546 = vadd.f32 0.0, %v1545
  %v1547 = vpop.f32.mrb[0].mxu0
  %v1548 = vpop.f32.mrb[0].mxu0
  %1549 = vdwg.mxu0
  %1550 = vmatprep.subr.bf16.mxu0 %v1460
  %1551 = vmatpush1.bf16.msra.mxu0 %v1457
  %1552 = vmatprep.subr.bf16.mxu0 0
  %1553 = vmatpush1.bf16.msra.mxu0 0
  %1554 = vmatprep.subr.bf16.mxu0 0
  %1555 = vmatpush1.bf16.msra.mxu0 0
  %1556 = vmatprep.subr.bf16.mxu0 0
  %1557 = vmatpush1.bf16.msra.mxu0 0
  %1558 = vmatprep.subr.bf16.mxu0 0
  %1559 = vmatpush1.bf16.msra.mxu0 0
  %1560 = vmatprep.subr.bf16.mxu0 0
  %1561 = vmatpush1.bf16.msra.mxu0 0
  %1562 = vmatprep.subr.bf16.mxu0 0
  %1563 = vmatpush1.bf16.msra.mxu0 0
  %1564 = vmatprep.subr.bf16.mxu0 0
  %1565 = vmatpush1.bf16.msra.mxu0 0
  %1566 = vmatprep.subr.bf16.mxu0 0
  %1567 = vmatpush1.bf16.msra.mxu0 0
  %1568 = vmatprep.subr.bf16.mxu0 0
  %1569 = vmatpush1.bf16.msra.mxu0 0
  %1570 = vmatprep.subr.bf16.mxu0 0
  %1571 = vmatpush1.bf16.msra.mxu0 0
  %1572 = vmatprep.subr.bf16.mxu0 0
  %1573 = vmatpush1.bf16.msra.mxu0 0
  %1574 = vmatprep.subr.bf16.mxu0 0
  %1575 = vmatpush1.bf16.msra.mxu0 0
  %1576 = vmatprep.subr.bf16.mxu0 0
  %1577 = vmatpush1.bf16.msra.mxu0 0
  %1578 = vmatprep.subr.bf16.mxu0 0
  %1579 = vmatpush1.bf16.msra.mxu0 0
  %1580 = vmatprep.subr.bf16.mxu0 0
  %1581 = vmatpush1.bf16.msra.mxu0 0
  %1582 = vmatprep.mubr.bf16.mxu0 0
  %1583 = vmatmul.mubr.bf16.gmra.mrb[0].mxu0 %v1442
  %v1584 = vpop.f32.mrb[0].mxu0
  %v1585 = vadd.f32 0.0, %v1584
  %v1586 = vpop.f32.mrb[0].mxu0
  %v1587 = vadd.f32 0.0, %v1586
  %v1588 = vpop.f32.mrb[0].mxu0
  %v1589 = vpop.f32.mrb[0].mxu0
  %1590 = vdwg.mxu0
  %1591 = vmatprep.subr.bf16.mxu0 %v1466
  %1592 = vmatpush1.bf16.msra.mxu0 %v1463
  %1593 = vmatprep.subr.bf16.mxu0 0
  %1594 = vmatpush1.bf16.msra.mxu0 0
  %1595 = vmatprep.subr.bf16.mxu0 0
  %1596 = vmatpush1.bf16.msra.mxu0 0
  %1597 = vmatprep.subr.bf16.mxu0 0
  %1598 = vmatpush1.bf16.msra.mxu0 0
  %1599 = vmatprep.subr.bf16.mxu0 0
  %1600 = vmatpush1.bf16.msra.mxu0 0
  %1601 = vmatprep.subr.bf16.mxu0 0
  %1602 = vmatpush1.bf16.msra.mxu0 0
  %1603 = vmatprep.subr.bf16.mxu0 0
  %1604 = vmatpush1.bf16.msra.mxu0 0
  %1605 = vmatprep.subr.bf16.mxu0 0
  %1606 = vmatpush1.bf16.msra.mxu0 0
  %1607 = vmatprep.subr.bf16.mxu0 0
  %1608 = vmatpush1.bf16.msra.mxu0 0
  %1609 = vmatprep.subr.bf16.mxu0 0
  %1610 = vmatpush1.bf16.msra.mxu0 0
  %1611 = vmatprep.subr.bf16.mxu0 0
  %1612 = vmatpush1.bf16.msra.mxu0 0
  %1613 = vmatprep.subr.bf16.mxu0 0
  %1614 = vmatpush1.bf16.msra.mxu0 0
  %1615 = vmatprep.subr.bf16.mxu0 0
  %1616 = vmatpush1.bf16.msra.mxu0 0
  %1617 = vmatprep.subr.bf16.mxu0 0
  %1618 = vmatpush1.bf16.msra.mxu0 0
  %1619 = vmatprep.subr.bf16.mxu0 0
  %1620 = vmatpush1.bf16.msra.mxu0 0
  %1621 = vmatprep.subr.bf16.mxu0 0
  %1622 = vmatpush1.bf16.msra.mxu0 0
  %1623 = vmatprep.mubr.bf16.mxu0 0
  %1624 = vmatmul.mubr.bf16.gmra.mrb[0].mxu0 %v1442
  %v1625 = vpop.f32.mrb[0].mxu0
  %v1626 = vadd.f32 0.0, %v1625
  %v1627 = vpop.f32.mrb[0].mxu0
  %v1628 = vadd.f32 0.0, %v1627
  %v1629 = vpop.f32.mrb[0].mxu0
  %v1630 = vpop.f32.mrb[0].mxu0
  %1631 = vdwg.mxu0
  %v1632 = vadd.f32 %v1403, %v1503
  %v1633 = vadd.f32 %v1404, %v1505
  %v1634 = vadd.f32 %v1405, %v1544
  %v1635 = vadd.f32 %v1406, %v1546
  %v1636 = vadd.f32 %v1407, %v1585
  %v1637 = vadd.f32 %v1408, %v1587
  %v1638 = vadd.f32 %v1409, %v1626
  %v1639 = vadd.f32 %v1410, %v1628
  %s1640 = scalar_lea.vmem %s0, 12
  %v1641 = vld [vmem:[%s1640] sm:$0x3]
  %1642 = vrot.lane.b32.xlu0 %v290, 111
  %v1643 = vpop.permute.xlu0 %1642
  %1644 = vrot.lane.b32.xlu0 %v289, 111
  %v1645 = vpop.permute.xlu0 %1644
  %1646 = vrot.lane.b32.xlu0 %v291, 111
  %v1647 = vpop.permute.xlu0 %1646
  %1648 = vrot.lane.b32.xlu0 %v299, 111
  %v1649 = vpop.permute.xlu0 %1648
  %1650 = vrot.lane.b32.xlu0 %v307, 111
  %v1651 = vpop.permute.xlu0 %1650
  %1652 = vrot.lane.b32.xlu0 %v306, 111
  %v1653 = vpop.permute.xlu0 %1652
  %1654 = vrot.lane.b32.xlu0 %v308, 111
  %v1655 = vpop.permute.xlu0 %1654
  %1656 = vrot.lane.b32.xlu0 %v315, 111
  %v1657 = vpop.permute.xlu0 %1656
  %1658 = vrot.lane.b32.xlu0 %v1413, 111
  %v1659 = vpop.permute.xlu0 %1658
  %vm1660 = vcmask 908288
  %v1661 = vsel %vm1660, %v1643, %v1645
  %v1662 = vsel %vm1660, %v1645, %v1647
  %v1663 = vsel %vm1660, %v1647, %v1649
  %v1664 = vsel %vm1660, %v1649, %v1651
  %v1665 = vsel %vm1660, %v1651, %v1653
  %v1666 = vsel %vm1660, %v1653, %v1655
  %v1667 = vsel %vm1660, %v1655, %v1657
  %v1668 = vsel %vm1660, %v1657, %v1659
  %v1670 = vsel %vm343, %v1641, 0
  %v1673 = vsel %vm347, %v1661, 0
  %v1676 = vsel %vm347, %v1662, 0
  %v1679 = vsel %vm347, %v1663, 0
  %v1682 = vsel %vm347, %v1664, 0
  %v1685 = vsel %vm347, %v1665, 0
  %v1688 = vsel %vm347, %v1666, 0
  %v1691 = vsel %vm347, %v1667, 0
  %v1694 = vsel %vm347, %v1668, 0
  %1696 = vmatprep.subr.bf16.mxu0 %v1676
  %1697 = vmatpush1.bf16.msra.mxu0 %v1673
  %1698 = vmatprep.subr.bf16.mxu0 0
  %1699 = vmatpush1.bf16.msra.mxu0 0
  %1700 = vmatprep.subr.bf16.mxu0 0
  %1701 = vmatpush1.bf16.msra.mxu0 0
  %1702 = vmatprep.subr.bf16.mxu0 0
  %1703 = vmatpush1.bf16.msra.mxu0 0
  %1704 = vmatprep.subr.bf16.mxu0 0
  %1705 = vmatpush1.bf16.msra.mxu0 0
  %1706 = vmatprep.subr.bf16.mxu0 0
  %1707 = vmatpush1.bf16.msra.mxu0 0
  %1708 = vmatprep.subr.bf16.mxu0 0
  %1709 = vmatpush1.bf16.msra.mxu0 0
  %1710 = vmatprep.subr.bf16.mxu0 0
  %1711 = vmatpush1.bf16.msra.mxu0 0
  %1712 = vmatprep.subr.bf16.mxu0 0
  %1713 = vmatpush1.bf16.msra.mxu0 0
  %1714 = vmatprep.subr.bf16.mxu0 0
  %1715 = vmatpush1.bf16.msra.mxu0 0
  %1716 = vmatprep.subr.bf16.mxu0 0
  %1717 = vmatpush1.bf16.msra.mxu0 0
  %1718 = vmatprep.subr.bf16.mxu0 0
  %1719 = vmatpush1.bf16.msra.mxu0 0
  %1720 = vmatprep.subr.bf16.mxu0 0
  %1721 = vmatpush1.bf16.msra.mxu0 0
  %1722 = vmatprep.subr.bf16.mxu0 0
  %1723 = vmatpush1.bf16.msra.mxu0 0
  %1724 = vmatprep.subr.bf16.mxu0 0
  %1725 = vmatpush1.bf16.msra.mxu0 0
  %1726 = vmatprep.subr.bf16.mxu0 0
  %1727 = vmatpush1.bf16.msra.mxu0 0
  %1728 = vmatprep.mubr.bf16.mxu0 0
  %1729 = vmatmul.mubr.bf16.gmra.mrb[0].mxu0 %v1670
  %v1730 = vpop.f32.mrb[0].mxu0
  %v1731 = vadd.f32 0.0, %v1730
  %v1732 = vpop.f32.mrb[0].mxu0
  %v1733 = vadd.f32 0.0, %v1732
  %v1734 = vpop.f32.mrb[0].mxu0
  %v1735 = vpop.f32.mrb[0].mxu0
  %1736 = vdwg.mxu0
  %1737 = vmatprep.subr.bf16.mxu0 %v1682
  %1738 = vmatpush1.bf16.msra.mxu0 %v1679
  %1739 = vmatprep.subr.bf16.mxu0 0
  %1740 = vmatpush1.bf16.msra.mxu0 0
  %1741 = vmatprep.subr.bf16.mxu0 0
  %1742 = vmatpush1.bf16.msra.mxu0 0
  %1743 = vmatprep.subr.bf16.mxu0 0
  %1744 = vmatpush1.bf16.msra.mxu0 0
  %1745 = vmatprep.subr.bf16.mxu0 0
  %1746 = vmatpush1.bf16.msra.mxu0 0
  %1747 = vmatprep.subr.bf16.mxu0 0
  %1748 = vmatpush1.bf16.msra.mxu0 0
  %1749 = vmatprep.subr.bf16.mxu0 0
  %1750 = vmatpush1.bf16.msra.mxu0 0
  %1751 = vmatprep.subr.bf16.mxu0 0
  %1752 = vmatpush1.bf16.msra.mxu0 0
  %1753 = vmatprep.subr.bf16.mxu0 0
  %1754 = vmatpush1.bf16.msra.mxu0 0
  %1755 = vmatprep.subr.bf16.mxu0 0
  %1756 = vmatpush1.bf16.msra.mxu0 0
  %1757 = vmatprep.subr.bf16.mxu0 0
  %1758 = vmatpush1.bf16.msra.mxu0 0
  %1759 = vmatprep.subr.bf16.mxu0 0
  %1760 = vmatpush1.bf16.msra.mxu0 0
  %1761 = vmatprep.subr.bf16.mxu0 0
  %1762 = vmatpush1.bf16.msra.mxu0 0
  %1763 = vmatprep.subr.bf16.mxu0 0
  %1764 = vmatpush1.bf16.msra.mxu0 0
  %1765 = vmatprep.subr.bf16.mxu0 0
  %1766 = vmatpush1.bf16.msra.mxu0 0
  %1767 = vmatprep.subr.bf16.mxu0 0
  %1768 = vmatpush1.bf16.msra.mxu0 0
  %1769 = vmatprep.mubr.bf16.mxu0 0
  %1770 = vmatmul.mubr.bf16.gmra.mrb[0].mxu0 %v1670
  %v1771 = vpop.f32.mrb[0].mxu0
  %v1772 = vadd.f32 0.0, %v1771
  %v1773 = vpop.f32.mrb[0].mxu0
  %v1774 = vadd.f32 0.0, %v1773
  %v1775 = vpop.f32.mrb[0].mxu0
  %v1776 = vpop.f32.mrb[0].mxu0
  %1777 = vdwg.mxu0
  %1778 = vmatprep.subr.bf16.mxu0 %v1688
  %1779 = vmatpush1.bf16.msra.mxu0 %v1685
  %1780 = vmatprep.subr.bf16.mxu0 0
  %1781 = vmatpush1.bf16.msra.mxu0 0
  %1782 = vmatprep.subr.bf16.mxu0 0
  %1783 = vmatpush1.bf16.msra.mxu0 0
  %1784 = vmatprep.subr.bf16.mxu0 0
  %1785 = vmatpush1.bf16.msra.mxu0 0
  %1786 = vmatprep.subr.bf16.mxu0 0
  %1787 = vmatpush1.bf16.msra.mxu0 0
  %1788 = vmatprep.subr.bf16.mxu0 0
  %1789 = vmatpush1.bf16.msra.mxu0 0
  %1790 = vmatprep.subr.bf16.mxu0 0
  %1791 = vmatpush1.bf16.msra.mxu0 0
  %1792 = vmatprep.subr.bf16.mxu0 0
  %1793 = vmatpush1.bf16.msra.mxu0 0
  %1794 = vmatprep.subr.bf16.mxu0 0
  %1795 = vmatpush1.bf16.msra.mxu0 0
  %1796 = vmatprep.subr.bf16.mxu0 0
  %1797 = vmatpush1.bf16.msra.mxu0 0
  %1798 = vmatprep.subr.bf16.mxu0 0
  %1799 = vmatpush1.bf16.msra.mxu0 0
  %1800 = vmatprep.subr.bf16.mxu0 0
  %1801 = vmatpush1.bf16.msra.mxu0 0
  %1802 = vmatprep.subr.bf16.mxu0 0
  %1803 = vmatpush1.bf16.msra.mxu0 0
  %1804 = vmatprep.subr.bf16.mxu0 0
  %1805 = vmatpush1.bf16.msra.mxu0 0
  %1806 = vmatprep.subr.bf16.mxu0 0
  %1807 = vmatpush1.bf16.msra.mxu0 0
  %1808 = vmatprep.subr.bf16.mxu0 0
  %1809 = vmatpush1.bf16.msra.mxu0 0
  %1810 = vmatprep.mubr.bf16.mxu0 0
  %1811 = vmatmul.mubr.bf16.gmra.mrb[0].mxu0 %v1670
  %v1812 = vpop.f32.mrb[0].mxu0
  %v1813 = vadd.f32 0.0, %v1812
  %v1814 = vpop.f32.mrb[0].mxu0
  %v1815 = vadd.f32 0.0, %v1814
  %v1816 = vpop.f32.mrb[0].mxu0
  %v1817 = vpop.f32.mrb[0].mxu0
  %1818 = vdwg.mxu0
  %1819 = vmatprep.subr.bf16.mxu0 %v1694
  %1820 = vmatpush1.bf16.msra.mxu0 %v1691
  %1821 = vmatprep.subr.bf16.mxu0 0
  %1822 = vmatpush1.bf16.msra.mxu0 0
  %1823 = vmatprep.subr.bf16.mxu0 0
  %1824 = vmatpush1.bf16.msra.mxu0 0
  %1825 = vmatprep.subr.bf16.mxu0 0
  %1826 = vmatpush1.bf16.msra.mxu0 0
  %1827 = vmatprep.subr.bf16.mxu0 0
  %1828 = vmatpush1.bf16.msra.mxu0 0
  %1829 = vmatprep.subr.bf16.mxu0 0
  %1830 = vmatpush1.bf16.msra.mxu0 0
  %1831 = vmatprep.subr.bf16.mxu0 0
  %1832 = vmatpush1.bf16.msra.mxu0 0
  %1833 = vmatprep.subr.bf16.mxu0 0
  %1834 = vmatpush1.bf16.msra.mxu0 0
  %1835 = vmatprep.subr.bf16.mxu0 0
  %1836 = vmatpush1.bf16.msra.mxu0 0
  %1837 = vmatprep.subr.bf16.mxu0 0
  %1838 = vmatpush1.bf16.msra.mxu0 0
  %1839 = vmatprep.subr.bf16.mxu0 0
  %1840 = vmatpush1.bf16.msra.mxu0 0
  %1841 = vmatprep.subr.bf16.mxu0 0
  %1842 = vmatpush1.bf16.msra.mxu0 0
  %1843 = vmatprep.subr.bf16.mxu0 0
  %1844 = vmatpush1.bf16.msra.mxu0 0
  %1845 = vmatprep.subr.bf16.mxu0 0
  %1846 = vmatpush1.bf16.msra.mxu0 0
  %1847 = vmatprep.subr.bf16.mxu0 0
  %1848 = vmatpush1.bf16.msra.mxu0 0
  %1849 = vmatprep.subr.bf16.mxu0 0
  %1850 = vmatpush1.bf16.msra.mxu0 0
  %1851 = vmatprep.mubr.bf16.mxu0 0
  %1852 = vmatmul.mubr.bf16.gmra.mrb[0].mxu0 %v1670
  %v1853 = vpop.f32.mrb[0].mxu0
  %v1854 = vadd.f32 0.0, %v1853
  %v1855 = vpop.f32.mrb[0].mxu0
  %v1856 = vadd.f32 0.0, %v1855
  %v1857 = vpop.f32.mrb[0].mxu0
  %v1858 = vpop.f32.mrb[0].mxu0
  %1859 = vdwg.mxu0
  %v1860 = vadd.f32 %v1632, %v1731
  %v1861 = vadd.f32 %v1633, %v1733
  %v1862 = vadd.f32 %v1634, %v1772
  %v1863 = vadd.f32 %v1635, %v1774
  %v1864 = vadd.f32 %v1636, %v1813
  %v1865 = vadd.f32 %v1637, %v1815
  %v1866 = vadd.f32 %v1638, %v1854
  %v1867 = vadd.f32 %v1639, %v1856
  %s1868 = scalar_lea.vmem %s0, 14
  %v1869 = vld [vmem:[%s1868] sm:$0x3]
  %1870 = vrot.lane.b32.xlu0 %v290, 110
  %v1871 = vpop.permute.xlu0 %1870
  %1872 = vrot.lane.b32.xlu0 %v289, 110
  %v1873 = vpop.permute.xlu0 %1872
  %1874 = vrot.lane.b32.xlu0 %v291, 110
  %v1875 = vpop.permute.xlu0 %1874
  %1876 = vrot.lane.b32.xlu0 %v299, 110
  %v1877 = vpop.permute.xlu0 %1876
  %1878 = vrot.lane.b32.xlu0 %v307, 110
  %v1879 = vpop.permute.xlu0 %1878
  %1880 = vrot.lane.b32.xlu0 %v306, 110
  %v1881 = vpop.permute.xlu0 %1880
  %1882 = vrot.lane.b32.xlu0 %v308, 110
  %v1883 = vpop.permute.xlu0 %1882
  %1884 = vrot.lane.b32.xlu0 %v315, 110
  %v1885 = vpop.permute.xlu0 %1884
  %1886 = vrot.lane.b32.xlu0 %v1413, 110
  %v1887 = vpop.permute.xlu0 %1886
  %vm1888 = vcmask 900096
  %v1889 = vsel %vm1888, %v1871, %v1873
  %v1890 = vsel %vm1888, %v1873, %v1875
  %v1891 = vsel %vm1888, %v1875, %v1877
  %v1892 = vsel %vm1888, %v1877, %v1879
  %v1893 = vsel %vm1888, %v1879, %v1881
  %v1894 = vsel %vm1888, %v1881, %v1883
  %v1895 = vsel %vm1888, %v1883, %v1885
  %v1896 = vsel %vm1888, %v1885, %v1887
  %v1898 = vsel %vm343, %v1869, 0
  %v1901 = vsel %vm347, %v1889, 0
  %v1904 = vsel %vm347, %v1890, 0
  %v1907 = vsel %vm347, %v1891, 0
  %v1910 = vsel %vm347, %v1892, 0
  %v1913 = vsel %vm347, %v1893, 0
  %v1916 = vsel %vm347, %v1894, 0
  %v1919 = vsel %vm347, %v1895, 0
  %v1922 = vsel %vm347, %v1896, 0
  %1924 = vmatprep.subr.bf16.mxu0 %v1904
  %1925 = vmatpush1.bf16.msra.mxu0 %v1901
  %1926 = vmatprep.subr.bf16.mxu0 0
  %1927 = vmatpush1.bf16.msra.mxu0 0
  %1928 = vmatprep.subr.bf16.mxu0 0
  %1929 = vmatpush1.bf16.msra.mxu0 0
  %1930 = vmatprep.subr.bf16.mxu0 0
  %1931 = vmatpush1.bf16.msra.mxu0 0
  %1932 = vmatprep.subr.bf16.mxu0 0
  %1933 = vmatpush1.bf16.msra.mxu0 0
  %1934 = vmatprep.subr.bf16.mxu0 0
  %1935 = vmatpush1.bf16.msra.mxu0 0
  %1936 = vmatprep.subr.bf16.mxu0 0
  %1937 = vmatpush1.bf16.msra.mxu0 0
  %1938 = vmatprep.subr.bf16.mxu0 0
  %1939 = vmatpush1.bf16.msra.mxu0 0
  %1940 = vmatprep.subr.bf16.mxu0 0
  %1941 = vmatpush1.bf16.msra.mxu0 0
  %1942 = vmatprep.subr.bf16.mxu0 0
  %1943 = vmatpush1.bf16.msra.mxu0 0
  %1944 = vmatprep.subr.bf16.mxu0 0
  %1945 = vmatpush1.bf16.msra.mxu0 0
  %1946 = vmatprep.subr.bf16.mxu0 0
  %1947 = vmatpush1.bf16.msra.mxu0 0
  %1948 = vmatprep.subr.bf16.mxu0 0
  %1949 = vmatpush1.bf16.msra.mxu0 0
  %1950 = vmatprep.subr.bf16.mxu0 0
  %1951 = vmatpush1.bf16.msra.mxu0 0
  %1952 = vmatprep.subr.bf16.mxu0 0
  %1953 = vmatpush1.bf16.msra.mxu0 0
  %1954 = vmatprep.subr.bf16.mxu0 0
  %1955 = vmatpush1.bf16.msra.mxu0 0
  %1956 = vmatprep.mubr.bf16.mxu0 0
  %1957 = vmatmul.mubr.bf16.gmra.mrb[0].mxu0 %v1898
  %v1958 = vpop.f32.mrb[0].mxu0
  %v1959 = vadd.f32 0.0, %v1958
  %v1960 = vpop.f32.mrb[0].mxu0
  %v1961 = vadd.f32 0.0, %v1960
  %v1962 = vpop.f32.mrb[0].mxu0
  %v1963 = vpop.f32.mrb[0].mxu0
  %1964 = vdwg.mxu0
  %1965 = vmatprep.subr.bf16.mxu0 %v1910
  %1966 = vmatpush1.bf16.msra.mxu0 %v1907
  %1967 = vmatprep.subr.bf16.mxu0 0
  %1968 = vmatpush1.bf16.msra.mxu0 0
  %1969 = vmatprep.subr.bf16.mxu0 0
  %1970 = vmatpush1.bf16.msra.mxu0 0
  %1971 = vmatprep.subr.bf16.mxu0 0
  %1972 = vmatpush1.bf16.msra.mxu0 0
  %1973 = vmatprep.subr.bf16.mxu0 0
  %1974 = vmatpush1.bf16.msra.mxu0 0
  %1975 = vmatprep.subr.bf16.mxu0 0
  %1976 = vmatpush1.bf16.msra.mxu0 0
  %1977 = vmatprep.subr.bf16.mxu0 0
  %1978 = vmatpush1.bf16.msra.mxu0 0
  %1979 = vmatprep.subr.bf16.mxu0 0
  %1980 = vmatpush1.bf16.msra.mxu0 0
  %1981 = vmatprep.subr.bf16.mxu0 0
  %1982 = vmatpush1.bf16.msra.mxu0 0
  %1983 = vmatprep.subr.bf16.mxu0 0
  %1984 = vmatpush1.bf16.msra.mxu0 0
  %1985 = vmatprep.subr.bf16.mxu0 0
  %1986 = vmatpush1.bf16.msra.mxu0 0
  %1987 = vmatprep.subr.bf16.mxu0 0
  %1988 = vmatpush1.bf16.msra.mxu0 0
  %1989 = vmatprep.subr.bf16.mxu0 0
  %1990 = vmatpush1.bf16.msra.mxu0 0
  %1991 = vmatprep.subr.bf16.mxu0 0
  %1992 = vmatpush1.bf16.msra.mxu0 0
  %1993 = vmatprep.subr.bf16.mxu0 0
  %1994 = vmatpush1.bf16.msra.mxu0 0
  %1995 = vmatprep.subr.bf16.mxu0 0
  %1996 = vmatpush1.bf16.msra.mxu0 0
  %1997 = vmatprep.mubr.bf16.mxu0 0
  %1998 = vmatmul.mubr.bf16.gmra.mrb[0].mxu0 %v1898
  %v1999 = vpop.f32.mrb[0].mxu0
  %v2000 = vadd.f32 0.0, %v1999
  %v2001 = vpop.f32.mrb[0].mxu0
  %v2002 = vadd.f32 0.0, %v2001
  %v2003 = vpop.f32.mrb[0].mxu0
  %v2004 = vpop.f32.mrb[0].mxu0
  %2005 = vdwg.mxu0
  %2006 = vmatprep.subr.bf16.mxu0 %v1916
  %2007 = vmatpush1.bf16.msra.mxu0 %v1913
  %2008 = vmatprep.subr.bf16.mxu0 0
  %2009 = vmatpush1.bf16.msra.mxu0 0
  %2010 = vmatprep.subr.bf16.mxu0 0
  %2011 = vmatpush1.bf16.msra.mxu0 0
  %2012 = vmatprep.subr.bf16.mxu0 0
  %2013 = vmatpush1.bf16.msra.mxu0 0
  %2014 = vmatprep.subr.bf16.mxu0 0
  %2015 = vmatpush1.bf16.msra.mxu0 0
  %2016 = vmatprep.subr.bf16.mxu0 0
  %2017 = vmatpush1.bf16.msra.mxu0 0
  %2018 = vmatprep.subr.bf16.mxu0 0
  %2019 = vmatpush1.bf16.msra.mxu0 0
  %2020 = vmatprep.subr.bf16.mxu0 0
  %2021 = vmatpush1.bf16.msra.mxu0 0
  %2022 = vmatprep.subr.bf16.mxu0 0
  %2023 = vmatpush1.bf16.msra.mxu0 0
  %2024 = vmatprep.subr.bf16.mxu0 0
  %2025 = vmatpush1.bf16.msra.mxu0 0
  %2026 = vmatprep.subr.bf16.mxu0 0
  %2027 = vmatpush1.bf16.msra.mxu0 0
  %2028 = vmatprep.subr.bf16.mxu0 0
  %2029 = vmatpush1.bf16.msra.mxu0 0
  %2030 = vmatprep.subr.bf16.mxu0 0
  %2031 = vmatpush1.bf16.msra.mxu0 0
  %2032 = vmatprep.subr.bf16.mxu0 0
  %2033 = vmatpush1.bf16.msra.mxu0 0
  %2034 = vmatprep.subr.bf16.mxu0 0
  %2035 = vmatpush1.bf16.msra.mxu0 0
  %2036 = vmatprep.subr.bf16.mxu0 0
  %2037 = vmatpush1.bf16.msra.mxu0 0
  %2038 = vmatprep.mubr.bf16.mxu0 0
  %2039 = vmatmul.mubr.bf16.gmra.mrb[0].mxu0 %v1898
  %v2040 = vpop.f32.mrb[0].mxu0
  %v2041 = vadd.f32 0.0, %v2040
  %v2042 = vpop.f32.mrb[0].mxu0
  %v2043 = vadd.f32 0.0, %v2042
  %v2044 = vpop.f32.mrb[0].mxu0
  %v2045 = vpop.f32.mrb[0].mxu0
  %2046 = vdwg.mxu0
  %2047 = vmatprep.subr.bf16.mxu0 %v1922
  %2048 = vmatpush1.bf16.msra.mxu0 %v1919
  %2049 = vmatprep.subr.bf16.mxu0 0
  %2050 = vmatpush1.bf16.msra.mxu0 0
  %2051 = vmatprep.subr.bf16.mxu0 0
  %2052 = vmatpush1.bf16.msra.mxu0 0
  %2053 = vmatprep.subr.bf16.mxu0 0
  %2054 = vmatpush1.bf16.msra.mxu0 0
  %2055 = vmatprep.subr.bf16.mxu0 0
  %2056 = vmatpush1.bf16.msra.mxu0 0
  %2057 = vmatprep.subr.bf16.mxu0 0
  %2058 = vmatpush1.bf16.msra.mxu0 0
  %2059 = vmatprep.subr.bf16.mxu0 0
  %2060 = vmatpush1.bf16.msra.mxu0 0
  %2061 = vmatprep.subr.bf16.mxu0 0
  %2062 = vmatpush1.bf16.msra.mxu0 0
  %2063 = vmatprep.subr.bf16.mxu0 0
  %2064 = vmatpush1.bf16.msra.mxu0 0
  %2065 = vmatprep.subr.bf16.mxu0 0
  %2066 = vmatpush1.bf16.msra.mxu0 0
  %2067 = vmatprep.subr.bf16.mxu0 0
  %2068 = vmatpush1.bf16.msra.mxu0 0
  %2069 = vmatprep.subr.bf16.mxu0 0
  %2070 = vmatpush1.bf16.msra.mxu0 0
  %2071 = vmatprep.subr.bf16.mxu0 0
  %2072 = vmatpush1.bf16.msra.mxu0 0
  %2073 = vmatprep.subr.bf16.mxu0 0
  %2074 = vmatpush1.bf16.msra.mxu0 0
  %2075 = vmatprep.subr.bf16.mxu0 0
  %2076 = vmatpush1.bf16.msra.mxu0 0
  %2077 = vmatprep.subr.bf16.mxu0 0
  %2078 = vmatpush1.bf16.msra.mxu0 0
  %2079 = vmatprep.mubr.bf16.mxu0 0
  %2080 = vmatmul.mubr.bf16.gmra.mrb[0].mxu0 %v1898
  %v2081 = vpop.f32.mrb[0].mxu0
  %v2082 = vadd.f32 0.0, %v2081
  %v2083 = vpop.f32.mrb[0].mxu0
  %v2084 = vadd.f32 0.0, %v2083
  %v2085 = vpop.f32.mrb[0].mxu0
  %v2086 = vpop.f32.mrb[0].mxu0
  %2087 = vdwg.mxu0
  %v2088 = vadd.f32 %v1860, %v1959
  %v2089 = vadd.f32 %v1861, %v1961
  %v2090 = vadd.f32 %v1862, %v2000
  %v2091 = vadd.f32 %v1863, %v2002
  %v2092 = vadd.f32 %v1864, %v2041
  %v2093 = vadd.f32 %v1865, %v2043
  %v2094 = vadd.f32 %v1866, %v2082
  %v2095 = vadd.f32 %v1867, %v2084
  %s2096 = scalar_lea.vmem %s0, 16
  %v2097 = vld [vmem:[%s2096] sm:$0x3]
  %2098 = vrot.lane.b32.xlu0 %v290, 109
  %v2099 = vpop.permute.xlu0 %2098
  %2100 = vrot.lane.b32.xlu0 %v289, 109
  %v2101 = vpop.permute.xlu0 %2100
  %2102 = vrot.lane.b32.xlu0 %v291, 109
  %v2103 = vpop.permute.xlu0 %2102
  %2104 = vrot.lane.b32.xlu0 %v299, 109
  %v2105 = vpop.permute.xlu0 %2104
  %2106 = vrot.lane.b32.xlu0 %v307, 109
  %v2107 = vpop.permute.xlu0 %2106
  %2108 = vrot.lane.b32.xlu0 %v306, 109
  %v2109 = vpop.permute.xlu0 %2108
  %2110 = vrot.lane.b32.xlu0 %v308, 109
  %v2111 = vpop.permute.xlu0 %2110
  %2112 = vrot.lane.b32.xlu0 %v315, 109
  %v2113 = vpop.permute.xlu0 %2112
  %2114 = vrot.lane.b32.xlu0 %v1413, 109
  %v2115 = vpop.permute.xlu0 %2114
  %vm2116 = vcmask 891904
  %v2117 = vsel %vm2116, %v2099, %v2101
  %v2118 = vsel %vm2116, %v2101, %v2103
  %v2119 = vsel %vm2116, %v2103, %v2105
  %v2120 = vsel %vm2116, %v2105, %v2107
  %v2121 = vsel %vm2116, %v2107, %v2109
  %v2122 = vsel %vm2116, %v2109, %v2111
  %v2123 = vsel %vm2116, %v2111, %v2113
  %v2124 = vsel %vm2116, %v2113, %v2115
  %v2126 = vsel %vm343, %v2097, 0
  %v2129 = vsel %vm347, %v2117, 0
  %v2132 = vsel %vm347, %v2118, 0
  %v2135 = vsel %vm347, %v2119, 0
  %v2138 = vsel %vm347, %v2120, 0
  %v2141 = vsel %vm347, %v2121, 0
  %v2144 = vsel %vm347, %v2122, 0
  %v2147 = vsel %vm347, %v2123, 0
  %v2150 = vsel %vm347, %v2124, 0
  %2152 = vmatprep.subr.bf16.mxu0 %v2132
  %2153 = vmatpush1.bf16.msra.mxu0 %v2129
  %2154 = vmatprep.subr.bf16.mxu0 0
  %2155 = vmatpush1.bf16.msra.mxu0 0
  %2156 = vmatprep.subr.bf16.mxu0 0
  %2157 = vmatpush1.bf16.msra.mxu0 0
  %2158 = vmatprep.subr.bf16.mxu0 0
  %2159 = vmatpush1.bf16.msra.mxu0 0
  %2160 = vmatprep.subr.bf16.mxu0 0
  %2161 = vmatpush1.bf16.msra.mxu0 0
  %2162 = vmatprep.subr.bf16.mxu0 0
  %2163 = vmatpush1.bf16.msra.mxu0 0
  %2164 = vmatprep.subr.bf16.mxu0 0
  %2165 = vmatpush1.bf16.msra.mxu0 0
  %2166 = vmatprep.subr.bf16.mxu0 0
  %2167 = vmatpush1.bf16.msra.mxu0 0
  %2168 = vmatprep.subr.bf16.mxu0 0
  %2169 = vmatpush1.bf16.msra.mxu0 0
  %2170 = vmatprep.subr.bf16.mxu0 0
  %2171 = vmatpush1.bf16.msra.mxu0 0
  %2172 = vmatprep.subr.bf16.mxu0 0
  %2173 = vmatpush1.bf16.msra.mxu0 0
  %2174 = vmatprep.subr.bf16.mxu0 0
  %2175 = vmatpush1.bf16.msra.mxu0 0
  %2176 = vmatprep.subr.bf16.mxu0 0
  %2177 = vmatpush1.bf16.msra.mxu0 0
  %2178 = vmatprep.subr.bf16.mxu0 0
  %2179 = vmatpush1.bf16.msra.mxu0 0
  %2180 = vmatprep.subr.bf16.mxu0 0
  %2181 = vmatpush1.bf16.msra.mxu0 0
  %2182 = vmatprep.subr.bf16.mxu0 0
  %2183 = vmatpush1.bf16.msra.mxu0 0
  %2184 = vmatprep.mubr.bf16.mxu0 0
  %2185 = vmatmul.mubr.bf16.gmra.mrb[0].mxu0 %v2126
  %v2186 = vpop.f32.mrb[0].mxu0
  %v2187 = vadd.f32 0.0, %v2186
  %v2188 = vpop.f32.mrb[0].mxu0
  %v2189 = vadd.f32 0.0, %v2188
  %v2190 = vpop.f32.mrb[0].mxu0
  %v2191 = vpop.f32.mrb[0].mxu0
  %2192 = vdwg.mxu0
  %2193 = vmatprep.subr.bf16.mxu0 %v2138
  %2194 = vmatpush1.bf16.msra.mxu0 %v2135
  %2195 = vmatprep.subr.bf16.mxu0 0
  %2196 = vmatpush1.bf16.msra.mxu0 0
  %2197 = vmatprep.subr.bf16.mxu0 0
  %2198 = vmatpush1.bf16.msra.mxu0 0
  %2199 = vmatprep.subr.bf16.mxu0 0
  %2200 = vmatpush1.bf16.msra.mxu0 0
  %2201 = vmatprep.subr.bf16.mxu0 0
  %2202 = vmatpush1.bf16.msra.mxu0 0
  %2203 = vmatprep.subr.bf16.mxu0 0
  %2204 = vmatpush1.bf16.msra.mxu0 0
  %2205 = vmatprep.subr.bf16.mxu0 0
  %2206 = vmatpush1.bf16.msra.mxu0 0
  %2207 = vmatprep.subr.bf16.mxu0 0
  %2208 = vmatpush1.bf16.msra.mxu0 0
  %2209 = vmatprep.subr.bf16.mxu0 0
  %2210 = vmatpush1.bf16.msra.mxu0 0
  %2211 = vmatprep.subr.bf16.mxu0 0
  %2212 = vmatpush1.bf16.msra.mxu0 0
  %2213 = vmatprep.subr.bf16.mxu0 0
  %2214 = vmatpush1.bf16.msra.mxu0 0
  %2215 = vmatprep.subr.bf16.mxu0 0
  %2216 = vmatpush1.bf16.msra.mxu0 0
  %2217 = vmatprep.subr.bf16.mxu0 0
  %2218 = vmatpush1.bf16.msra.mxu0 0
  %2219 = vmatprep.subr.bf16.mxu0 0
  %2220 = vmatpush1.bf16.msra.mxu0 0
  %2221 = vmatprep.subr.bf16.mxu0 0
  %2222 = vmatpush1.bf16.msra.mxu0 0
  %2223 = vmatprep.subr.bf16.mxu0 0
  %2224 = vmatpush1.bf16.msra.mxu0 0
  %2225 = vmatprep.mubr.bf16.mxu0 0
  %2226 = vmatmul.mubr.bf16.gmra.mrb[0].mxu0 %v2126
  %v2227 = vpop.f32.mrb[0].mxu0
  %v2228 = vadd.f32 0.0, %v2227
  %v2229 = vpop.f32.mrb[0].mxu0
  %v2230 = vadd.f32 0.0, %v2229
  %v2231 = vpop.f32.mrb[0].mxu0
  %v2232 = vpop.f32.mrb[0].mxu0
  %2233 = vdwg.mxu0
  %2234 = vmatprep.subr.bf16.mxu0 %v2144
  %2235 = vmatpush1.bf16.msra.mxu0 %v2141
  %2236 = vmatprep.subr.bf16.mxu0 0
  %2237 = vmatpush1.bf16.msra.mxu0 0
  %2238 = vmatprep.subr.bf16.mxu0 0
  %2239 = vmatpush1.bf16.msra.mxu0 0
  %2240 = vmatprep.subr.bf16.mxu0 0
  %2241 = vmatpush1.bf16.msra.mxu0 0
  %2242 = vmatprep.subr.bf16.mxu0 0
  %2243 = vmatpush1.bf16.msra.mxu0 0
  %2244 = vmatprep.subr.bf16.mxu0 0
  %2245 = vmatpush1.bf16.msra.mxu0 0
  %2246 = vmatprep.subr.bf16.mxu0 0
  %2247 = vmatpush1.bf16.msra.mxu0 0
  %2248 = vmatprep.subr.bf16.mxu0 0
  %2249 = vmatpush1.bf16.msra.mxu0 0
  %2250 = vmatprep.subr.bf16.mxu0 0
  %2251 = vmatpush1.bf16.msra.mxu0 0
  %2252 = vmatprep.subr.bf16.mxu0 0
  %2253 = vmatpush1.bf16.msra.mxu0 0
  %2254 = vmatprep.subr.bf16.mxu0 0
  %2255 = vmatpush1.bf16.msra.mxu0 0
  %2256 = vmatprep.subr.bf16.mxu0 0
  %2257 = vmatpush1.bf16.msra.mxu0 0
  %2258 = vmatprep.subr.bf16.mxu0 0
  %2259 = vmatpush1.bf16.msra.mxu0 0
  %2260 = vmatprep.subr.bf16.mxu0 0
  %2261 = vmatpush1.bf16.msra.mxu0 0
  %2262 = vmatprep.subr.bf16.mxu0 0
  %2263 = vmatpush1.bf16.msra.mxu0 0
  %2264 = vmatprep.subr.bf16.mxu0 0
  %2265 = vmatpush1.bf16.msra.mxu0 0
  %2266 = vmatprep.mubr.bf16.mxu0 0
  %2267 = vmatmul.mubr.bf16.gmra.mrb[0].mxu0 %v2126
  %v2268 = vpop.f32.mrb[0].mxu0
  %v2269 = vadd.f32 0.0, %v2268
  %v2270 = vpop.f32.mrb[0].mxu0
  %v2271 = vadd.f32 0.0, %v2270
  %v2272 = vpop.f32.mrb[0].mxu0
  %v2273 = vpop.f32.mrb[0].mxu0
  %2274 = vdwg.mxu0
  %2275 = vmatprep.subr.bf16.mxu0 %v2150
  %2276 = vmatpush1.bf16.msra.mxu0 %v2147
  %2277 = vmatprep.subr.bf16.mxu0 0
  %2278 = vmatpush1.bf16.msra.mxu0 0
  %2279 = vmatprep.subr.bf16.mxu0 0
  %2280 = vmatpush1.bf16.msra.mxu0 0
  %2281 = vmatprep.subr.bf16.mxu0 0
  %2282 = vmatpush1.bf16.msra.mxu0 0
  %2283 = vmatprep.subr.bf16.mxu0 0
  %2284 = vmatpush1.bf16.msra.mxu0 0
  %2285 = vmatprep.subr.bf16.mxu0 0
  %2286 = vmatpush1.bf16.msra.mxu0 0
  %2287 = vmatprep.subr.bf16.mxu0 0
  %2288 = vmatpush1.bf16.msra.mxu0 0
  %2289 = vmatprep.subr.bf16.mxu0 0
  %2290 = vmatpush1.bf16.msra.mxu0 0
  %2291 = vmatprep.subr.bf16.mxu0 0
  %2292 = vmatpush1.bf16.msra.mxu0 0
  %2293 = vmatprep.subr.bf16.mxu0 0
  %2294 = vmatpush1.bf16.msra.mxu0 0
  %2295 = vmatprep.subr.bf16.mxu0 0
  %2296 = vmatpush1.bf16.msra.mxu0 0
  %2297 = vmatprep.subr.bf16.mxu0 0
  %2298 = vmatpush1.bf16.msra.mxu0 0
  %2299 = vmatprep.subr.bf16.mxu0 0
  %2300 = vmatpush1.bf16.msra.mxu0 0
  %2301 = vmatprep.subr.bf16.mxu0 0
  %2302 = vmatpush1.bf16.msra.mxu0 0
  %2303 = vmatprep.subr.bf16.mxu0 0
  %2304 = vmatpush1.bf16.msra.mxu0 0
  %2305 = vmatprep.subr.bf16.mxu0 0
  %2306 = vmatpush1.bf16.msra.mxu0 0
  %2307 = vmatprep.mubr.bf16.mxu0 0
  %2308 = vmatmul.mubr.bf16.gmra.mrb[0].mxu0 %v2126
  %v2309 = vpop.f32.mrb[0].mxu0
  %v2310 = vadd.f32 0.0, %v2309
  %v2311 = vpop.f32.mrb[0].mxu0
  %v2312 = vadd.f32 0.0, %v2311
  %v2313 = vpop.f32.mrb[0].mxu0
  %v2314 = vpop.f32.mrb[0].mxu0
  %2315 = vdwg.mxu0
  %v2316 = vadd.f32 %v2088, %v2187
  %v2317 = vadd.f32 %v2089, %v2189
  %v2318 = vadd.f32 %v2090, %v2228
  %v2319 = vadd.f32 %v2091, %v2230
  %v2320 = vadd.f32 %v2092, %v2269
  %v2321 = vadd.f32 %v2093, %v2271
  %v2322 = vadd.f32 %v2094, %v2310
  %v2323 = vadd.f32 %v2095, %v2312
  %v2324 = vld [vmem:[%s92] sm:$0x55]
  %v2325 = vld [vmem:[%s92 + $0x8] sm:$0x55]
  %v2326 = vunpack.c.l.bf16 %v2324
  %v2327 = vunpack.c.h.bf16 %v2324
  %v2328 = vunpack.c.l.bf16 %v2325
  %v2329 = vunpack.c.h.bf16 %v2325
  %vm2330 = vcmp.eq.f32.partialorder %v2326, %v2326
  %vm2331 = vcmp.eq.f32.partialorder %v2327, %v2327
  %vm2332 = vcmp.eq.f32.partialorder %v2328, %v2328
  %vm2333 = vcmp.eq.f32.partialorder %v2329, %v2329
  %v2334 = vsel %vm2330, 1, 0
  %v2335 = vsel %vm2331, 1, 0
  %v2336 = vsel %vm2332, 1, 0
  %v2337 = vsel %vm2333, 1, 0
  %v2338 = vlaneseq
  %v2339 = vshrl.u32 %v2338, 7
  %v2340 = vsub.s32 0, %v2339
  %v2341 = vrot.slane %v2334, %v2340
  %v2342 = vlaneseq
  %v2343 = vshrl.u32 %v2342, 7
  %v2344 = vsub.s32 4, %v2343
  %v2345 = vrot.slane %v2334, %v2344
  %v2346 = vlaneseq
  %v2347 = vshrl.u32 %v2346, 7
  %v2348 = vsub.s32 0, %v2347
  %v2349 = vrot.slane %v2335, %v2348
  %v2350 = vlaneseq
  %v2351 = vshrl.u32 %v2350, 7
  %v2352 = vsub.s32 4, %v2351
  %v2353 = vrot.slane %v2335, %v2352
  %v2354 = vlaneseq
  %v2355 = vshrl.u32 %v2354, 7
  %v2356 = vsub.s32 0, %v2355
  %v2357 = vrot.slane %v2336, %v2356
  %v2358 = vlaneseq
  %v2359 = vshrl.u32 %v2358, 7
  %v2360 = vsub.s32 4, %v2359
  %v2361 = vrot.slane %v2336, %v2360
  %v2362 = vlaneseq
  %v2363 = vshrl.u32 %v2362, 7
  %v2364 = vsub.s32 0, %v2363
  %v2365 = vrot.slane %v2337, %v2364
  %v2366 = vlaneseq
  %v2367 = vshrl.u32 %v2366, 7
  %v2368 = vsub.s32 4, %v2367
  %v2369 = vrot.slane %v2337, %v2368
  %v2370 = vlaneseq
  %v2371 = vshrl.u32 %v2370, 7
  %v2372 = vsub.s32 0, %v2371
  %v2373 = vrot.slane %v2341, %v2372
  %v2374 = vlaneseq
  %v2375 = vshrl.u32 %v2374, 7
  %v2376 = vsub.s32 0, %v2375
  %v2377 = vrot.slane %v2345, %v2376
  %v2378 = vlaneseq
  %v2379 = vshrl.u32 %v2378, 7
  %v2380 = vsub.s32 0, %v2379
  %v2381 = vrot.slane %v2349, %v2380
  %v2382 = vlaneseq
  %v2383 = vshrl.u32 %v2382, 7
  %v2384 = vsub.s32 0, %v2383
  %v2385 = vrot.slane %v2353, %v2384
  %v2386 = vlaneseq
  %v2387 = vshrl.u32 %v2386, 7
  %v2388 = vsub.s32 0, %v2387
  %v2389 = vrot.slane %v2357, %v2388
  %v2390 = vlaneseq
  %v2391 = vshrl.u32 %v2390, 7
  %v2392 = vsub.s32 0, %v2391
  %v2393 = vrot.slane %v2361, %v2392
  %v2394 = vlaneseq
  %v2395 = vshrl.u32 %v2394, 7
  %v2396 = vsub.s32 0, %v2395
  %v2397 = vrot.slane %v2365, %v2396
  %v2398 = vlaneseq
  %v2399 = vshrl.u32 %v2398, 7
  %v2400 = vsub.s32 0, %v2399
  %v2401 = vrot.slane %v2369, %v2400
  %vm2402 = vcmp.eq.s32.totalorder %v2373, 1
  %vm2403 = vcmp.eq.s32.totalorder %v2377, 1
  %vm2404 = vcmp.eq.s32.totalorder %v2381, 1
  %vm2405 = vcmp.eq.s32.totalorder %v2385, 1
  %vm2406 = vcmp.eq.s32.totalorder %v2389, 1
  %vm2407 = vcmp.eq.s32.totalorder %v2393, 1
  %vm2408 = vcmp.eq.s32.totalorder %v2397, 1
  %vm2409 = vcmp.eq.s32.totalorder %v2401, 1
  %v2410 = vsel %vm2402, %v2316, nan
  %v2411 = vsel %vm2403, %v2317, nan
  %v2412 = vsel %vm2404, %v2318, nan
  %v2413 = vsel %vm2405, %v2319, nan
  %v2414 = vsel %vm2406, %v2320, nan
  %v2415 = vsel %vm2407, %v2321, nan
  %v2416 = vsel %vm2408, %v2322, nan
  %v2417 = vsel %vm2409, %v2323, nan
  %v2418 = vpack.c.bf16 %v2410, %v2410
  %v2419 = vpack.c.bf16 %v2411, %v2411
  %v2420 = vpack.c.bf16 %v2412, %v2412
  %v2421 = vpack.c.bf16 %v2413, %v2413
  %v2422 = vpack.c.bf16 %v2414, %v2414
  %v2423 = vpack.c.bf16 %v2415, %v2415
  %v2424 = vpack.c.bf16 %v2416, %v2416
  %v2425 = vpack.c.bf16 %v2417, %v2417
  %v2434 = vcombine.low %v2418, %v2419
  %v2435 = vcombine.low %v2420, %v2421
  %v2437 = vunpack.c.l.s4 1983009808
  %v2438 = vunpack.c.0.s8 %v2437
  %v2439 = vlaneseq
  %v2440 = vshrl.u32 %v2439, 7
  %v2441 = vsub.s32 %v2438, %v2440
  %v2442 = vrot.slane %v2434, %v2441
  %v2444 = vunpack.c.l.s4 1983009808
  %v2445 = vunpack.c.0.s8 %v2444
  %v2446 = vlaneseq
  %v2447 = vshrl.u32 %v2446, 7
  %v2448 = vsub.s32 %v2445, %v2447
  %v2449 = vrot.slane %v2435, %v2448
  %v2450 = vcombine.low %v2442, %v2449
  %v2451 = vcombine.low %v2422, %v2423
  %v2452 = vcombine.low %v2424, %v2425
  %v2454 = vunpack.c.l.s4 1983009808
  %v2455 = vunpack.c.0.s8 %v2454
  %v2456 = vlaneseq
  %v2457 = vshrl.u32 %v2456, 7
  %v2458 = vsub.s32 %v2455, %v2457
  %v2459 = vrot.slane %v2451, %v2458
  %v2461 = vunpack.c.l.s4 1983009808
  %v2462 = vunpack.c.0.s8 %v2461
  %v2463 = vlaneseq
  %v2464 = vshrl.u32 %v2463, 7
  %v2465 = vsub.s32 %v2462, %v2464
  %v2466 = vrot.slane %v2452, %v2465
  %v2467 = vcombine.low %v2459, %v2466
  %2470 = vst [vmem:[%s108] sm:$0xff] %v2450
  %2471 = vst [vmem:[%s108 + $0x8] sm:$0xff] %v2467
  %v2472 = vsel %vm2402, %v2316, 0.0
  %v2473 = vsel %vm2403, %v2317, 0.0
  %v2474 = vsel %vm2404, %v2318, 0.0
  %v2475 = vsel %vm2405, %v2319, 0.0
  %v2476 = vsel %vm2406, %v2320, 0.0
  %v2477 = vsel %vm2407, %v2321, 0.0
  %v2478 = vsel %vm2408, %v2322, 0.0
  %v2479 = vsel %vm2409, %v2323, 0.0
  %vm2480 = vcmask 1043456
  %v2481 = vsel %vm2480, %v2472, 0.0
  %v2482 = vsel %vm2480, %v2473, 0.0
  %v2483 = vadd.f32 %v2481, %v2482
  %v2484 = vsel %vm2480, %v2474, 0.0
  %v2485 = vadd.f32 %v2483, %v2484
  %v2486 = vsel %vm2480, %v2475, 0.0
  %v2487 = vadd.f32 %v2485, %v2486
  %v2488 = vsel %vm2480, %v2476, 0.0
  %v2489 = vadd.f32 %v2487, %v2488
  %v2490 = vsel %vm2480, %v2477, 0.0
  %v2491 = vadd.f32 %v2489, %v2490
  %v2492 = vsel %vm2480, %v2478, 0.0
  %v2493 = vadd.f32 %v2491, %v2492
  %v2494 = vsel %vm2480, %v2479, 0.0
  %v2495 = vadd.f32 %v2493, %v2494
  %2496 = vadd.xlane.f32.xlu0 %v2495
  %v2497 = vpop.xlane.xlu0 %2496
  %vm2498 = vcmask 3072
  %2499 = vst.msk [vmem:[%s7] sm:$0xf] %vm2498, %v2497
  %v2500 = vmul.f32 %v2472, %v2472
  %v2501 = vmul.f32 %v2473, %v2473
  %v2502 = vmul.f32 %v2474, %v2474
  %v2503 = vmul.f32 %v2475, %v2475
  %v2504 = vmul.f32 %v2476, %v2476
  %v2505 = vmul.f32 %v2477, %v2477
  %v2506 = vmul.f32 %v2478, %v2478
  %v2507 = vmul.f32 %v2479, %v2479
  %v2508 = vsel %vm2480, %v2500, 0.0
  %v2509 = vsel %vm2480, %v2501, 0.0
  %v2510 = vadd.f32 %v2508, %v2509
  %v2511 = vsel %vm2480, %v2502, 0.0
  %v2512 = vadd.f32 %v2510, %v2511
  %v2513 = vsel %vm2480, %v2503, 0.0
  %v2514 = vadd.f32 %v2512, %v2513
  %v2515 = vsel %vm2480, %v2504, 0.0
  %v2516 = vadd.f32 %v2514, %v2515
  %v2517 = vsel %vm2480, %v2505, 0.0
  %v2518 = vadd.f32 %v2516, %v2517
  %v2519 = vsel %vm2480, %v2506, 0.0
  %v2520 = vadd.f32 %v2518, %v2519
  %v2521 = vsel %vm2480, %v2507, 0.0
  %v2522 = vadd.f32 %v2520, %v2521
  %2523 = vadd.xlane.f32.xlu0 %v2522
  %v2524 = vpop.xlane.xlu0 %2523
  %2525 = vst.msk [vmem:[%s8] sm:$0xf] %vm2498, %v2524
  %s2526 = sadd.s32 0, 1
  %s2527 = smul.u32 8, %s2526
  %p2528 = scmp.lt.s32.totalorder %s2527, 23
  %s2529 = scalar_select %p2528, %s2527, 23
  %s2530 = smul.addr %s2529, 2
  %s2531 = scalar_lea.vmem %s6, %s2530
  // Predicated region
  $region26: #{residual_block.3} parent=0 // pred_check
    _
  $region27: #{residual_block.3} parent=0 // pred_check_branch
    %2533 = sbr.rel (0) target = $region29
  $region28: #{residual_block.3} parent=0 // pred_region
    %s2534 = sadd.s32 0, 1
    %s2535 = smul.u32 8, %s2534
  $region29: #{residual_block.3} parent=0 // pred_fallthru
    _
  // Predicated region
  $region30: #{residual_block.3} parent=0 // pred_check
    _
  $region31: #{residual_block.3} parent=0 // pred_check_branch
    %2537 = sbr.rel (0) target = $region33
  $region32: #{residual_block.3} parent=0 // pred_region
    _
  $region33: #{residual_block.3} parent=0 // pred_fallthru
    _
  // Predicated region
  $region34: #{residual_block.3} parent=0 // pred_check
    _
  $region35: #{residual_block.3} parent=0 // pred_check_branch
    %2539 = sbr.rel (0) target = $region37
  $region36: #{residual_block.3} parent=0 // pred_region
    _
  $region37: #{residual_block.3} parent=0 // pred_fallthru
    _
  // Predicated region
  $region38: #{residual_block.3} parent=0 // pred_check
    _
  $region39: #{residual_block.3} parent=0 // pred_check_branch
    %2541 = sbr.rel (0) target = $region41
  $region40: #{residual_block.3} parent=0 // pred_region
    %s2542 = sadd.s32 0, 1
    %s2543 = smul.u32 8, %s2542
    %p2544 = scmp.lt.s32.totalorder %s2543, 23
    %s2545 = scalar_select %p2544, %s2543, 23
    %s2546 = smul.addr %s2545, 2
    %s2547 = scalar_lea.vmem %s6, %s2546
  $region41: #{residual_block.3} parent=0 // pred_fallthru
    _
  // Predicated region
  $region42: #{residual_block.3} parent=0 // pred_check
    _
  $region43: #{residual_block.3} parent=0 // pred_check_branch
    %2549 = sbr.rel (0) target = $region45
  $region44: #{residual_block.3} parent=0 // pred_region
    _
  $region45: #{residual_block.3} parent=0 // pred_fallthru
    _
  // Predicated region
  $region46: #{residual_block.3} parent=0 // pred_check
    _
  $region47: #{residual_block.3} parent=0 // pred_check_branch
    %2551 = sbr.rel (0) target = $region49
  $region48: #{residual_block.3} parent=0 // pred_region
    _
  $region49: #{residual_block.3} parent=0 // pred_fallthru
    _

// kernel: residual_block.4
$region0: #{residual_block.4}
  #allocation0 [shape = 'u32[]', space=smem, size = 0x4, offset = 0x4, fixed_abs, tag = 'smem constant byte address 0x4 - core index']
  #allocation1 [shape = 'u32[144,128]{1,0:T(1,128)}', space=vmem, size = 0x12000, scoped, tag = 'internal scratch']
  #allocation2 [shape = 'bf16[4,1280]{1,0:T(4,128)(2,1)}', space=vmem, size = 0x2800, scoped, tag = 'scratch operand']
  #allocation3 [shape = 'f32[4,1024]{1,0:T(4,128)}', space=vmem, size = 0x4000, scoped, tag = 'scratch operand']
  %s0 = inlined_call_operand.vmem [shape: bf16[9,4,4], index: 0, kind: input, shape index: {}]
  %s1 = inlined_call_operand.vmem [shape: f32[4,1], index: 1, kind: input, shape index: {}]
  %s2 = inlined_call_operand.vmem [shape: f32[4,1], index: 2, kind: input, shape index: {}]
  %s3 = inlined_call_operand.vmem [shape: bf16[4,3072], index: 3, kind: input, shape index: {}, may-alias: {3,4,5}]
  %s4 = inlined_call_operand.vmem [shape: bf16[4,3072], index: 4, kind: input, shape index: {}, may-alias: {3,4,5}]
  %s5 = inlined_call_operand.vmem [shape: bf16[4,3072], index: 5, kind: input, shape index: {}, may-alias: {3,4,5}]
  %s6 = inlined_call_operand.vmem [shape: bf16[4,3072], index: 6, kind: output, shape index: {0}]
  %s7 = inlined_call_operand.vmem [shape: f32[1,4,1], index: 7, kind: output, shape index: {1}]
  %s8 = inlined_call_operand.vmem [shape: f32[1,4,1], index: 8, kind: output, shape index: {2}]
  %9 = xla_tuple %s6, %s7, %s8
  %s10 = sld [smem:[#allocation0]]
  $region50: #{residual_block.4} parent=0
    _
  %s12 = ssub.s32 1, %s10
  %s13 = scalar_select 0, %s12, %s10
  // Predicated region
  $region2: #{residual_block.4} parent=0 // pred_check
    _
  $region3: #{residual_block.4} parent=0 // pred_check_branch
    %15 = sbr.rel (0) target = $region5
  $region4: #{residual_block.4} parent=0 // pred_region
    _
  $region5: #{residual_block.4} parent=0 // pred_fallthru
    _
  // Predicated region
  $region6: #{residual_block.4} parent=0 // pred_check
    _
  $region7: #{residual_block.4} parent=0 // pred_check_branch
    %17 = sbr.rel (0) target = $region9
  $region8: #{residual_block.4} parent=0 // pred_region
    _
  $region9: #{residual_block.4} parent=0 // pred_fallthru
    _
  // Predicated region
  $region10: #{residual_block.4} parent=0 // pred_check
    _
  $region11: #{residual_block.4} parent=0 // pred_check_branch
    %19 = sbr.rel (0) target = $region13
  $region12: #{residual_block.4} parent=0 // pred_region
    _
  $region13: #{residual_block.4} parent=0 // pred_fallthru
    _
  // Predicated region
  $region14: #{residual_block.4} parent=0 // pred_check
    _
  $region15: #{residual_block.4} parent=0 // pred_check_branch
    %21 = sbr.rel (0) target = $region17
  $region16: #{residual_block.4} parent=0 // pred_region
    %s22 = sadd.s32 0, 1
    %s23 = smul.u32 %s22, 8
    %s24 = ssub.s32 %s23, 1
    %p25 = scmp.lt.s32.totalorder %s24, 23
    %s26 = scalar_select %p25, %s24, 23
    %s27 = smul.addr %s26, 2
    %s28 = scalar_lea.vmem %s3, %s27
    %s29 = sadd.s32 0, 1
    %s30 = smul.u32 %s29, 8
    %s31 = ssub.s32 %s30, 1
  $region17: #{residual_block.4} parent=0 // pred_fallthru
    _
  // Predicated region
  $region18: #{residual_block.4} parent=0 // pred_check
    _
  $region19: #{residual_block.4} parent=0 // pred_check_branch
    %33 = sbr.rel (0) target = $region21
  $region20: #{residual_block.4} parent=0 // pred_region
    %s34 = sadd.s32 0, 1
    %s35 = smul.u32 8, %s34
    %p36 = scmp.lt.s32.totalorder %s35, 23
    %s37 = scalar_select %p36, %s35, 23
    %s38 = smul.addr %s37, 2
    %s39 = scalar_lea.vmem %s4, %s38
    %s40 = sadd.s32 0, 1
    %s41 = smul.u32 8, %s40
  $region21: #{residual_block.4} parent=0 // pred_fallthru
    _
  // Predicated region
  $region22: #{residual_block.4} parent=0 // pred_check
    _
  $region23: #{residual_block.4} parent=0 // pred_check_branch
    %43 = sbr.rel (0) target = $region25
  $region24: #{residual_block.4} parent=0 // pred_region
    %s44 = sadd.s32 0, 2
    %s45 = smul.u32 %s44, 8
    %p46 = scmp.lt.s32.totalorder %s45, 23
    %s47 = scalar_select %p46, %s45, 23
    %s48 = smul.addr %s47, 2
    %s49 = scalar_lea.vmem %s5, %s48
    %s50 = sadd.s32 0, 2
    %s51 = smul.u32 %s50, 8
  $region25: #{residual_block.4} parent=0 // pred_fallthru
    _
  %s52 = sadd.s32 0, 1
  %s53 = smul.u32 %s52, 8
  %s54 = ssub.s32 %s53, 1
  %p55 = scmp.lt.s32.totalorder %s54, 23
  %s56 = scalar_select %p55, %s54, 23
  %s57 = smul.addr %s56, 2
  %s58 = scalar_lea.vmem %s3, %s57
  %s59 = sadd.s32 0, 1
  %s60 = smul.u32 8, %s59
  %p61 = scmp.lt.s32.totalorder %s60, 23
  %s62 = scalar_select %p61, %s60, 23
  %s63 = smul.addr %s62, 2
  %s64 = scalar_lea.vmem %s4, %s63
  %s65 = sadd.s32 0, 2
  %s66 = smul.u32 %s65, 8
  %p67 = scmp.lt.s32.totalorder %s66, 23
  %s68 = scalar_select %p67, %s66, 23
  %s69 = smul.addr %s68, 2
  %s70 = scalar_lea.vmem %s5, %s69
  %s71 = sadd.s32 0, 1
  %s72 = smul.u32 8, %s71
  %p73 = scmp.lt.s32.totalorder %s72, 23
  %s74 = scalar_select %p73, %s72, 23
  %s75 = smul.addr %s74, 2
  %s76 = scalar_lea.vmem %s6, %s75
  %s77 = sadd.s32 0, 1
  %s78 = smul.u32 %s77, 8
  %s79 = ssub.s32 %s78, 1
  %p80 = scmp.lt.s32.totalorder %s79, 23
  %s81 = scalar_select %p80, %s79, 23
  %s82 = smul.addr %s81, 2
  %s83 = scalar_lea.vmem %s3, %s82
  %s84 = sadd.s32 0, 1
  %s85 = smul.u32 %s84, 8
  %s86 = ssub.s32 %s85, 1
  %s87 = sadd.s32 0, 1
  %s88 = smul.u32 8, %s87
  %p89 = scmp.lt.s32.totalorder %s88, 23
  %s90 = scalar_select %p89, %s88, 23
  %s91 = smul.addr %s90, 2
  %s92 = scalar_lea.vmem %s4, %s91
  %s93 = sadd.s32 0, 1
  %s94 = smul.u32 8, %s93
  %s95 = sadd.s32 0, 2
  %s96 = smul.u32 %s95, 8
  %p97 = scmp.lt.s32.totalorder %s96, 23
  %s98 = scalar_select %p97, %s96, 23
  %s99 = smul.addr %s98, 2
  %s100 = scalar_lea.vmem %s5, %s99
  %s101 = sadd.s32 0, 2
  %s102 = smul.u32 %s101, 8
  %s103 = sadd.s32 0, 1
  %s104 = smul.u32 8, %s103
  %p105 = scmp.lt.s32.totalorder %s104, 23
  %s106 = scalar_select %p105, %s104, 23
  %s107 = smul.addr %s106, 2
  %s108 = scalar_lea.vmem %s6, %s107
  %s109 = sadd.s32 0, 1
  %s110 = smul.u32 8, %s109
  %v112 = vld [vmem:[%s1] sm:$0xf]
  %v113 = vld [vmem:[%s2] sm:$0xf]
  %v114 = vld [vmem:[%s83] sm:$0x3]
  %p115 = scmp.eq.s32.totalorder 0, 0
  %s116 = scalar_select %p115, 1, 0
  %v117 = vunpack.c.l.bf16 %v114
  %v118 = vlaneseq
  %v119 = vand.u32 %v118, 127
  %vm120 = vcmp.eq.f32.partialorder %v117, %v117
  %s121 = smul.u32 %s116, 128
  %v122 = vstv %s121
  %vm123 = vcmp.ge.s32.totalorder %v119, %v122
  %v124 = vsel %vm123, 1, 0
  %vm125 = vcmp.eq.s32.totalorder %v124, 1
  %vm126 = vmand %vm120, %vm125
  %128 = vset.pattern.permute.xlu0 0
  %129 = vperm.xlu0 %128, %v112
  %v130 = vpop.permute.xlu0 %129
  %v132 = vmul.f32 %v117, %v130
  %134 = vset.pattern.permute.xlu0 0
  %135 = vperm.xlu0 %134, %v113
  %v136 = vpop.permute.xlu0 %135
  %v138 = vadd.f32 %v132, %v136
  %vm139 = vcmp.ge.f32.partialorder %v138, 0.0
  %v140 = vmul.f32 %v138, 0.2
  %v141 = vsel %vm139, %v138, %v140
  %v142 = vsel %vm126, %v141, 0.0
  %v143 = vpack.c.bf16 %v142, %v142
  %144 = vst [vmem:[#allocation2] sm:$0x3] %v143
  %v145 = vld [vmem:[%s92] sm:$0xff]
  %v146 = vld [vmem:[%s92 + $0x8] sm:$0xff]
  %v147 = vunpack.c.l.bf16 %v145
  %v148 = vunpack.c.h.bf16 %v145
  %v149 = vunpack.c.l.bf16 %v146
  %v150 = vunpack.c.h.bf16 %v146
  %v151 = vadd.s32 %v119, 128
  %v152 = vadd.s32 %v119, 256
  %v153 = vadd.s32 %v119, 384
  %v154 = vadd.s32 %v119, 512
  %v155 = vadd.s32 %v119, 640
  %v156 = vadd.s32 %v119, 768
  %v157 = vadd.s32 %v119, 896
  %vm158 = vcmp.eq.f32.partialorder %v147, %v147
  %vm159 = vcmp.eq.f32.partialorder %v148, %v148
  %vm160 = vcmp.eq.f32.partialorder %v149, %v149
  %vm161 = vcmp.eq.f32.partialorder %v150, %v150
  %vm162 = vcmp.ge.s32.totalorder %v119, 0
  %vm163 = vcmp.ge.s32.totalorder %v151, 0
  %vm164 = vcmp.ge.s32.totalorder %v152, 0
  %vm165 = vcmp.ge.s32.totalorder %v153, 0
  %vm166 = vcmp.ge.s32.totalorder %v154, 0
  %vm167 = vcmp.ge.s32.totalorder %v155, 0
  %vm168 = vcmp.ge.s32.totalorder %v156, 0
  %vm169 = vcmp.ge.s32.totalorder %v157, 0
  %v170 = vsel %vm162, 1, 0
  %v171 = vsel %vm163, 1, 0
  %v172 = vsel %vm164, 1, 0
  %v173 = vsel %vm165, 1, 0
  %v174 = vsel %vm166, 1, 0
  %v175 = vsel %vm167, 1, 0
  %v176 = vsel %vm168, 1, 0
  %v177 = vsel %vm169, 1, 0
  %vm178 = vcmp.eq.s32.totalorder %v170, 1
  %vm179 = vcmp.eq.s32.totalorder %v171, 1
  %vm180 = vcmp.eq.s32.totalorder %v172, 1
  %vm181 = vcmp.eq.s32.totalorder %v173, 1
  %vm182 = vcmp.eq.s32.totalorder %v174, 1
  %vm183 = vcmp.eq.s32.totalorder %v175, 1
  %vm184 = vcmp.eq.s32.totalorder %v176, 1
  %vm185 = vcmp.eq.s32.totalorder %v177, 1
  %v186 = vsel %vm178, 1, 0
  %v187 = vsel %vm179, 1, 0
  %v188 = vsel %vm180, 1, 0
  %v189 = vsel %vm181, 1, 0
  %v190 = vsel %vm182, 1, 0
  %v191 = vsel %vm183, 1, 0
  %v192 = vsel %vm184, 1, 0
  %v193 = vsel %vm185, 1, 0
  %v194 = vcombine.low %v186, %v187
  %v195 = vcombine.low %v188, %v189
  %v196 = vcombine.low %v190, %v191
  %v197 = vcombine.low %v192, %v193
  %vm198 = vcmp.ne.s32.totalorder %v194, 0
  %vm199 = vcmp.ne.s32.totalorder %v195, 0
  %vm200 = vcmp.ne.s32.totalorder %v196, 0
  %vm201 = vcmp.ne.s32.totalorder %v197, 0
  %vm202 = vmand %vm158, %vm198
  %vm203 = vmand %vm159, %vm199
  %vm204 = vmand %vm160, %vm200
  %vm205 = vmand %vm161, %vm201
  %v207 = vunpack.c.l.s4 839922192
  %v208 = vunpack.c.0.s8 %v207
  %v209 = vlaneseq
  %v210 = vshrl.u32 %v209, 7
  %v211 = vsub.s32 %v208, %v210
  %v212 = vrot.slane %v130, %v211
  %v214 = vmul.f32 %v147, %v212
  %v215 = vmul.f32 %v148, %v212
  %v216 = vmul.f32 %v149, %v212
  %v217 = vmul.f32 %v150, %v212
  %v219 = vunpack.c.l.s4 839922192
  %v220 = vunpack.c.0.s8 %v219
  %v221 = vlaneseq
  %v222 = vshrl.u32 %v221, 7
  %v223 = vsub.s32 %v220, %v222
  %v224 = vrot.slane %v136, %v223
  %v226 = vadd.f32 %v214, %v224
  %v227 = vadd.f32 %v215, %v224
  %v228 = vadd.f32 %v216, %v224
  %v229 = vadd.f32 %v217, %v224
  %vm230 = vcmp.ge.f32.partialorder %v226, 0.0
  %vm231 = vcmp.ge.f32.partialorder %v227, 0.0
  %vm232 = vcmp.ge.f32.partialorder %v228, 0.0
  %vm233 = vcmp.ge.f32.partialorder %v229, 0.0
  %v234 = vmul.f32 %v226, 0.2
  %v235 = vmul.f32 %v227, 0.2
  %v236 = vmul.f32 %v228, 0.2
  %v237 = vmul.f32 %v229, 0.2
  %v238 = vsel %vm230, %v226, %v234
  %v239 = vsel %vm231, %v227, %v235
  %v240 = vsel %vm232, %v228, %v236
  %v241 = vsel %vm233, %v229, %v237
  %v242 = vsel %vm202, %v238, 0.0
  %v243 = vsel %vm203, %v239, 0.0
  %v244 = vsel %vm204, %v240, 0.0
  %v245 = vsel %vm205, %v241, 0.0
  %v250 = vcombine.high %v242, %v242
  %v251 = vcombine.high %v243, %v243
  %v252 = vcombine.high %v244, %v244
  %v253 = vcombine.high %v245, %v245
  %v258 = vpack.c.bf16 %v242, %v242
  %v259 = vpack.c.bf16 %v250, %v250
  %v260 = vpack.c.bf16 %v243, %v243
  %v261 = vpack.c.bf16 %v251, %v251
  %v262 = vpack.c.bf16 %v244, %v244
  %v263 = vpack.c.bf16 %v252, %v252
  %v264 = vpack.c.bf16 %v245, %v245
  %v265 = vpack.c.bf16 %v253, %v253
  %v274 = vcombine.low %v258, %v259
  %v275 = vcombine.low %v260, %v261
  %v277 = vunpack.c.l.s4 1983009808
  %v278 = vunpack.c.0.s8 %v277
  %v279 = vlaneseq
  %v280 = vshrl.u32 %v279, 7
  %v281 = vsub.s32 %v278, %v280
  %v282 = vrot.slane %v274, %v281
  %v284 = vunpack.c.l.s4 1983009808
  %v285 = vunpack.c.0.s8 %v284
  %v286 = vlaneseq
  %v287 = vshrl.u32 %v286, 7
  %v288 = vsub.s32 %v285, %v287
  %v289 = vrot.slane %v275, %v288
  %v290 = vcombine.low %v282, %v289
  %v291 = vcombine.low %v262, %v263
  %v292 = vcombine.low %v264, %v265
  %v294 = vunpack.c.l.s4 1983009808
  %v295 = vunpack.c.0.s8 %v294
  %v296 = vlaneseq
  %v297 = vshrl.u32 %v296, 7
  %v298 = vsub.s32 %v295, %v297
  %v299 = vrot.slane %v291, %v298
  %v301 = vunpack.c.l.s4 1983009808
  %v302 = vunpack.c.0.s8 %v301
  %v303 = vlaneseq
  %v304 = vshrl.u32 %v303, 7
  %v305 = vsub.s32 %v302, %v304
  %v306 = vrot.slane %v292, %v305
  %v307 = vcombine.low %v299, %v306
  %310 = vst [vmem:[#allocation2 + $0x2] sm:$0xff] %v290
  %311 = vst [vmem:[#allocation2 + $0xa] sm:$0xff] %v307
  %v312 = vld [vmem:[%s100] sm:$0x3]
  %v313 = vunpack.c.l.bf16 %v312
  %vm314 = vcmp.eq.f32.partialorder %v313, %v313
  %vm315 = vmand %vm314, %vm125
  %v316 = vmul.f32 %v313, %v130
  %v317 = vadd.f32 %v316, %v136
  %vm318 = vcmp.ge.f32.partialorder %v317, 0.0
  %v319 = vmul.f32 %v317, 0.2
  %v320 = vsel %vm318, %v317, %v319
  %v321 = vsel %vm315, %v320, 0.0
  %v322 = vpack.c.bf16 %v321, %v321
  %323 = vst [vmem:[#allocation2 + $0x12] sm:$0x3] %v322
  %v324 = vld [vmem:[#allocation2] sm:$0xff]
  %v325 = vld [vmem:[#allocation2 + $0x8] sm:$0xff]
  %v326 = vld [vmem:[#allocation2 + $0x10] sm:$0xf]
  %v327 = vld [vmem:[%s0] sm:$0x3]
  %s328 = scalar_lea.vmem %s0, 2
  %v329 = vld [vmem:[%s328] sm:$0x3]
  %v333 = vcombine.high %v324, %v324
  %v335 = vunpack.c.l.s4 1983009808
  %v336 = vunpack.c.0.s8 %v335
  %v337 = vlaneseq
  %v338 = vshrl.u32 %v337, 7
  %v339 = vsub.s32 %v336, %v338
  %v340 = vrot.slane %v324, %v339
  %v342 = vunpack.c.l.s4 1983009808
  %v343 = vunpack.c.0.s8 %v342
  %v344 = vlaneseq
  %v345 = vshrl.u32 %v344, 7
  %v346 = vsub.s32 %v343, %v345
  %v347 = vrot.slane %v333, %v346
  %v348 = vcombine.high %v340, %v340
  %v349 = vcombine.high %v347, %v347
  %v350 = vcombine.high %v325, %v325
  %v352 = vunpack.c.l.s4 1983009808
  %v353 = vunpack.c.0.s8 %v352
  %v354 = vlaneseq
  %v355 = vshrl.u32 %v354, 7
  %v356 = vsub.s32 %v353, %v355
  %v357 = vrot.slane %v325, %v356
  %v359 = vunpack.c.l.s4 1983009808
  %v360 = vunpack.c.0.s8 %v359
  %v361 = vlaneseq
  %v362 = vshrl.u32 %v361, 7
  %v363 = vsub.s32 %v360, %v362
  %v364 = vrot.slane %v350, %v363
  %v365 = vcombine.high %v357, %v357
  %v366 = vcombine.high %v364, %v364
  %v368 = vunpack.c.l.s4 1983009808
  %v369 = vunpack.c.0.s8 %v368
  %v370 = vlaneseq
  %v371 = vshrl.u32 %v370, 7
  %v372 = vsub.s32 %v369, %v371
  %v373 = vrot.slane %v326, %v372
  %374 = vrot.lane.b32.xlu0 %v340, 18
  %v375 = vpop.permute.xlu0 %374
  %376 = vrot.lane.b32.xlu0 %v348, 18
  %v377 = vpop.permute.xlu0 %376
  %378 = vrot.lane.b32.xlu0 %v347, 18
  %v379 = vpop.permute.xlu0 %378
  %380 = vrot.lane.b32.xlu0 %v349, 18
  %v381 = vpop.permute.xlu0 %380
  %382 = vrot.lane.b32.xlu0 %v357, 18
  %v383 = vpop.permute.xlu0 %382
  %384 = vrot.lane.b32.xlu0 %v365, 18
  %v385 = vpop.permute.xlu0 %384
  %386 = vrot.lane.b32.xlu0 %v364, 18
  %v387 = vpop.permute.xlu0 %386
  %388 = vrot.lane.b32.xlu0 %v366, 18
  %v389 = vpop.permute.xlu0 %388
  %390 = vrot.lane.b32.xlu0 %v373, 18
  %v391 = vpop.permute.xlu0 %390
  %vm392 = vcmask 146432
  %v393 = vsel %vm392, %v375, %v377
  %v394 = vsel %vm392, %v377, %v379
  %v395 = vsel %vm392, %v379, %v381
  %v396 = vsel %vm392, %v381, %v383
  %v397 = vsel %vm392, %v383, %v385
  %v398 = vsel %vm392, %v385, %v387
  %v399 = vsel %vm392, %v387, %v389
  %v400 = vsel %vm392, %v389, %v391
  %vm401 = vcmask 31744
  %v403 = vsel %vm401, %v329, 0
  %vm405 = vcmask 1041408
  %v407 = vsel %vm405, %v393, 0
  %v410 = vsel %vm405, %v394, 0
  %v413 = vsel %vm405, %v395, 0
  %v416 = vsel %vm405, %v396, 0
  %v419 = vsel %vm405, %v397, 0
  %v422 = vsel %vm405, %v398, 0
  %v425 = vsel %vm405, %v399, 0
  %v428 = vsel %vm405, %v400, 0
  %430 = vmatprep.subr.bf16.mxu0 %v410
  %431 = vmatpush1.bf16.msra.mxu0 %v407
  %432 = vmatprep.subr.bf16.mxu0 0
  %433 = vmatpush1.bf16.msra.mxu0 0
  %434 = vmatprep.subr.bf16.mxu0 0
  %435 = vmatpush1.bf16.msra.mxu0 0
  %436 = vmatprep.subr.bf16.mxu0 0
  %437 = vmatpush1.bf16.msra.mxu0 0
  %438 = vmatprep.subr.bf16.mxu0 0
  %439 = vmatpush1.bf16.msra.mxu0 0
  %440 = vmatprep.subr.bf16.mxu0 0
  %441 = vmatpush1.bf16.msra.mxu0 0
  %442 = vmatprep.subr.bf16.mxu0 0
  %443 = vmatpush1.bf16.msra.mxu0 0
  %444 = vmatprep.subr.bf16.mxu0 0
  %445 = vmatpush1.bf16.msra.mxu0 0
  %446 = vmatprep.subr.bf16.mxu0 0
  %447 = vmatpush1.bf16.msra.mxu0 0
  %448 = vmatprep.subr.bf16.mxu0 0
  %449 = vmatpush1.bf16.msra.mxu0 0
  %450 = vmatprep.subr.bf16.mxu0 0
  %451 = vmatpush1.bf16.msra.mxu0 0
  %452 = vmatprep.subr.bf16.mxu0 0
  %453 = vmatpush1.bf16.msra.mxu0 0
  %454 = vmatprep.subr.bf16.mxu0 0
  %455 = vmatpush1.bf16.msra.mxu0 0
  %456 = vmatprep.subr.bf16.mxu0 0
  %457 = vmatpush1.bf16.msra.mxu0 0
  %458 = vmatprep.subr.bf16.mxu0 0
  %459 = vmatpush1.bf16.msra.mxu0 0
  %460 = vmatprep.subr.bf16.mxu0 0
  %461 = vmatpush1.bf16.msra.mxu0 0
  %462 = vmatprep.mubr.bf16.mxu0 0
  %463 = vmatmul.mubr.bf16.gmra.mrb[0].mxu0 %v403
  %v464 = vpop.f32.mrb[0].mxu0
  %v465 = vadd.f32 0.0, %v464
  %v466 = vpop.f32.mrb[0].mxu0
  %v467 = vadd.f32 0.0, %v466
  %v468 = vpop.f32.mrb[0].mxu0
  %v469 = vpop.f32.mrb[0].mxu0
  %470 = vdwg.mxu0
  %471 = vmatprep.subr.bf16.mxu0 %v416
  %472 = vmatpush1.bf16.msra.mxu0 %v413
  %473 = vmatprep.subr.bf16.mxu0 0
  %474 = vmatpush1.bf16.msra.mxu0 0
  %475 = vmatprep.subr.bf16.mxu0 0
  %476 = vmatpush1.bf16.msra.mxu0 0
  %477 = vmatprep.subr.bf16.mxu0 0
  %478 = vmatpush1.bf16.msra.mxu0 0
  %479 = vmatprep.subr.bf16.mxu0 0
  %480 = vmatpush1.bf16.msra.mxu0 0
  %481 = vmatprep.subr.bf16.mxu0 0
  %482 = vmatpush1.bf16.msra.mxu0 0
  %483 = vmatprep.subr.bf16.mxu0 0
  %484 = vmatpush1.bf16.msra.mxu0 0
  %485 = vmatprep.subr.bf16.mxu0 0
  %486 = vmatpush1.bf16.msra.mxu0 0
  %487 = vmatprep.subr.bf16.mxu0 0
  %488 = vmatpush1.bf16.msra.mxu0 0
  %489 = vmatprep.subr.bf16.mxu0 0
  %490 = vmatpush1.bf16.msra.mxu0 0
  %491 = vmatprep.subr.bf16.mxu0 0
  %492 = vmatpush1.bf16.msra.mxu0 0
  %493 = vmatprep.subr.bf16.mxu0 0
  %494 = vmatpush1.bf16.msra.mxu0 0
  %495 = vmatprep.subr.bf16.mxu0 0
  %496 = vmatpush1.bf16.msra.mxu0 0
  %497 = vmatprep.subr.bf16.mxu0 0
  %498 = vmatpush1.bf16.msra.mxu0 0
  %499 = vmatprep.subr.bf16.mxu0 0
  %500 = vmatpush1.bf16.msra.mxu0 0
  %501 = vmatprep.subr.bf16.mxu0 0
  %502 = vmatpush1.bf16.msra.mxu0 0
  %503 = vmatprep.mubr.bf16.mxu0 0
  %504 = vmatmul.mubr.bf16.gmra.mrb[0].mxu0 %v403
  %v505 = vpop.f32.mrb[0].mxu0
  %v506 = vadd.f32 0.0, %v505
  %v507 = vpop.f32.mrb[0].mxu0
  %v508 = vadd.f32 0.0, %v507
  %v509 = vpop.f32.mrb[0].mxu0
  %v510 = vpop.f32.mrb[0].mxu0
  %511 = vdwg.mxu0
  %512 = vmatprep.subr.bf16.mxu0 %v422
  %513 = vmatpush1.bf16.msra.mxu0 %v419
  %514 = vmatprep.subr.bf16.mxu0 0
  %515 = vmatpush1.bf16.msra.mxu0 0
  %516 = vmatprep.subr.bf16.mxu0 0
  %517 = vmatpush1.bf16.msra.mxu0 0
  %518 = vmatprep.subr.bf16.mxu0 0
  %519 = vmatpush1.bf16.msra.mxu0 0
  %520 = vmatprep.subr.bf16.mxu0 0
  %521 = vmatpush1.bf16.msra.mxu0 0
  %522 = vmatprep.subr.bf16.mxu0 0
  %523 = vmatpush1.bf16.msra.mxu0 0
  %524 = vmatprep.subr.bf16.mxu0 0
  %525 = vmatpush1.bf16.msra.mxu0 0
  %526 = vmatprep.subr.bf16.mxu0 0
  %527 = vmatpush1.bf16.msra.mxu0 0
  %528 = vmatprep.subr.bf16.mxu0 0
  %529 = vmatpush1.bf16.msra.mxu0 0
  %530 = vmatprep.subr.bf16.mxu0 0
  %531 = vmatpush1.bf16.msra.mxu0 0
  %532 = vmatprep.subr.bf16.mxu0 0
  %533 = vmatpush1.bf16.msra.mxu0 0
  %534 = vmatprep.subr.bf16.mxu0 0
  %535 = vmatpush1.bf16.msra.mxu0 0
  %536 = vmatprep.subr.bf16.mxu0 0
  %537 = vmatpush1.bf16.msra.mxu0 0
  %538 = vmatprep.subr.bf16.mxu0 0
  %539 = vmatpush1.bf16.msra.mxu0 0
  %540 = vmatprep.subr.bf16.mxu0 0
  %541 = vmatpush1.bf16.msra.mxu0 0
  %542 = vmatprep.subr.bf16.mxu0 0
  %543 = vmatpush1.bf16.msra.mxu0 0
  %544 = vmatprep.mubr.bf16.mxu0 0
  %545 = vmatmul.mubr.bf16.gmra.mrb[0].mxu0 %v403
  %v546 = vpop.f32.mrb[0].mxu0
  %v547 = vadd.f32 0.0, %v546
  %v548 = vpop.f32.mrb[0].mxu0
  %v549 = vadd.f32 0.0, %v548
  %v550 = vpop.f32.mrb[0].mxu0
  %v551 = vpop.f32.mrb[0].mxu0
  %552 = vdwg.mxu0
  %553 = vmatprep.subr.bf16.mxu0 %v428
  %554 = vmatpush1.bf16.msra.mxu0 %v425
  %555 = vmatprep.subr.bf16.mxu0 0
  %556 = vmatpush1.bf16.msra.mxu0 0
  %557 = vmatprep.subr.bf16.mxu0 0
  %558 = vmatpush1.bf16.msra.mxu0 0
  %559 = vmatprep.subr.bf16.mxu0 0
  %560 = vmatpush1.bf16.msra.mxu0 0
  %561 = vmatprep.subr.bf16.mxu0 0
  %562 = vmatpush1.bf16.msra.mxu0 0
  %563 = vmatprep.subr.bf16.mxu0 0
  %564 = vmatpush1.bf16.msra.mxu0 0
  %565 = vmatprep.subr.bf16.mxu0 0
  %566 = vmatpush1.bf16.msra.mxu0 0
  %567 = vmatprep.subr.bf16.mxu0 0
  %568 = vmatpush1.bf16.msra.mxu0 0
  %569 = vmatprep.subr.bf16.mxu0 0
  %570 = vmatpush1.bf16.msra.mxu0 0
  %571 = vmatprep.subr.bf16.mxu0 0
  %572 = vmatpush1.bf16.msra.mxu0 0
  %573 = vmatprep.subr.bf16.mxu0 0
  %574 = vmatpush1.bf16.msra.mxu0 0
  %575 = vmatprep.subr.bf16.mxu0 0
  %576 = vmatpush1.bf16.msra.mxu0 0
  %577 = vmatprep.subr.bf16.mxu0 0
  %578 = vmatpush1.bf16.msra.mxu0 0
  %579 = vmatprep.subr.bf16.mxu0 0
  %580 = vmatpush1.bf16.msra.mxu0 0
  %581 = vmatprep.subr.bf16.mxu0 0
  %582 = vmatpush1.bf16.msra.mxu0 0
  %583 = vmatprep.subr.bf16.mxu0 0
  %584 = vmatpush1.bf16.msra.mxu0 0
  %585 = vmatprep.mubr.bf16.mxu0 0
  %586 = vmatmul.mubr.bf16.gmra.mrb[0].mxu0 %v403
  %v587 = vpop.f32.mrb[0].mxu0
  %v588 = vadd.f32 0.0, %v587
  %v589 = vpop.f32.mrb[0].mxu0
  %v590 = vadd.f32 0.0, %v589
  %v591 = vpop.f32.mrb[0].mxu0
  %v592 = vpop.f32.mrb[0].mxu0
  %593 = vdwg.mxu0
  %594 = vrot.lane.b32.xlu0 %v340, 19
  %v595 = vpop.permute.xlu0 %594
  %596 = vrot.lane.b32.xlu0 %v348, 19
  %v597 = vpop.permute.xlu0 %596
  %598 = vrot.lane.b32.xlu0 %v347, 19
  %v599 = vpop.permute.xlu0 %598
  %600 = vrot.lane.b32.xlu0 %v349, 19
  %v601 = vpop.permute.xlu0 %600
  %602 = vrot.lane.b32.xlu0 %v357, 19
  %v603 = vpop.permute.xlu0 %602
  %604 = vrot.lane.b32.xlu0 %v365, 19
  %v605 = vpop.permute.xlu0 %604
  %606 = vrot.lane.b32.xlu0 %v364, 19
  %v607 = vpop.permute.xlu0 %606
  %608 = vrot.lane.b32.xlu0 %v366, 19
  %v609 = vpop.permute.xlu0 %608
  %610 = vrot.lane.b32.xlu0 %v373, 19
  %v611 = vpop.permute.xlu0 %610
  %vm612 = vcmask 154624
  %v613 = vsel %vm612, %v595, %v597
  %v614 = vsel %vm612, %v597, %v599
  %v615 = vsel %vm612, %v599, %v601
  %v616 = vsel %vm612, %v601, %v603
  %v617 = vsel %vm612, %v603, %v605
  %v618 = vsel %vm612, %v605, %v607
  %v619 = vsel %vm612, %v607, %v609
  %v620 = vsel %vm612, %v609, %v611
  %v622 = vsel %vm401, %v327, 0
  %v625 = vsel %vm405, %v613, 0
  %v628 = vsel %vm405, %v614, 0
  %v631 = vsel %vm405, %v615, 0
  %v634 = vsel %vm405, %v616, 0
  %v637 = vsel %vm405, %v617, 0
  %v640 = vsel %vm405, %v618, 0
  %v643 = vsel %vm405, %v619, 0
  %v646 = vsel %vm405, %v620, 0
  %648 = vmatprep.subr.bf16.mxu0 %v628
  %649 = vmatpush1.bf16.msra.mxu0 %v625
  %650 = vmatprep.subr.bf16.mxu0 0
  %651 = vmatpush1.bf16.msra.mxu0 0
  %652 = vmatprep.subr.bf16.mxu0 0
  %653 = vmatpush1.bf16.msra.mxu0 0
  %654 = vmatprep.subr.bf16.mxu0 0
  %655 = vmatpush1.bf16.msra.mxu0 0
  %656 = vmatprep.subr.bf16.mxu0 0
  %657 = vmatpush1.bf16.msra.mxu0 0
  %658 = vmatprep.subr.bf16.mxu0 0
  %659 = vmatpush1.bf16.msra.mxu0 0
  %660 = vmatprep.subr.bf16.mxu0 0
  %661 = vmatpush1.bf16.msra.mxu0 0
  %662 = vmatprep.subr.bf16.mxu0 0
  %663 = vmatpush1.bf16.msra.mxu0 0
  %664 = vmatprep.subr.bf16.mxu0 0
  %665 = vmatpush1.bf16.msra.mxu0 0
  %666 = vmatprep.subr.bf16.mxu0 0
  %667 = vmatpush1.bf16.msra.mxu0 0
  %668 = vmatprep.subr.bf16.mxu0 0
  %669 = vmatpush1.bf16.msra.mxu0 0
  %670 = vmatprep.subr.bf16.mxu0 0
  %671 = vmatpush1.bf16.msra.mxu0 0
  %672 = vmatprep.subr.bf16.mxu0 0
  %673 = vmatpush1.bf16.msra.mxu0 0
  %674 = vmatprep.subr.bf16.mxu0 0
  %675 = vmatpush1.bf16.msra.mxu0 0
  %676 = vmatprep.subr.bf16.mxu0 0
  %677 = vmatpush1.bf16.msra.mxu0 0
  %678 = vmatprep.subr.bf16.mxu0 0
  %679 = vmatpush1.bf16.msra.mxu0 0
  %680 = vmatprep.mubr.bf16.mxu0 0
  %681 = vmatmul.mubr.bf16.gmra.mrb[0].mxu0 %v622
  %v682 = vpop.f32.mrb[0].mxu0
  %v683 = vadd.f32 %v465, %v682
  %v684 = vpop.f32.mrb[0].mxu0
  %v685 = vadd.f32 %v467, %v684
  %v686 = vpop.f32.mrb[0].mxu0
  %v687 = vpop.f32.mrb[0].mxu0
  %688 = vdwg.mxu0
  %689 = vmatprep.subr.bf16.mxu0 %v634
  %690 = vmatpush1.bf16.msra.mxu0 %v631
  %691 = vmatprep.subr.bf16.mxu0 0
  %692 = vmatpush1.bf16.msra.mxu0 0
  %693 = vmatprep.subr.bf16.mxu0 0
  %694 = vmatpush1.bf16.msra.mxu0 0
  %695 = vmatprep.subr.bf16.mxu0 0
  %696 = vmatpush1.bf16.msra.mxu0 0
  %697 = vmatprep.subr.bf16.mxu0 0
  %698 = vmatpush1.bf16.msra.mxu0 0
  %699 = vmatprep.subr.bf16.mxu0 0
  %700 = vmatpush1.bf16.msra.mxu0 0
  %701 = vmatprep.subr.bf16.mxu0 0
  %702 = vmatpush1.bf16.msra.mxu0 0
  %703 = vmatprep.subr.bf16.mxu0 0
  %704 = vmatpush1.bf16.msra.mxu0 0
  %705 = vmatprep.subr.bf16.mxu0 0
  %706 = vmatpush1.bf16.msra.mxu0 0
  %707 = vmatprep.subr.bf16.mxu0 0
  %708 = vmatpush1.bf16.msra.mxu0 0
  %709 = vmatprep.subr.bf16.mxu0 0
  %710 = vmatpush1.bf16.msra.mxu0 0
  %711 = vmatprep.subr.bf16.mxu0 0
  %712 = vmatpush1.bf16.msra.mxu0 0
  %713 = vmatprep.subr.bf16.mxu0 0
  %714 = vmatpush1.bf16.msra.mxu0 0
  %715 = vmatprep.subr.bf16.mxu0 0
  %716 = vmatpush1.bf16.msra.mxu0 0
  %717 = vmatprep.subr.bf16.mxu0 0
  %718 = vmatpush1.bf16.msra.mxu0 0
  %719 = vmatprep.subr.bf16.mxu0 0
  %720 = vmatpush1.bf16.msra.mxu0 0
  %721 = vmatprep.mubr.bf16.mxu0 0
  %722 = vmatmul.mubr.bf16.gmra.mrb[0].mxu0 %v622
  %v723 = vpop.f32.mrb[0].mxu0
  %v724 = vadd.f32 %v506, %v723
  %v725 = vpop.f32.mrb[0].mxu0
  %v726 = vadd.f32 %v508, %v725
  %v727 = vpop.f32.mrb[0].mxu0
  %v728 = vpop.f32.mrb[0].mxu0
  %729 = vdwg.mxu0
  %730 = vmatprep.subr.bf16.mxu0 %v640
  %731 = vmatpush1.bf16.msra.mxu0 %v637
  %732 = vmatprep.subr.bf16.mxu0 0
  %733 = vmatpush1.bf16.msra.mxu0 0
  %734 = vmatprep.subr.bf16.mxu0 0
  %735 = vmatpush1.bf16.msra.mxu0 0
  %736 = vmatprep.subr.bf16.mxu0 0
  %737 = vmatpush1.bf16.msra.mxu0 0
  %738 = vmatprep.subr.bf16.mxu0 0
  %739 = vmatpush1.bf16.msra.mxu0 0
  %740 = vmatprep.subr.bf16.mxu0 0
  %741 = vmatpush1.bf16.msra.mxu0 0
  %742 = vmatprep.subr.bf16.mxu0 0
  %743 = vmatpush1.bf16.msra.mxu0 0
  %744 = vmatprep.subr.bf16.mxu0 0
  %745 = vmatpush1.bf16.msra.mxu0 0
  %746 = vmatprep.subr.bf16.mxu0 0
  %747 = vmatpush1.bf16.msra.mxu0 0
  %748 = vmatprep.subr.bf16.mxu0 0
  %749 = vmatpush1.bf16.msra.mxu0 0
  %750 = vmatprep.subr.bf16.mxu0 0
  %751 = vmatpush1.bf16.msra.mxu0 0
  %752 = vmatprep.subr.bf16.mxu0 0
  %753 = vmatpush1.bf16.msra.mxu0 0
  %754 = vmatprep.subr.bf16.mxu0 0
  %755 = vmatpush1.bf16.msra.mxu0 0
  %756 = vmatprep.subr.bf16.mxu0 0
  %757 = vmatpush1.bf16.msra.mxu0 0
  %758 = vmatprep.subr.bf16.mxu0 0
  %759 = vmatpush1.bf16.msra.mxu0 0
  %760 = vmatprep.subr.bf16.mxu0 0
  %761 = vmatpush1.bf16.msra.mxu0 0
  %762 = vmatprep.mubr.bf16.mxu0 0
  %763 = vmatmul.mubr.bf16.gmra.mrb[0].mxu0 %v622
  %v764 = vpop.f32.mrb[0].mxu0
  %v765 = vadd.f32 %v547, %v764
  %v766 = vpop.f32.mrb[0].mxu0
  %v767 = vadd.f32 %v549, %v766
  %v768 = vpop.f32.mrb[0].mxu0
  %v769 = vpop.f32.mrb[0].mxu0
  %770 = vdwg.mxu0
  %771 = vmatprep.subr.bf16.mxu0 %v646
  %772 = vmatpush1.bf16.msra.mxu0 %v643
  %773 = vmatprep.subr.bf16.mxu0 0
  %774 = vmatpush1.bf16.msra.mxu0 0
  %775 = vmatprep.subr.bf16.mxu0 0
  %776 = vmatpush1.bf16.msra.mxu0 0
  %777 = vmatprep.subr.bf16.mxu0 0
  %778 = vmatpush1.bf16.msra.mxu0 0
  %779 = vmatprep.subr.bf16.mxu0 0
  %780 = vmatpush1.bf16.msra.mxu0 0
  %781 = vmatprep.subr.bf16.mxu0 0
  %782 = vmatpush1.bf16.msra.mxu0 0
  %783 = vmatprep.subr.bf16.mxu0 0
  %784 = vmatpush1.bf16.msra.mxu0 0
  %785 = vmatprep.subr.bf16.mxu0 0
  %786 = vmatpush1.bf16.msra.mxu0 0
  %787 = vmatprep.subr.bf16.mxu0 0
  %788 = vmatpush1.bf16.msra.mxu0 0
  %789 = vmatprep.subr.bf16.mxu0 0
  %790 = vmatpush1.bf16.msra.mxu0 0
  %791 = vmatprep.subr.bf16.mxu0 0
  %792 = vmatpush1.bf16.msra.mxu0 0
  %793 = vmatprep.subr.bf16.mxu0 0
  %794 = vmatpush1.bf16.msra.mxu0 0
  %795 = vmatprep.subr.bf16.mxu0 0
  %796 = vmatpush1.bf16.msra.mxu0 0
  %797 = vmatprep.subr.bf16.mxu0 0
  %798 = vmatpush1.bf16.msra.mxu0 0
  %799 = vmatprep.subr.bf16.mxu0 0
  %800 = vmatpush1.bf16.msra.mxu0 0
  %801 = vmatprep.subr.bf16.mxu0 0
  %802 = vmatpush1.bf16.msra.mxu0 0
  %803 = vmatprep.mubr.bf16.mxu0 0
  %804 = vmatmul.mubr.bf16.gmra.mrb[0].mxu0 %v622
  %v805 = vpop.f32.mrb[0].mxu0
  %v806 = vadd.f32 %v588, %v805
  %v807 = vpop.f32.mrb[0].mxu0
  %v808 = vadd.f32 %v590, %v807
  %v809 = vpop.f32.mrb[0].mxu0
  %v810 = vpop.f32.mrb[0].mxu0
  %811 = vdwg.mxu0
  %s812 = scalar_lea.vmem %s0, 4
  %v813 = vld [vmem:[%s812] sm:$0x3]
  %814 = vrot.lane.b32.xlu0 %v340, 17
  %v815 = vpop.permute.xlu0 %814
  %816 = vrot.lane.b32.xlu0 %v348, 17
  %v817 = vpop.permute.xlu0 %816
  %818 = vrot.lane.b32.xlu0 %v347, 17
  %v819 = vpop.permute.xlu0 %818
  %820 = vrot.lane.b32.xlu0 %v349, 17
  %v821 = vpop.permute.xlu0 %820
  %822 = vrot.lane.b32.xlu0 %v357, 17
  %v823 = vpop.permute.xlu0 %822
  %824 = vrot.lane.b32.xlu0 %v365, 17
  %v825 = vpop.permute.xlu0 %824
  %826 = vrot.lane.b32.xlu0 %v364, 17
  %v827 = vpop.permute.xlu0 %826
  %828 = vrot.lane.b32.xlu0 %v366, 17
  %v829 = vpop.permute.xlu0 %828
  %830 = vrot.lane.b32.xlu0 %v373, 17
  %v831 = vpop.permute.xlu0 %830
  %vm832 = vcmask 138240
  %v833 = vsel %vm832, %v815, %v817
  %v834 = vsel %vm832, %v817, %v819
  %v835 = vsel %vm832, %v819, %v821
  %v836 = vsel %vm832, %v821, %v823
  %v837 = vsel %vm832, %v823, %v825
  %v838 = vsel %vm832, %v825, %v827
  %v839 = vsel %vm832, %v827, %v829
  %v840 = vsel %vm832, %v829, %v831
  %v842 = vsel %vm401, %v813, 0
  %v845 = vsel %vm405, %v833, 0
  %v848 = vsel %vm405, %v834, 0
  %v851 = vsel %vm405, %v835, 0
  %v854 = vsel %vm405, %v836, 0
  %v857 = vsel %vm405, %v837, 0
  %v860 = vsel %vm405, %v838, 0
  %v863 = vsel %vm405, %v839, 0
  %v866 = vsel %vm405, %v840, 0
  %868 = vmatprep.subr.bf16.mxu0 %v848
  %869 = vmatpush1.bf16.msra.mxu0 %v845
  %870 = vmatprep.subr.bf16.mxu0 0
  %871 = vmatpush1.bf16.msra.mxu0 0
  %872 = vmatprep.subr.bf16.mxu0 0
  %873 = vmatpush1.bf16.msra.mxu0 0
  %874 = vmatprep.subr.bf16.mxu0 0
  %875 = vmatpush1.bf16.msra.mxu0 0
  %876 = vmatprep.subr.bf16.mxu0 0
  %877 = vmatpush1.bf16.msra.mxu0 0
  %878 = vmatprep.subr.bf16.mxu0 0
  %879 = vmatpush1.bf16.msra.mxu0 0
  %880 = vmatprep.subr.bf16.mxu0 0
  %881 = vmatpush1.bf16.msra.mxu0 0
  %882 = vmatprep.subr.bf16.mxu0 0
  %883 = vmatpush1.bf16.msra.mxu0 0
  %884 = vmatprep.subr.bf16.mxu0 0
  %885 = vmatpush1.bf16.msra.mxu0 0
  %886 = vmatprep.subr.bf16.mxu0 0
  %887 = vmatpush1.bf16.msra.mxu0 0
  %888 = vmatprep.subr.bf16.mxu0 0
  %889 = vmatpush1.bf16.msra.mxu0 0
  %890 = vmatprep.subr.bf16.mxu0 0
  %891 = vmatpush1.bf16.msra.mxu0 0
  %892 = vmatprep.subr.bf16.mxu0 0
  %893 = vmatpush1.bf16.msra.mxu0 0
  %894 = vmatprep.subr.bf16.mxu0 0
  %895 = vmatpush1.bf16.msra.mxu0 0
  %896 = vmatprep.subr.bf16.mxu0 0
  %897 = vmatpush1.bf16.msra.mxu0 0
  %898 = vmatprep.subr.bf16.mxu0 0
  %899 = vmatpush1.bf16.msra.mxu0 0
  %900 = vmatprep.mubr.bf16.mxu0 0
  %901 = vmatmul.mubr.bf16.gmra.mrb[0].mxu0 %v842
  %v902 = vpop.f32.mrb[0].mxu0
  %v903 = vadd.f32 0.0, %v902
  %v904 = vpop.f32.mrb[0].mxu0
  %v905 = vadd.f32 0.0, %v904
  %v906 = vpop.f32.mrb[0].mxu0
  %v907 = vpop.f32.mrb[0].mxu0
  %908 = vdwg.mxu0
  %909 = vmatprep.subr.bf16.mxu0 %v854
  %910 = vmatpush1.bf16.msra.mxu0 %v851
  %911 = vmatprep.subr.bf16.mxu0 0
  %912 = vmatpush1.bf16.msra.mxu0 0
  %913 = vmatprep.subr.bf16.mxu0 0
  %914 = vmatpush1.bf16.msra.mxu0 0
  %915 = vmatprep.subr.bf16.mxu0 0
  %916 = vmatpush1.bf16.msra.mxu0 0
  %917 = vmatprep.subr.bf16.mxu0 0
  %918 = vmatpush1.bf16.msra.mxu0 0
  %919 = vmatprep.subr.bf16.mxu0 0
  %920 = vmatpush1.bf16.msra.mxu0 0
  %921 = vmatprep.subr.bf16.mxu0 0
  %922 = vmatpush1.bf16.msra.mxu0 0
  %923 = vmatprep.subr.bf16.mxu0 0
  %924 = vmatpush1.bf16.msra.mxu0 0
  %925 = vmatprep.subr.bf16.mxu0 0
  %926 = vmatpush1.bf16.msra.mxu0 0
  %927 = vmatprep.subr.bf16.mxu0 0
  %928 = vmatpush1.bf16.msra.mxu0 0
  %929 = vmatprep.subr.bf16.mxu0 0
  %930 = vmatpush1.bf16.msra.mxu0 0
  %931 = vmatprep.subr.bf16.mxu0 0
  %932 = vmatpush1.bf16.msra.mxu0 0
  %933 = vmatprep.subr.bf16.mxu0 0
  %934 = vmatpush1.bf16.msra.mxu0 0
  %935 = vmatprep.subr.bf16.mxu0 0
  %936 = vmatpush1.bf16.msra.mxu0 0
  %937 = vmatprep.subr.bf16.mxu0 0
  %938 = vmatpush1.bf16.msra.mxu0 0
  %939 = vmatprep.subr.bf16.mxu0 0
  %940 = vmatpush1.bf16.msra.mxu0 0
  %941 = vmatprep.mubr.bf16.mxu0 0
  %942 = vmatmul.mubr.bf16.gmra.mrb[0].mxu0 %v842
  %v943 = vpop.f32.mrb[0].mxu0
  %v944 = vadd.f32 0.0, %v943
  %v945 = vpop.f32.mrb[0].mxu0
  %v946 = vadd.f32 0.0, %v945
  %v947 = vpop.f32.mrb[0].mxu0
  %v948 = vpop.f32.mrb[0].mxu0
  %949 = vdwg.mxu0
  %950 = vmatprep.subr.bf16.mxu0 %v860
  %951 = vmatpush1.bf16.msra.mxu0 %v857
  %952 = vmatprep.subr.bf16.mxu0 0
  %953 = vmatpush1.bf16.msra.mxu0 0
  %954 = vmatprep.subr.bf16.mxu0 0
  %955 = vmatpush1.bf16.msra.mxu0 0
  %956 = vmatprep.subr.bf16.mxu0 0
  %957 = vmatpush1.bf16.msra.mxu0 0
  %958 = vmatprep.subr.bf16.mxu0 0
  %959 = vmatpush1.bf16.msra.mxu0 0
  %960 = vmatprep.subr.bf16.mxu0 0
  %961 = vmatpush1.bf16.msra.mxu0 0
  %962 = vmatprep.subr.bf16.mxu0 0
  %963 = vmatpush1.bf16.msra.mxu0 0
  %964 = vmatprep.subr.bf16.mxu0 0
  %965 = vmatpush1.bf16.msra.mxu0 0
  %966 = vmatprep.subr.bf16.mxu0 0
  %967 = vmatpush1.bf16.msra.mxu0 0
  %968 = vmatprep.subr.bf16.mxu0 0
  %969 = vmatpush1.bf16.msra.mxu0 0
  %970 = vmatprep.subr.bf16.mxu0 0
  %971 = vmatpush1.bf16.msra.mxu0 0
  %972 = vmatprep.subr.bf16.mxu0 0
  %973 = vmatpush1.bf16.msra.mxu0 0
  %974 = vmatprep.subr.bf16.mxu0 0
  %975 = vmatpush1.bf16.msra.mxu0 0
  %976 = vmatprep.subr.bf16.mxu0 0
  %977 = vmatpush1.bf16.msra.mxu0 0
  %978 = vmatprep.subr.bf16.mxu0 0
  %979 = vmatpush1.bf16.msra.mxu0 0
  %980 = vmatprep.subr.bf16.mxu0 0
  %981 = vmatpush1.bf16.msra.mxu0 0
  %982 = vmatprep.mubr.bf16.mxu0 0
  %983 = vmatmul.mubr.bf16.gmra.mrb[0].mxu0 %v842
  %v984 = vpop.f32.mrb[0].mxu0
  %v985 = vadd.f32 0.0, %v984
  %v986 = vpop.f32.mrb[0].mxu0
  %v987 = vadd.f32 0.0, %v986
  %v988 = vpop.f32.mrb[0].mxu0
  %v989 = vpop.f32.mrb[0].mxu0
  %990 = vdwg.mxu0
  %991 = vmatprep.subr.bf16.mxu0 %v866
  %992 = vmatpush1.bf16.msra.mxu0 %v863
  %993 = vmatprep.subr.bf16.mxu0 0
  %994 = vmatpush1.bf16.msra.mxu0 0
  %995 = vmatprep.subr.bf16.mxu0 0
  %996 = vmatpush1.bf16.msra.mxu0 0
  %997 = vmatprep.subr.bf16.mxu0 0
  %998 = vmatpush1.bf16.msra.mxu0 0
  %999 = vmatprep.subr.bf16.mxu0 0
  %1000 = vmatpush1.bf16.msra.mxu0 0
  %1001 = vmatprep.subr.bf16.mxu0 0
  %1002 = vmatpush1.bf16.msra.mxu0 0
  %1003 = vmatprep.subr.bf16.mxu0 0
  %1004 = vmatpush1.bf16.msra.mxu0 0
  %1005 = vmatprep.subr.bf16.mxu0 0
  %1006 = vmatpush1.bf16.msra.mxu0 0
  %1007 = vmatprep.subr.bf16.mxu0 0
  %1008 = vmatpush1.bf16.msra.mxu0 0
  %1009 = vmatprep.subr.bf16.mxu0 0
  %1010 = vmatpush1.bf16.msra.mxu0 0
  %1011 = vmatprep.subr.bf16.mxu0 0
  %1012 = vmatpush1.bf16.msra.mxu0 0
  %1013 = vmatprep.subr.bf16.mxu0 0
  %1014 = vmatpush1.bf16.msra.mxu0 0
  %1015 = vmatprep.subr.bf16.mxu0 0
  %1016 = vmatpush1.bf16.msra.mxu0 0
  %1017 = vmatprep.subr.bf16.mxu0 0
  %1018 = vmatpush1.bf16.msra.mxu0 0
  %1019 = vmatprep.subr.bf16.mxu0 0
  %1020 = vmatpush1.bf16.msra.mxu0 0
  %1021 = vmatprep.subr.bf16.mxu0 0
  %1022 = vmatpush1.bf16.msra.mxu0 0
  %1023 = vmatprep.mubr.bf16.mxu0 0
  %1024 = vmatmul.mubr.bf16.gmra.mrb[0].mxu0 %v842
  %v1025 = vpop.f32.mrb[0].mxu0
  %v1026 = vadd.f32 0.0, %v1025
  %v1027 = vpop.f32.mrb[0].mxu0
  %v1028 = vadd.f32 0.0, %v1027
  %v1029 = vpop.f32.mrb[0].mxu0
  %v1030 = vpop.f32.mrb[0].mxu0
  %1031 = vdwg.mxu0
  %v1032 = vadd.f32 %v683, %v903
  %v1033 = vadd.f32 %v685, %v905
  %v1034 = vadd.f32 %v724, %v944
  %v1035 = vadd.f32 %v726, %v946
  %v1036 = vadd.f32 %v765, %v985
  %v1037 = vadd.f32 %v767, %v987
  %v1038 = vadd.f32 %v806, %v1026
  %v1039 = vadd.f32 %v808, %v1028
  %s1040 = scalar_lea.vmem %s0, 6
  %v1041 = vld [vmem:[%s1040] sm:$0x3]
  %1042 = vrot.lane.b32.xlu0 %v340, 1
  %v1043 = vpop.permute.xlu0 %1042
  %1044 = vrot.lane.b32.xlu0 %v348, 1
  %v1045 = vpop.permute.xlu0 %1044
  %1046 = vrot.lane.b32.xlu0 %v347, 1
  %v1047 = vpop.permute.xlu0 %1046
  %1048 = vrot.lane.b32.xlu0 %v349, 1
  %v1049 = vpop.permute.xlu0 %1048
  %1050 = vrot.lane.b32.xlu0 %v357, 1
  %v1051 = vpop.permute.xlu0 %1050
  %1052 = vrot.lane.b32.xlu0 %v365, 1
  %v1053 = vpop.permute.xlu0 %1052
  %1054 = vrot.lane.b32.xlu0 %v364, 1
  %v1055 = vpop.permute.xlu0 %1054
  %1056 = vrot.lane.b32.xlu0 %v366, 1
  %v1057 = vpop.permute.xlu0 %1056
  %1058 = vrot.lane.b32.xlu0 %v373, 1
  %v1059 = vpop.permute.xlu0 %1058
  %vm1060 = vcmask 7168
  %v1061 = vsel %vm1060, %v1043, %v1045
  %v1062 = vsel %vm1060, %v1045, %v1047
  %v1063 = vsel %vm1060, %v1047, %v1049
  %v1064 = vsel %vm1060, %v1049, %v1051
  %v1065 = vsel %vm1060, %v1051, %v1053
  %v1066 = vsel %vm1060, %v1053, %v1055
  %v1067 = vsel %vm1060, %v1055, %v1057
  %v1068 = vsel %vm1060, %v1057, %v1059
  %v1070 = vsel %vm401, %v1041, 0
  %v1073 = vsel %vm405, %v1061, 0
  %v1076 = vsel %vm405, %v1062, 0
  %v1079 = vsel %vm405, %v1063, 0
  %v1082 = vsel %vm405, %v1064, 0
  %v1085 = vsel %vm405, %v1065, 0
  %v1088 = vsel %vm405, %v1066, 0
  %v1091 = vsel %vm405, %v1067, 0
  %v1094 = vsel %vm405, %v1068, 0
  %1096 = vmatprep.subr.bf16.mxu0 %v1076
  %1097 = vmatpush1.bf16.msra.mxu0 %v1073
  %1098 = vmatprep.subr.bf16.mxu0 0
  %1099 = vmatpush1.bf16.msra.mxu0 0
  %1100 = vmatprep.subr.bf16.mxu0 0
  %1101 = vmatpush1.bf16.msra.mxu0 0
  %1102 = vmatprep.subr.bf16.mxu0 0
  %1103 = vmatpush1.bf16.msra.mxu0 0
  %1104 = vmatprep.subr.bf16.mxu0 0
  %1105 = vmatpush1.bf16.msra.mxu0 0
  %1106 = vmatprep.subr.bf16.mxu0 0
  %1107 = vmatpush1.bf16.msra.mxu0 0
  %1108 = vmatprep.subr.bf16.mxu0 0
  %1109 = vmatpush1.bf16.msra.mxu0 0
  %1110 = vmatprep.subr.bf16.mxu0 0
  %1111 = vmatpush1.bf16.msra.mxu0 0
  %1112 = vmatprep.subr.bf16.mxu0 0
  %1113 = vmatpush1.bf16.msra.mxu0 0
  %1114 = vmatprep.subr.bf16.mxu0 0
  %1115 = vmatpush1.bf16.msra.mxu0 0
  %1116 = vmatprep.subr.bf16.mxu0 0
  %1117 = vmatpush1.bf16.msra.mxu0 0
  %1118 = vmatprep.subr.bf16.mxu0 0
  %1119 = vmatpush1.bf16.msra.mxu0 0
  %1120 = vmatprep.subr.bf16.mxu0 0
  %1121 = vmatpush1.bf16.msra.mxu0 0
  %1122 = vmatprep.subr.bf16.mxu0 0
  %1123 = vmatpush1.bf16.msra.mxu0 0
  %1124 = vmatprep.subr.bf16.mxu0 0
  %1125 = vmatpush1.bf16.msra.mxu0 0
  %1126 = vmatprep.subr.bf16.mxu0 0
  %1127 = vmatpush1.bf16.msra.mxu0 0
  %1128 = vmatprep.mubr.bf16.mxu0 0
  %1129 = vmatmul.mubr.bf16.gmra.mrb[0].mxu0 %v1070
  %v1130 = vpop.f32.mrb[0].mxu0
  %v1131 = vadd.f32 0.0, %v1130
  %v1132 = vpop.f32.mrb[0].mxu0
  %v1133 = vadd.f32 0.0, %v1132
  %v1134 = vpop.f32.mrb[0].mxu0
  %v1135 = vpop.f32.mrb[0].mxu0
  %1136 = vdwg.mxu0
  %1137 = vmatprep.subr.bf16.mxu0 %v1082
  %1138 = vmatpush1.bf16.msra.mxu0 %v1079
  %1139 = vmatprep.subr.bf16.mxu0 0
  %1140 = vmatpush1.bf16.msra.mxu0 0
  %1141 = vmatprep.subr.bf16.mxu0 0
  %1142 = vmatpush1.bf16.msra.mxu0 0
  %1143 = vmatprep.subr.bf16.mxu0 0
  %1144 = vmatpush1.bf16.msra.mxu0 0
  %1145 = vmatprep.subr.bf16.mxu0 0
  %1146 = vmatpush1.bf16.msra.mxu0 0
  %1147 = vmatprep.subr.bf16.mxu0 0
  %1148 = vmatpush1.bf16.msra.mxu0 0
  %1149 = vmatprep.subr.bf16.mxu0 0
  %1150 = vmatpush1.bf16.msra.mxu0 0
  %1151 = vmatprep.subr.bf16.mxu0 0
  %1152 = vmatpush1.bf16.msra.mxu0 0
  %1153 = vmatprep.subr.bf16.mxu0 0
  %1154 = vmatpush1.bf16.msra.mxu0 0
  %1155 = vmatprep.subr.bf16.mxu0 0
  %1156 = vmatpush1.bf16.msra.mxu0 0
  %1157 = vmatprep.subr.bf16.mxu0 0
  %1158 = vmatpush1.bf16.msra.mxu0 0
  %1159 = vmatprep.subr.bf16.mxu0 0
  %1160 = vmatpush1.bf16.msra.mxu0 0
  %1161 = vmatprep.subr.bf16.mxu0 0
  %1162 = vmatpush1.bf16.msra.mxu0 0
  %1163 = vmatprep.subr.bf16.mxu0 0
  %1164 = vmatpush1.bf16.msra.mxu0 0
  %1165 = vmatprep.subr.bf16.mxu0 0
  %1166 = vmatpush1.bf16.msra.mxu0 0
  %1167 = vmatprep.subr.bf16.mxu0 0
  %1168 = vmatpush1.bf16.msra.mxu0 0
  %1169 = vmatprep.mubr.bf16.mxu0 0
  %1170 = vmatmul.mubr.bf16.gmra.mrb[0].mxu0 %v1070
  %v1171 = vpop.f32.mrb[0].mxu0
  %v1172 = vadd.f32 0.0, %v1171
  %v1173 = vpop.f32.mrb[0].mxu0
  %v1174 = vadd.f32 0.0, %v1173
  %v1175 = vpop.f32.mrb[0].mxu0
  %v1176 = vpop.f32.mrb[0].mxu0
  %1177 = vdwg.mxu0
  %1178 = vmatprep.subr.bf16.mxu0 %v1088
  %1179 = vmatpush1.bf16.msra.mxu0 %v1085
  %1180 = vmatprep.subr.bf16.mxu0 0
  %1181 = vmatpush1.bf16.msra.mxu0 0
  %1182 = vmatprep.subr.bf16.mxu0 0
  %1183 = vmatpush1.bf16.msra.mxu0 0
  %1184 = vmatprep.subr.bf16.mxu0 0
  %1185 = vmatpush1.bf16.msra.mxu0 0
  %1186 = vmatprep.subr.bf16.mxu0 0
  %1187 = vmatpush1.bf16.msra.mxu0 0
  %1188 = vmatprep.subr.bf16.mxu0 0
  %1189 = vmatpush1.bf16.msra.mxu0 0
  %1190 = vmatprep.subr.bf16.mxu0 0
  %1191 = vmatpush1.bf16.msra.mxu0 0
  %1192 = vmatprep.subr.bf16.mxu0 0
  %1193 = vmatpush1.bf16.msra.mxu0 0
  %1194 = vmatprep.subr.bf16.mxu0 0
  %1195 = vmatpush1.bf16.msra.mxu0 0
  %1196 = vmatprep.subr.bf16.mxu0 0
  %1197 = vmatpush1.bf16.msra.mxu0 0
  %1198 = vmatprep.subr.bf16.mxu0 0
  %1199 = vmatpush1.bf16.msra.mxu0 0
  %1200 = vmatprep.subr.bf16.mxu0 0
  %1201 = vmatpush1.bf16.msra.mxu0 0
  %1202 = vmatprep.subr.bf16.mxu0 0
  %1203 = vmatpush1.bf16.msra.mxu0 0
  %1204 = vmatprep.subr.bf16.mxu0 0
  %1205 = vmatpush1.bf16.msra.mxu0 0
  %1206 = vmatprep.subr.bf16.mxu0 0
  %1207 = vmatpush1.bf16.msra.mxu0 0
  %1208 = vmatprep.subr.bf16.mxu0 0
  %1209 = vmatpush1.bf16.msra.mxu0 0
  %1210 = vmatprep.mubr.bf16.mxu0 0
  %1211 = vmatmul.mubr.bf16.gmra.mrb[0].mxu0 %v1070
  %v1212 = vpop.f32.mrb[0].mxu0
  %v1213 = vadd.f32 0.0, %v1212
  %v1214 = vpop.f32.mrb[0].mxu0
  %v1215 = vadd.f32 0.0, %v1214
  %v1216 = vpop.f32.mrb[0].mxu0
  %v1217 = vpop.f32.mrb[0].mxu0
  %1218 = vdwg.mxu0
  %1219 = vmatprep.subr.bf16.mxu0 %v1094
  %1220 = vmatpush1.bf16.msra.mxu0 %v1091
  %1221 = vmatprep.subr.bf16.mxu0 0
  %1222 = vmatpush1.bf16.msra.mxu0 0
  %1223 = vmatprep.subr.bf16.mxu0 0
  %1224 = vmatpush1.bf16.msra.mxu0 0
  %1225 = vmatprep.subr.bf16.mxu0 0
  %1226 = vmatpush1.bf16.msra.mxu0 0
  %1227 = vmatprep.subr.bf16.mxu0 0
  %1228 = vmatpush1.bf16.msra.mxu0 0
  %1229 = vmatprep.subr.bf16.mxu0 0
  %1230 = vmatpush1.bf16.msra.mxu0 0
  %1231 = vmatprep.subr.bf16.mxu0 0
  %1232 = vmatpush1.bf16.msra.mxu0 0
  %1233 = vmatprep.subr.bf16.mxu0 0
  %1234 = vmatpush1.bf16.msra.mxu0 0
  %1235 = vmatprep.subr.bf16.mxu0 0
  %1236 = vmatpush1.bf16.msra.mxu0 0
  %1237 = vmatprep.subr.bf16.mxu0 0
  %1238 = vmatpush1.bf16.msra.mxu0 0
  %1239 = vmatprep.subr.bf16.mxu0 0
  %1240 = vmatpush1.bf16.msra.mxu0 0
  %1241 = vmatprep.subr.bf16.mxu0 0
  %1242 = vmatpush1.bf16.msra.mxu0 0
  %1243 = vmatprep.subr.bf16.mxu0 0
  %1244 = vmatpush1.bf16.msra.mxu0 0
  %1245 = vmatprep.subr.bf16.mxu0 0
  %1246 = vmatpush1.bf16.msra.mxu0 0
  %1247 = vmatprep.subr.bf16.mxu0 0
  %1248 = vmatpush1.bf16.msra.mxu0 0
  %1249 = vmatprep.subr.bf16.mxu0 0
  %1250 = vmatpush1.bf16.msra.mxu0 0
  %1251 = vmatprep.mubr.bf16.mxu0 0
  %1252 = vmatmul.mubr.bf16.gmra.mrb[0].mxu0 %v1070
  %v1253 = vpop.f32.mrb[0].mxu0
  %v1254 = vadd.f32 0.0, %v1253
  %v1255 = vpop.f32.mrb[0].mxu0
  %v1256 = vadd.f32 0.0, %v1255
  %v1257 = vpop.f32.mrb[0].mxu0
  %v1258 = vpop.f32.mrb[0].mxu0
  %1259 = vdwg.mxu0
  %v1260 = vadd.f32 %v1032, %v1131
  %v1261 = vadd.f32 %v1033, %v1133
  %v1262 = vadd.f32 %v1034, %v1172
  %v1263 = vadd.f32 %v1035, %v1174
  %v1264 = vadd.f32 %v1036, %v1213
  %v1265 = vadd.f32 %v1037, %v1215
  %v1266 = vadd.f32 %v1038, %v1254
  %v1267 = vadd.f32 %v1039, %v1256
  %s1268 = scalar_lea.vmem %s0, 8
  %v1269 = vld [vmem:[%s1268] sm:$0x3]
  %v1271 = vsel %vm401, %v1269, 0
  %v1274 = vsel %vm405, %v348, 0
  %v1277 = vsel %vm405, %v347, 0
  %v1280 = vsel %vm405, %v349, 0
  %v1283 = vsel %vm405, %v357, 0
  %v1286 = vsel %vm405, %v365, 0
  %v1289 = vsel %vm405, %v364, 0
  %v1292 = vsel %vm405, %v366, 0
  %v1295 = vsel %vm405, %v373, 0
  %1297 = vmatprep.subr.bf16.mxu0 %v1277
  %1298 = vmatpush1.bf16.msra.mxu0 %v1274
  %1299 = vmatprep.subr.bf16.mxu0 0
  %1300 = vmatpush1.bf16.msra.mxu0 0
  %1301 = vmatprep.subr.bf16.mxu0 0
  %1302 = vmatpush1.bf16.msra.mxu0 0
  %1303 = vmatprep.subr.bf16.mxu0 0
  %1304 = vmatpush1.bf16.msra.mxu0 0
  %1305 = vmatprep.subr.bf16.mxu0 0
  %1306 = vmatpush1.bf16.msra.mxu0 0
  %1307 = vmatprep.subr.bf16.mxu0 0
  %1308 = vmatpush1.bf16.msra.mxu0 0
  %1309 = vmatprep.subr.bf16.mxu0 0
  %1310 = vmatpush1.bf16.msra.mxu0 0
  %1311 = vmatprep.subr.bf16.mxu0 0
  %1312 = vmatpush1.bf16.msra.mxu0 0
  %1313 = vmatprep.subr.bf16.mxu0 0
  %1314 = vmatpush1.bf16.msra.mxu0 0
  %1315 = vmatprep.subr.bf16.mxu0 0
  %1316 = vmatpush1.bf16.msra.mxu0 0
  %1317 = vmatprep.subr.bf16.mxu0 0
  %1318 = vmatpush1.bf16.msra.mxu0 0
  %1319 = vmatprep.subr.bf16.mxu0 0
  %1320 = vmatpush1.bf16.msra.mxu0 0
  %1321 = vmatprep.subr.bf16.mxu0 0
  %1322 = vmatpush1.bf16.msra.mxu0 0
  %1323 = vmatprep.subr.bf16.mxu0 0
  %1324 = vmatpush1.bf16.msra.mxu0 0
  %1325 = vmatprep.subr.bf16.mxu0 0
  %1326 = vmatpush1.bf16.msra.mxu0 0
  %1327 = vmatprep.subr.bf16.mxu0 0
  %1328 = vmatpush1.bf16.msra.mxu0 0
  %1329 = vmatprep.mubr.bf16.mxu0 0
  %1330 = vmatmul.mubr.bf16.gmra.mrb[0].mxu0 %v1271
  %v1331 = vpop.f32.mrb[0].mxu0
  %v1332 = vadd.f32 0.0, %v1331
  %v1333 = vpop.f32.mrb[0].mxu0
  %v1334 = vadd.f32 0.0, %v1333
  %v1335 = vpop.f32.mrb[0].mxu0
  %v1336 = vpop.f32.mrb[0].mxu0
  %1337 = vdwg.mxu0
  %1338 = vmatprep.subr.bf16.mxu0 %v1283
  %1339 = vmatpush1.bf16.msra.mxu0 %v1280
  %1340 = vmatprep.subr.bf16.mxu0 0
  %1341 = vmatpush1.bf16.msra.mxu0 0
  %1342 = vmatprep.subr.bf16.mxu0 0
  %1343 = vmatpush1.bf16.msra.mxu0 0
  %1344 = vmatprep.subr.bf16.mxu0 0
  %1345 = vmatpush1.bf16.msra.mxu0 0
  %1346 = vmatprep.subr.bf16.mxu0 0
  %1347 = vmatpush1.bf16.msra.mxu0 0
  %1348 = vmatprep.subr.bf16.mxu0 0
  %1349 = vmatpush1.bf16.msra.mxu0 0
  %1350 = vmatprep.subr.bf16.mxu0 0
  %1351 = vmatpush1.bf16.msra.mxu0 0
  %1352 = vmatprep.subr.bf16.mxu0 0
  %1353 = vmatpush1.bf16.msra.mxu0 0
  %1354 = vmatprep.subr.bf16.mxu0 0
  %1355 = vmatpush1.bf16.msra.mxu0 0
  %1356 = vmatprep.subr.bf16.mxu0 0
  %1357 = vmatpush1.bf16.msra.mxu0 0
  %1358 = vmatprep.subr.bf16.mxu0 0
  %1359 = vmatpush1.bf16.msra.mxu0 0
  %1360 = vmatprep.subr.bf16.mxu0 0
  %1361 = vmatpush1.bf16.msra.mxu0 0
  %1362 = vmatprep.subr.bf16.mxu0 0
  %1363 = vmatpush1.bf16.msra.mxu0 0
  %1364 = vmatprep.subr.bf16.mxu0 0
  %1365 = vmatpush1.bf16.msra.mxu0 0
  %1366 = vmatprep.subr.bf16.mxu0 0
  %1367 = vmatpush1.bf16.msra.mxu0 0
  %1368 = vmatprep.subr.bf16.mxu0 0
  %1369 = vmatpush1.bf16.msra.mxu0 0
  %1370 = vmatprep.mubr.bf16.mxu0 0
  %1371 = vmatmul.mubr.bf16.gmra.mrb[0].mxu0 %v1271
  %v1372 = vpop.f32.mrb[0].mxu0
  %v1373 = vadd.f32 0.0, %v1372
  %v1374 = vpop.f32.mrb[0].mxu0
  %v1375 = vadd.f32 0.0, %v1374
  %v1376 = vpop.f32.mrb[0].mxu0
  %v1377 = vpop.f32.mrb[0].mxu0
  %1378 = vdwg.mxu0
  %1379 = vmatprep.subr.bf16.mxu0 %v1289
  %1380 = vmatpush1.bf16.msra.mxu0 %v1286
  %1381 = vmatprep.subr.bf16.mxu0 0
  %1382 = vmatpush1.bf16.msra.mxu0 0
  %1383 = vmatprep.subr.bf16.mxu0 0
  %1384 = vmatpush1.bf16.msra.mxu0 0
  %1385 = vmatprep.subr.bf16.mxu0 0
  %1386 = vmatpush1.bf16.msra.mxu0 0
  %1387 = vmatprep.subr.bf16.mxu0 0
  %1388 = vmatpush1.bf16.msra.mxu0 0
  %1389 = vmatprep.subr.bf16.mxu0 0
  %1390 = vmatpush1.bf16.msra.mxu0 0
  %1391 = vmatprep.subr.bf16.mxu0 0
  %1392 = vmatpush1.bf16.msra.mxu0 0
  %1393 = vmatprep.subr.bf16.mxu0 0
  %1394 = vmatpush1.bf16.msra.mxu0 0
  %1395 = vmatprep.subr.bf16.mxu0 0
  %1396 = vmatpush1.bf16.msra.mxu0 0
  %1397 = vmatprep.subr.bf16.mxu0 0
  %1398 = vmatpush1.bf16.msra.mxu0 0
  %1399 = vmatprep.subr.bf16.mxu0 0
  %1400 = vmatpush1.bf16.msra.mxu0 0
  %1401 = vmatprep.subr.bf16.mxu0 0
  %1402 = vmatpush1.bf16.msra.mxu0 0
  %1403 = vmatprep.subr.bf16.mxu0 0
  %1404 = vmatpush1.bf16.msra.mxu0 0
  %1405 = vmatprep.subr.bf16.mxu0 0
  %1406 = vmatpush1.bf16.msra.mxu0 0
  %1407 = vmatprep.subr.bf16.mxu0 0
  %1408 = vmatpush1.bf16.msra.mxu0 0
  %1409 = vmatprep.subr.bf16.mxu0 0
  %1410 = vmatpush1.bf16.msra.mxu0 0
  %1411 = vmatprep.mubr.bf16.mxu0 0
  %1412 = vmatmul.mubr.bf16.gmra.mrb[0].mxu0 %v1271
  %v1413 = vpop.f32.mrb[0].mxu0
  %v1414 = vadd.f32 0.0, %v1413
  %v1415 = vpop.f32.mrb[0].mxu0
  %v1416 = vadd.f32 0.0, %v1415
  %v1417 = vpop.f32.mrb[0].mxu0
  %v1418 = vpop.f32.mrb[0].mxu0
  %1419 = vdwg.mxu0
  %1420 = vmatprep.subr.bf16.mxu0 %v1295
  %1421 = vmatpush1.bf16.msra.mxu0 %v1292
  %1422 = vmatprep.subr.bf16.mxu0 0
  %1423 = vmatpush1.bf16.msra.mxu0 0
  %1424 = vmatprep.subr.bf16.mxu0 0
  %1425 = vmatpush1.bf16.msra.mxu0 0
  %1426 = vmatprep.subr.bf16.mxu0 0
  %1427 = vmatpush1.bf16.msra.mxu0 0
  %1428 = vmatprep.subr.bf16.mxu0 0
  %1429 = vmatpush1.bf16.msra.mxu0 0
  %1430 = vmatprep.subr.bf16.mxu0 0
  %1431 = vmatpush1.bf16.msra.mxu0 0
  %1432 = vmatprep.subr.bf16.mxu0 0
  %1433 = vmatpush1.bf16.msra.mxu0 0
  %1434 = vmatprep.subr.bf16.mxu0 0
  %1435 = vmatpush1.bf16.msra.mxu0 0
  %1436 = vmatprep.subr.bf16.mxu0 0
  %1437 = vmatpush1.bf16.msra.mxu0 0
  %1438 = vmatprep.subr.bf16.mxu0 0
  %1439 = vmatpush1.bf16.msra.mxu0 0
  %1440 = vmatprep.subr.bf16.mxu0 0
  %1441 = vmatpush1.bf16.msra.mxu0 0
  %1442 = vmatprep.subr.bf16.mxu0 0
  %1443 = vmatpush1.bf16.msra.mxu0 0
  %1444 = vmatprep.subr.bf16.mxu0 0
  %1445 = vmatpush1.bf16.msra.mxu0 0
  %1446 = vmatprep.subr.bf16.mxu0 0
  %1447 = vmatpush1.bf16.msra.mxu0 0
  %1448 = vmatprep.subr.bf16.mxu0 0
  %1449 = vmatpush1.bf16.msra.mxu0 0
  %1450 = vmatprep.subr.bf16.mxu0 0
  %1451 = vmatpush1.bf16.msra.mxu0 0
  %1452 = vmatprep.mubr.bf16.mxu0 0
  %1453 = vmatmul.mubr.bf16.gmra.mrb[0].mxu0 %v1271
  %v1454 = vpop.f32.mrb[0].mxu0
  %v1455 = vadd.f32 0.0, %v1454
  %v1456 = vpop.f32.mrb[0].mxu0
  %v1457 = vadd.f32 0.0, %v1456
  %v1458 = vpop.f32.mrb[0].mxu0
  %v1459 = vpop.f32.mrb[0].mxu0
  %1460 = vdwg.mxu0
  %v1461 = vadd.f32 %v1260, %v1332
  %v1462 = vadd.f32 %v1261, %v1334
  %v1463 = vadd.f32 %v1262, %v1373
  %v1464 = vadd.f32 %v1263, %v1375
  %v1465 = vadd.f32 %v1264, %v1414
  %v1466 = vadd.f32 %v1265, %v1416
  %v1467 = vadd.f32 %v1266, %v1455
  %v1468 = vadd.f32 %v1267, %v1457
  %s1469 = scalar_lea.vmem %s0, 10
  %v1470 = vld [vmem:[%s1469] sm:$0x3]
  %v1471 = vcombine.high %v373, %v373
  %1472 = vrot.lane.b32.xlu0 %v348, 127
  %v1473 = vpop.permute.xlu0 %1472
  %1474 = vrot.lane.b32.xlu0 %v347, 127
  %v1475 = vpop.permute.xlu0 %1474
  %1476 = vrot.lane.b32.xlu0 %v349, 127
  %v1477 = vpop.permute.xlu0 %1476
  %1478 = vrot.lane.b32.xlu0 %v357, 127
  %v1479 = vpop.permute.xlu0 %1478
  %1480 = vrot.lane.b32.xlu0 %v365, 127
  %v1481 = vpop.permute.xlu0 %1480
  %1482 = vrot.lane.b32.xlu0 %v364, 127
  %v1483 = vpop.permute.xlu0 %1482
  %1484 = vrot.lane.b32.xlu0 %v366, 127
  %v1485 = vpop.permute.xlu0 %1484
  %1486 = vrot.lane.b32.xlu0 %v373, 127
  %v1487 = vpop.permute.xlu0 %1486
  %1488 = vrot.lane.b32.xlu0 %v1471, 127
  %v1489 = vpop.permute.xlu0 %1488
  %vm1490 = vcmask 1039360
  %v1491 = vsel %vm1490, %v1473, %v1475
  %v1492 = vsel %vm1490, %v1475, %v1477
  %v1493 = vsel %vm1490, %v1477, %v1479
  %v1494 = vsel %vm1490, %v1479, %v1481
  %v1495 = vsel %vm1490, %v1481, %v1483
  %v1496 = vsel %vm1490, %v1483, %v1485
  %v1497 = vsel %vm1490, %v1485, %v1487
  %v1498 = vsel %vm1490, %v1487, %v1489
  %v1500 = vsel %vm401, %v1470, 0
  %v1503 = vsel %vm405, %v1491, 0
  %v1506 = vsel %vm405, %v1492, 0
  %v1509 = vsel %vm405, %v1493, 0
  %v1512 = vsel %vm405, %v1494, 0
  %v1515 = vsel %vm405, %v1495, 0
  %v1518 = vsel %vm405, %v1496, 0
  %v1521 = vsel %vm405, %v1497, 0
  %v1524 = vsel %vm405, %v1498, 0
  %1526 = vmatprep.subr.bf16.mxu0 %v1506
  %1527 = vmatpush1.bf16.msra.mxu0 %v1503
  %1528 = vmatprep.subr.bf16.mxu0 0
  %1529 = vmatpush1.bf16.msra.mxu0 0
  %1530 = vmatprep.subr.bf16.mxu0 0
  %1531 = vmatpush1.bf16.msra.mxu0 0
  %1532 = vmatprep.subr.bf16.mxu0 0
  %1533 = vmatpush1.bf16.msra.mxu0 0
  %1534 = vmatprep.subr.bf16.mxu0 0
  %1535 = vmatpush1.bf16.msra.mxu0 0
  %1536 = vmatprep.subr.bf16.mxu0 0
  %1537 = vmatpush1.bf16.msra.mxu0 0
  %1538 = vmatprep.subr.bf16.mxu0 0
  %1539 = vmatpush1.bf16.msra.mxu0 0
  %1540 = vmatprep.subr.bf16.mxu0 0
  %1541 = vmatpush1.bf16.msra.mxu0 0
  %1542 = vmatprep.subr.bf16.mxu0 0
  %1543 = vmatpush1.bf16.msra.mxu0 0
  %1544 = vmatprep.subr.bf16.mxu0 0
  %1545 = vmatpush1.bf16.msra.mxu0 0
  %1546 = vmatprep.subr.bf16.mxu0 0
  %1547 = vmatpush1.bf16.msra.mxu0 0
  %1548 = vmatprep.subr.bf16.mxu0 0
  %1549 = vmatpush1.bf16.msra.mxu0 0
  %1550 = vmatprep.subr.bf16.mxu0 0
  %1551 = vmatpush1.bf16.msra.mxu0 0
  %1552 = vmatprep.subr.bf16.mxu0 0
  %1553 = vmatpush1.bf16.msra.mxu0 0
  %1554 = vmatprep.subr.bf16.mxu0 0
  %1555 = vmatpush1.bf16.msra.mxu0 0
  %1556 = vmatprep.subr.bf16.mxu0 0
  %1557 = vmatpush1.bf16.msra.mxu0 0
  %1558 = vmatprep.mubr.bf16.mxu0 0
  %1559 = vmatmul.mubr.bf16.gmra.mrb[0].mxu0 %v1500
  %v1560 = vpop.f32.mrb[0].mxu0
  %v1561 = vadd.f32 0.0, %v1560
  %v1562 = vpop.f32.mrb[0].mxu0
  %v1563 = vadd.f32 0.0, %v1562
  %v1564 = vpop.f32.mrb[0].mxu0
  %v1565 = vpop.f32.mrb[0].mxu0
  %1566 = vdwg.mxu0
  %1567 = vmatprep.subr.bf16.mxu0 %v1512
  %1568 = vmatpush1.bf16.msra.mxu0 %v1509
  %1569 = vmatprep.subr.bf16.mxu0 0
  %1570 = vmatpush1.bf16.msra.mxu0 0
  %1571 = vmatprep.subr.bf16.mxu0 0
  %1572 = vmatpush1.bf16.msra.mxu0 0
  %1573 = vmatprep.subr.bf16.mxu0 0
  %1574 = vmatpush1.bf16.msra.mxu0 0
  %1575 = vmatprep.subr.bf16.mxu0 0
  %1576 = vmatpush1.bf16.msra.mxu0 0
  %1577 = vmatprep.subr.bf16.mxu0 0
  %1578 = vmatpush1.bf16.msra.mxu0 0
  %1579 = vmatprep.subr.bf16.mxu0 0
  %1580 = vmatpush1.bf16.msra.mxu0 0
  %1581 = vmatprep.subr.bf16.mxu0 0
  %1582 = vmatpush1.bf16.msra.mxu0 0
  %1583 = vmatprep.subr.bf16.mxu0 0
  %1584 = vmatpush1.bf16.msra.mxu0 0
  %1585 = vmatprep.subr.bf16.mxu0 0
  %1586 = vmatpush1.bf16.msra.mxu0 0
  %1587 = vmatprep.subr.bf16.mxu0 0
  %1588 = vmatpush1.bf16.msra.mxu0 0
  %1589 = vmatprep.subr.bf16.mxu0 0
  %1590 = vmatpush1.bf16.msra.mxu0 0
  %1591 = vmatprep.subr.bf16.mxu0 0
  %1592 = vmatpush1.bf16.msra.mxu0 0
  %1593 = vmatprep.subr.bf16.mxu0 0
  %1594 = vmatpush1.bf16.msra.mxu0 0
  %1595 = vmatprep.subr.bf16.mxu0 0
  %1596 = vmatpush1.bf16.msra.mxu0 0
  %1597 = vmatprep.subr.bf16.mxu0 0
  %1598 = vmatpush1.bf16.msra.mxu0 0
  %1599 = vmatprep.mubr.bf16.mxu0 0
  %1600 = vmatmul.mubr.bf16.gmra.mrb[0].mxu0 %v1500
  %v1601 = vpop.f32.mrb[0].mxu0
  %v1602 = vadd.f32 0.0, %v1601
  %v1603 = vpop.f32.mrb[0].mxu0
  %v1604 = vadd.f32 0.0, %v1603
  %v1605 = vpop.f32.mrb[0].mxu0
  %v1606 = vpop.f32.mrb[0].mxu0
  %1607 = vdwg.mxu0
  %1608 = vmatprep.subr.bf16.mxu0 %v1518
  %1609 = vmatpush1.bf16.msra.mxu0 %v1515
  %1610 = vmatprep.subr.bf16.mxu0 0
  %1611 = vmatpush1.bf16.msra.mxu0 0
  %1612 = vmatprep.subr.bf16.mxu0 0
  %1613 = vmatpush1.bf16.msra.mxu0 0
  %1614 = vmatprep.subr.bf16.mxu0 0
  %1615 = vmatpush1.bf16.msra.mxu0 0
  %1616 = vmatprep.subr.bf16.mxu0 0
  %1617 = vmatpush1.bf16.msra.mxu0 0
  %1618 = vmatprep.subr.bf16.mxu0 0
  %1619 = vmatpush1.bf16.msra.mxu0 0
  %1620 = vmatprep.subr.bf16.mxu0 0
  %1621 = vmatpush1.bf16.msra.mxu0 0
  %1622 = vmatprep.subr.bf16.mxu0 0
  %1623 = vmatpush1.bf16.msra.mxu0 0
  %1624 = vmatprep.subr.bf16.mxu0 0
  %1625 = vmatpush1.bf16.msra.mxu0 0
  %1626 = vmatprep.subr.bf16.mxu0 0
  %1627 = vmatpush1.bf16.msra.mxu0 0
  %1628 = vmatprep.subr.bf16.mxu0 0
  %1629 = vmatpush1.bf16.msra.mxu0 0
  %1630 = vmatprep.subr.bf16.mxu0 0
  %1631 = vmatpush1.bf16.msra.mxu0 0
  %1632 = vmatprep.subr.bf16.mxu0 0
  %1633 = vmatpush1.bf16.msra.mxu0 0
  %1634 = vmatprep.subr.bf16.mxu0 0
  %1635 = vmatpush1.bf16.msra.mxu0 0
  %1636 = vmatprep.subr.bf16.mxu0 0
  %1637 = vmatpush1.bf16.msra.mxu0 0
  %1638 = vmatprep.subr.bf16.mxu0 0
  %1639 = vmatpush1.bf16.msra.mxu0 0
  %1640 = vmatprep.mubr.bf16.mxu0 0
  %1641 = vmatmul.mubr.bf16.gmra.mrb[0].mxu0 %v1500
  %v1642 = vpop.f32.mrb[0].mxu0
  %v1643 = vadd.f32 0.0, %v1642
  %v1644 = vpop.f32.mrb[0].mxu0
  %v1645 = vadd.f32 0.0, %v1644
  %v1646 = vpop.f32.mrb[0].mxu0
  %v1647 = vpop.f32.mrb[0].mxu0
  %1648 = vdwg.mxu0
  %1649 = vmatprep.subr.bf16.mxu0 %v1524
  %1650 = vmatpush1.bf16.msra.mxu0 %v1521
  %1651 = vmatprep.subr.bf16.mxu0 0
  %1652 = vmatpush1.bf16.msra.mxu0 0
  %1653 = vmatprep.subr.bf16.mxu0 0
  %1654 = vmatpush1.bf16.msra.mxu0 0
  %1655 = vmatprep.subr.bf16.mxu0 0
  %1656 = vmatpush1.bf16.msra.mxu0 0
  %1657 = vmatprep.subr.bf16.mxu0 0
  %1658 = vmatpush1.bf16.msra.mxu0 0
  %1659 = vmatprep.subr.bf16.mxu0 0
  %1660 = vmatpush1.bf16.msra.mxu0 0
  %1661 = vmatprep.subr.bf16.mxu0 0
  %1662 = vmatpush1.bf16.msra.mxu0 0
  %1663 = vmatprep.subr.bf16.mxu0 0
  %1664 = vmatpush1.bf16.msra.mxu0 0
  %1665 = vmatprep.subr.bf16.mxu0 0
  %1666 = vmatpush1.bf16.msra.mxu0 0
  %1667 = vmatprep.subr.bf16.mxu0 0
  %1668 = vmatpush1.bf16.msra.mxu0 0
  %1669 = vmatprep.subr.bf16.mxu0 0
  %1670 = vmatpush1.bf16.msra.mxu0 0
  %1671 = vmatprep.subr.bf16.mxu0 0
  %1672 = vmatpush1.bf16.msra.mxu0 0
  %1673 = vmatprep.subr.bf16.mxu0 0
  %1674 = vmatpush1.bf16.msra.mxu0 0
  %1675 = vmatprep.subr.bf16.mxu0 0
  %1676 = vmatpush1.bf16.msra.mxu0 0
  %1677 = vmatprep.subr.bf16.mxu0 0
  %1678 = vmatpush1.bf16.msra.mxu0 0
  %1679 = vmatprep.subr.bf16.mxu0 0
  %1680 = vmatpush1.bf16.msra.mxu0 0
  %1681 = vmatprep.mubr.bf16.mxu0 0
  %1682 = vmatmul.mubr.bf16.gmra.mrb[0].mxu0 %v1500
  %v1683 = vpop.f32.mrb[0].mxu0
  %v1684 = vadd.f32 0.0, %v1683
  %v1685 = vpop.f32.mrb[0].mxu0
  %v1686 = vadd.f32 0.0, %v1685
  %v1687 = vpop.f32.mrb[0].mxu0
  %v1688 = vpop.f32.mrb[0].mxu0
  %1689 = vdwg.mxu0
  %v1690 = vadd.f32 %v1461, %v1561
  %v1691 = vadd.f32 %v1462, %v1563
  %v1692 = vadd.f32 %v1463, %v1602
  %v1693 = vadd.f32 %v1464, %v1604
  %v1694 = vadd.f32 %v1465, %v1643
  %v1695 = vadd.f32 %v1466, %v1645
  %v1696 = vadd.f32 %v1467, %v1684
  %v1697 = vadd.f32 %v1468, %v1686
  %s1698 = scalar_lea.vmem %s0, 12
  %v1699 = vld [vmem:[%s1698] sm:$0x3]
  %1700 = vrot.lane.b32.xlu0 %v348, 111
  %v1701 = vpop.permute.xlu0 %1700
  %1702 = vrot.lane.b32.xlu0 %v347, 111
  %v1703 = vpop.permute.xlu0 %1702
  %1704 = vrot.lane.b32.xlu0 %v349, 111
  %v1705 = vpop.permute.xlu0 %1704
  %1706 = vrot.lane.b32.xlu0 %v357, 111
  %v1707 = vpop.permute.xlu0 %1706
  %1708 = vrot.lane.b32.xlu0 %v365, 111
  %v1709 = vpop.permute.xlu0 %1708
  %1710 = vrot.lane.b32.xlu0 %v364, 111
  %v1711 = vpop.permute.xlu0 %1710
  %1712 = vrot.lane.b32.xlu0 %v366, 111
  %v1713 = vpop.permute.xlu0 %1712
  %1714 = vrot.lane.b32.xlu0 %v373, 111
  %v1715 = vpop.permute.xlu0 %1714
  %1716 = vrot.lane.b32.xlu0 %v1471, 111
  %v1717 = vpop.permute.xlu0 %1716
  %vm1718 = vcmask 908288
  %v1719 = vsel %vm1718, %v1701, %v1703
  %v1720 = vsel %vm1718, %v1703, %v1705
  %v1721 = vsel %vm1718, %v1705, %v1707
  %v1722 = vsel %vm1718, %v1707, %v1709
  %v1723 = vsel %vm1718, %v1709, %v1711
  %v1724 = vsel %vm1718, %v1711, %v1713
  %v1725 = vsel %vm1718, %v1713, %v1715
  %v1726 = vsel %vm1718, %v1715, %v1717
  %v1728 = vsel %vm401, %v1699, 0
  %v1731 = vsel %vm405, %v1719, 0
  %v1734 = vsel %vm405, %v1720, 0
  %v1737 = vsel %vm405, %v1721, 0
  %v1740 = vsel %vm405, %v1722, 0
  %v1743 = vsel %vm405, %v1723, 0
  %v1746 = vsel %vm405, %v1724, 0
  %v1749 = vsel %vm405, %v1725, 0
  %v1752 = vsel %vm405, %v1726, 0
  %1754 = vmatprep.subr.bf16.mxu0 %v1734
  %1755 = vmatpush1.bf16.msra.mxu0 %v1731
  %1756 = vmatprep.subr.bf16.mxu0 0
  %1757 = vmatpush1.bf16.msra.mxu0 0
  %1758 = vmatprep.subr.bf16.mxu0 0
  %1759 = vmatpush1.bf16.msra.mxu0 0
  %1760 = vmatprep.subr.bf16.mxu0 0
  %1761 = vmatpush1.bf16.msra.mxu0 0
  %1762 = vmatprep.subr.bf16.mxu0 0
  %1763 = vmatpush1.bf16.msra.mxu0 0
  %1764 = vmatprep.subr.bf16.mxu0 0
  %1765 = vmatpush1.bf16.msra.mxu0 0
  %1766 = vmatprep.subr.bf16.mxu0 0
  %1767 = vmatpush1.bf16.msra.mxu0 0
  %1768 = vmatprep.subr.bf16.mxu0 0
  %1769 = vmatpush1.bf16.msra.mxu0 0
  %1770 = vmatprep.subr.bf16.mxu0 0
  %1771 = vmatpush1.bf16.msra.mxu0 0
  %1772 = vmatprep.subr.bf16.mxu0 0
  %1773 = vmatpush1.bf16.msra.mxu0 0
  %1774 = vmatprep.subr.bf16.mxu0 0
  %1775 = vmatpush1.bf16.msra.mxu0 0
  %1776 = vmatprep.subr.bf16.mxu0 0
  %1777 = vmatpush1.bf16.msra.mxu0 0
  %1778 = vmatprep.subr.bf16.mxu0 0
  %1779 = vmatpush1.bf16.msra.mxu0 0
  %1780 = vmatprep.subr.bf16.mxu0 0
  %1781 = vmatpush1.bf16.msra.mxu0 0
  %1782 = vmatprep.subr.bf16.mxu0 0
  %1783 = vmatpush1.bf16.msra.mxu0 0
  %1784 = vmatprep.subr.bf16.mxu0 0
  %1785 = vmatpush1.bf16.msra.mxu0 0
  %1786 = vmatprep.mubr.bf16.mxu0 0
  %1787 = vmatmul.mubr.bf16.gmra.mrb[0].mxu0 %v1728
  %v1788 = vpop.f32.mrb[0].mxu0
  %v1789 = vadd.f32 0.0, %v1788
  %v1790 = vpop.f32.mrb[0].mxu0
  %v1791 = vadd.f32 0.0, %v1790
  %v1792 = vpop.f32.mrb[0].mxu0
  %v1793 = vpop.f32.mrb[0].mxu0
  %1794 = vdwg.mxu0
  %1795 = vmatprep.subr.bf16.mxu0 %v1740
  %1796 = vmatpush1.bf16.msra.mxu0 %v1737
  %1797 = vmatprep.subr.bf16.mxu0 0
  %1798 = vmatpush1.bf16.msra.mxu0 0
  %1799 = vmatprep.subr.bf16.mxu0 0
  %1800 = vmatpush1.bf16.msra.mxu0 0
  %1801 = vmatprep.subr.bf16.mxu0 0
  %1802 = vmatpush1.bf16.msra.mxu0 0
  %1803 = vmatprep.subr.bf16.mxu0 0
  %1804 = vmatpush1.bf16.msra.mxu0 0
  %1805 = vmatprep.subr.bf16.mxu0 0
  %1806 = vmatpush1.bf16.msra.mxu0 0
  %1807 = vmatprep.subr.bf16.mxu0 0
  %1808 = vmatpush1.bf16.msra.mxu0 0
  %1809 = vmatprep.subr.bf16.mxu0 0
  %1810 = vmatpush1.bf16.msra.mxu0 0
  %1811 = vmatprep.subr.bf16.mxu0 0
  %1812 = vmatpush1.bf16.msra.mxu0 0
  %1813 = vmatprep.subr.bf16.mxu0 0
  %1814 = vmatpush1.bf16.msra.mxu0 0
  %1815 = vmatprep.subr.bf16.mxu0 0
  %1816 = vmatpush1.bf16.msra.mxu0 0
  %1817 = vmatprep.subr.bf16.mxu0 0
  %1818 = vmatpush1.bf16.msra.mxu0 0
  %1819 = vmatprep.subr.bf16.mxu0 0
  %1820 = vmatpush1.bf16.msra.mxu0 0
  %1821 = vmatprep.subr.bf16.mxu0 0
  %1822 = vmatpush1.bf16.msra.mxu0 0
  %1823 = vmatprep.subr.bf16.mxu0 0
  %1824 = vmatpush1.bf16.msra.mxu0 0
  %1825 = vmatprep.subr.bf16.mxu0 0
  %1826 = vmatpush1.bf16.msra.mxu0 0
  %1827 = vmatprep.mubr.bf16.mxu0 0
  %1828 = vmatmul.mubr.bf16.gmra.mrb[0].mxu0 %v1728
  %v1829 = vpop.f32.mrb[0].mxu0
  %v1830 = vadd.f32 0.0, %v1829
  %v1831 = vpop.f32.mrb[0].mxu0
  %v1832 = vadd.f32 0.0, %v1831
  %v1833 = vpop.f32.mrb[0].mxu0
  %v1834 = vpop.f32.mrb[0].mxu0
  %1835 = vdwg.mxu0
  %1836 = vmatprep.subr.bf16.mxu0 %v1746
  %1837 = vmatpush1.bf16.msra.mxu0 %v1743
  %1838 = vmatprep.subr.bf16.mxu0 0
  %1839 = vmatpush1.bf16.msra.mxu0 0
  %1840 = vmatprep.subr.bf16.mxu0 0
  %1841 = vmatpush1.bf16.msra.mxu0 0
  %1842 = vmatprep.subr.bf16.mxu0 0
  %1843 = vmatpush1.bf16.msra.mxu0 0
  %1844 = vmatprep.subr.bf16.mxu0 0
  %1845 = vmatpush1.bf16.msra.mxu0 0
  %1846 = vmatprep.subr.bf16.mxu0 0
  %1847 = vmatpush1.bf16.msra.mxu0 0
  %1848 = vmatprep.subr.bf16.mxu0 0
  %1849 = vmatpush1.bf16.msra.mxu0 0
  %1850 = vmatprep.subr.bf16.mxu0 0
  %1851 = vmatpush1.bf16.msra.mxu0 0
  %1852 = vmatprep.subr.bf16.mxu0 0
  %1853 = vmatpush1.bf16.msra.mxu0 0
  %1854 = vmatprep.subr.bf16.mxu0 0
  %1855 = vmatpush1.bf16.msra.mxu0 0
  %1856 = vmatprep.subr.bf16.mxu0 0
  %1857 = vmatpush1.bf16.msra.mxu0 0
  %1858 = vmatprep.subr.bf16.mxu0 0
  %1859 = vmatpush1.bf16.msra.mxu0 0
  %1860 = vmatprep.subr.bf16.mxu0 0
  %1861 = vmatpush1.bf16.msra.mxu0 0
  %1862 = vmatprep.subr.bf16.mxu0 0
  %1863 = vmatpush1.bf16.msra.mxu0 0
  %1864 = vmatprep.subr.bf16.mxu0 0
  %1865 = vmatpush1.bf16.msra.mxu0 0
  %1866 = vmatprep.subr.bf16.mxu0 0
  %1867 = vmatpush1.bf16.msra.mxu0 0
  %1868 = vmatprep.mubr.bf16.mxu0 0
  %1869 = vmatmul.mubr.bf16.gmra.mrb[0].mxu0 %v1728
  %v1870 = vpop.f32.mrb[0].mxu0
  %v1871 = vadd.f32 0.0, %v1870
  %v1872 = vpop.f32.mrb[0].mxu0
  %v1873 = vadd.f32 0.0, %v1872
  %v1874 = vpop.f32.mrb[0].mxu0
  %v1875 = vpop.f32.mrb[0].mxu0
  %1876 = vdwg.mxu0
  %1877 = vmatprep.subr.bf16.mxu0 %v1752
  %1878 = vmatpush1.bf16.msra.mxu0 %v1749
  %1879 = vmatprep.subr.bf16.mxu0 0
  %1880 = vmatpush1.bf16.msra.mxu0 0
  %1881 = vmatprep.subr.bf16.mxu0 0
  %1882 = vmatpush1.bf16.msra.mxu0 0
  %1883 = vmatprep.subr.bf16.mxu0 0
  %1884 = vmatpush1.bf16.msra.mxu0 0
  %1885 = vmatprep.subr.bf16.mxu0 0
  %1886 = vmatpush1.bf16.msra.mxu0 0
  %1887 = vmatprep.subr.bf16.mxu0 0
  %1888 = vmatpush1.bf16.msra.mxu0 0
  %1889 = vmatprep.subr.bf16.mxu0 0
  %1890 = vmatpush1.bf16.msra.mxu0 0
  %1891 = vmatprep.subr.bf16.mxu0 0
  %1892 = vmatpush1.bf16.msra.mxu0 0
  %1893 = vmatprep.subr.bf16.mxu0 0
  %1894 = vmatpush1.bf16.msra.mxu0 0
  %1895 = vmatprep.subr.bf16.mxu0 0
  %1896 = vmatpush1.bf16.msra.mxu0 0
  %1897 = vmatprep.subr.bf16.mxu0 0
  %1898 = vmatpush1.bf16.msra.mxu0 0
  %1899 = vmatprep.subr.bf16.mxu0 0
  %1900 = vmatpush1.bf16.msra.mxu0 0
  %1901 = vmatprep.subr.bf16.mxu0 0
  %1902 = vmatpush1.bf16.msra.mxu0 0
  %1903 = vmatprep.subr.bf16.mxu0 0
  %1904 = vmatpush1.bf16.msra.mxu0 0
  %1905 = vmatprep.subr.bf16.mxu0 0
  %1906 = vmatpush1.bf16.msra.mxu0 0
  %1907 = vmatprep.subr.bf16.mxu0 0
  %1908 = vmatpush1.bf16.msra.mxu0 0
  %1909 = vmatprep.mubr.bf16.mxu0 0
  %1910 = vmatmul.mubr.bf16.gmra.mrb[0].mxu0 %v1728
  %v1911 = vpop.f32.mrb[0].mxu0
  %v1912 = vadd.f32 0.0, %v1911
  %v1913 = vpop.f32.mrb[0].mxu0
  %v1914 = vadd.f32 0.0, %v1913
  %v1915 = vpop.f32.mrb[0].mxu0
  %v1916 = vpop.f32.mrb[0].mxu0
  %1917 = vdwg.mxu0
  %v1918 = vadd.f32 %v1690, %v1789
  %v1919 = vadd.f32 %v1691, %v1791
  %v1920 = vadd.f32 %v1692, %v1830
  %v1921 = vadd.f32 %v1693, %v1832
  %v1922 = vadd.f32 %v1694, %v1871
  %v1923 = vadd.f32 %v1695, %v1873
  %v1924 = vadd.f32 %v1696, %v1912
  %v1925 = vadd.f32 %v1697, %v1914
  %s1926 = scalar_lea.vmem %s0, 14
  %v1927 = vld [vmem:[%s1926] sm:$0x3]
  %1928 = vrot.lane.b32.xlu0 %v348, 110
  %v1929 = vpop.permute.xlu0 %1928
  %1930 = vrot.lane.b32.xlu0 %v347, 110
  %v1931 = vpop.permute.xlu0 %1930
  %1932 = vrot.lane.b32.xlu0 %v349, 110
  %v1933 = vpop.permute.xlu0 %1932
  %1934 = vrot.lane.b32.xlu0 %v357, 110
  %v1935 = vpop.permute.xlu0 %1934
  %1936 = vrot.lane.b32.xlu0 %v365, 110
  %v1937 = vpop.permute.xlu0 %1936
  %1938 = vrot.lane.b32.xlu0 %v364, 110
  %v1939 = vpop.permute.xlu0 %1938
  %1940 = vrot.lane.b32.xlu0 %v366, 110
  %v1941 = vpop.permute.xlu0 %1940
  %1942 = vrot.lane.b32.xlu0 %v373, 110
  %v1943 = vpop.permute.xlu0 %1942
  %1944 = vrot.lane.b32.xlu0 %v1471, 110
  %v1945 = vpop.permute.xlu0 %1944
  %vm1946 = vcmask 900096
  %v1947 = vsel %vm1946, %v1929, %v1931
  %v1948 = vsel %vm1946, %v1931, %v1933
  %v1949 = vsel %vm1946, %v1933, %v1935
  %v1950 = vsel %vm1946, %v1935, %v1937
  %v1951 = vsel %vm1946, %v1937, %v1939
  %v1952 = vsel %vm1946, %v1939, %v1941
  %v1953 = vsel %vm1946, %v1941, %v1943
  %v1954 = vsel %vm1946, %v1943, %v1945
  %v1956 = vsel %vm401, %v1927, 0
  %v1959 = vsel %vm405, %v1947, 0
  %v1962 = vsel %vm405, %v1948, 0
  %v1965 = vsel %vm405, %v1949, 0
  %v1968 = vsel %vm405, %v1950, 0
  %v1971 = vsel %vm405, %v1951, 0
  %v1974 = vsel %vm405, %v1952, 0
  %v1977 = vsel %vm405, %v1953, 0
  %v1980 = vsel %vm405, %v1954, 0
  %1982 = vmatprep.subr.bf16.mxu0 %v1962
  %1983 = vmatpush1.bf16.msra.mxu0 %v1959
  %1984 = vmatprep.subr.bf16.mxu0 0
  %1985 = vmatpush1.bf16.msra.mxu0 0
  %1986 = vmatprep.subr.bf16.mxu0 0
  %1987 = vmatpush1.bf16.msra.mxu0 0
  %1988 = vmatprep.subr.bf16.mxu0 0
  %1989 = vmatpush1.bf16.msra.mxu0 0
  %1990 = vmatprep.subr.bf16.mxu0 0
  %1991 = vmatpush1.bf16.msra.mxu0 0
  %1992 = vmatprep.subr.bf16.mxu0 0
  %1993 = vmatpush1.bf16.msra.mxu0 0
  %1994 = vmatprep.subr.bf16.mxu0 0
  %1995 = vmatpush1.bf16.msra.mxu0 0
  %1996 = vmatprep.subr.bf16.mxu0 0
  %1997 = vmatpush1.bf16.msra.mxu0 0
  %1998 = vmatprep.subr.bf16.mxu0 0
  %1999 = vmatpush1.bf16.msra.mxu0 0
  %2000 = vmatprep.subr.bf16.mxu0 0
  %2001 = vmatpush1.bf16.msra.mxu0 0
  %2002 = vmatprep.subr.bf16.mxu0 0
  %2003 = vmatpush1.bf16.msra.mxu0 0
  %2004 = vmatprep.subr.bf16.mxu0 0
  %2005 = vmatpush1.bf16.msra.mxu0 0
  %2006 = vmatprep.subr.bf16.mxu0 0
  %2007 = vmatpush1.bf16.msra.mxu0 0
  %2008 = vmatprep.subr.bf16.mxu0 0
  %2009 = vmatpush1.bf16.msra.mxu0 0
  %2010 = vmatprep.subr.bf16.mxu0 0
  %2011 = vmatpush1.bf16.msra.mxu0 0
  %2012 = vmatprep.subr.bf16.mxu0 0
  %2013 = vmatpush1.bf16.msra.mxu0 0
  %2014 = vmatprep.mubr.bf16.mxu0 0
  %2015 = vmatmul.mubr.bf16.gmra.mrb[0].mxu0 %v1956
  %v2016 = vpop.f32.mrb[0].mxu0
  %v2017 = vadd.f32 0.0, %v2016
  %v2018 = vpop.f32.mrb[0].mxu0
  %v2019 = vadd.f32 0.0, %v2018
  %v2020 = vpop.f32.mrb[0].mxu0
  %v2021 = vpop.f32.mrb[0].mxu0
  %2022 = vdwg.mxu0
  %2023 = vmatprep.subr.bf16.mxu0 %v1968
  %2024 = vmatpush1.bf16.msra.mxu0 %v1965
  %2025 = vmatprep.subr.bf16.mxu0 0
  %2026 = vmatpush1.bf16.msra.mxu0 0
  %2027 = vmatprep.subr.bf16.mxu0 0
  %2028 = vmatpush1.bf16.msra.mxu0 0
  %2029 = vmatprep.subr.bf16.mxu0 0
  %2030 = vmatpush1.bf16.msra.mxu0 0
  %2031 = vmatprep.subr.bf16.mxu0 0
  %2032 = vmatpush1.bf16.msra.mxu0 0
  %2033 = vmatprep.subr.bf16.mxu0 0
  %2034 = vmatpush1.bf16.msra.mxu0 0
  %2035 = vmatprep.subr.bf16.mxu0 0
  %2036 = vmatpush1.bf16.msra.mxu0 0
  %2037 = vmatprep.subr.bf16.mxu0 0
  %2038 = vmatpush1.bf16.msra.mxu0 0
  %2039 = vmatprep.subr.bf16.mxu0 0
  %2040 = vmatpush1.bf16.msra.mxu0 0
  %2041 = vmatprep.subr.bf16.mxu0 0
  %2042 = vmatpush1.bf16.msra.mxu0 0
  %2043 = vmatprep.subr.bf16.mxu0 0
  %2044 = vmatpush1.bf16.msra.mxu0 0
  %2045 = vmatprep.subr.bf16.mxu0 0
  %2046 = vmatpush1.bf16.msra.mxu0 0
  %2047 = vmatprep.subr.bf16.mxu0 0
  %2048 = vmatpush1.bf16.msra.mxu0 0
  %2049 = vmatprep.subr.bf16.mxu0 0
  %2050 = vmatpush1.bf16.msra.mxu0 0
  %2051 = vmatprep.subr.bf16.mxu0 0
  %2052 = vmatpush1.bf16.msra.mxu0 0
  %2053 = vmatprep.subr.bf16.mxu0 0
  %2054 = vmatpush1.bf16.msra.mxu0 0
  %2055 = vmatprep.mubr.bf16.mxu0 0
  %2056 = vmatmul.mubr.bf16.gmra.mrb[0].mxu0 %v1956
  %v2057 = vpop.f32.mrb[0].mxu0
  %v2058 = vadd.f32 0.0, %v2057
  %v2059 = vpop.f32.mrb[0].mxu0
  %v2060 = vadd.f32 0.0, %v2059
  %v2061 = vpop.f32.mrb[0].mxu0
  %v2062 = vpop.f32.mrb[0].mxu0
  %2063 = vdwg.mxu0
  %2064 = vmatprep.subr.bf16.mxu0 %v1974
  %2065 = vmatpush1.bf16.msra.mxu0 %v1971
  %2066 = vmatprep.subr.bf16.mxu0 0
  %2067 = vmatpush1.bf16.msra.mxu0 0
  %2068 = vmatprep.subr.bf16.mxu0 0
  %2069 = vmatpush1.bf16.msra.mxu0 0
  %2070 = vmatprep.subr.bf16.mxu0 0
  %2071 = vmatpush1.bf16.msra.mxu0 0
  %2072 = vmatprep.subr.bf16.mxu0 0
  %2073 = vmatpush1.bf16.msra.mxu0 0
  %2074 = vmatprep.subr.bf16.mxu0 0
  %2075 = vmatpush1.bf16.msra.mxu0 0
  %2076 = vmatprep.subr.bf16.mxu0 0
  %2077 = vmatpush1.bf16.msra.mxu0 0
  %2078 = vmatprep.subr.bf16.mxu0 0
  %2079 = vmatpush1.bf16.msra.mxu0 0
  %2080 = vmatprep.subr.bf16.mxu0 0
  %2081 = vmatpush1.bf16.msra.mxu0 0
  %2082 = vmatprep.subr.bf16.mxu0 0
  %2083 = vmatpush1.bf16.msra.mxu0 0
  %2084 = vmatprep.subr.bf16.mxu0 0
  %2085 = vmatpush1.bf16.msra.mxu0 0
  %2086 = vmatprep.subr.bf16.mxu0 0
  %2087 = vmatpush1.bf16.msra.mxu0 0
  %2088 = vmatprep.subr.bf16.mxu0 0
  %2089 = vmatpush1.bf16.msra.mxu0 0
  %2090 = vmatprep.subr.bf16.mxu0 0
  %2091 = vmatpush1.bf16.msra.mxu0 0
  %2092 = vmatprep.subr.bf16.mxu0 0
  %2093 = vmatpush1.bf16.msra.mxu0 0
  %2094 = vmatprep.subr.bf16.mxu0 0
  %2095 = vmatpush1.bf16.msra.mxu0 0
  %2096 = vmatprep.mubr.bf16.mxu0 0
  %2097 = vmatmul.mubr.bf16.gmra.mrb[0].mxu0 %v1956
  %v2098 = vpop.f32.mrb[0].mxu0
  %v2099 = vadd.f32 0.0, %v2098
  %v2100 = vpop.f32.mrb[0].mxu0
  %v2101 = vadd.f32 0.0, %v2100
  %v2102 = vpop.f32.mrb[0].mxu0
  %v2103 = vpop.f32.mrb[0].mxu0
  %2104 = vdwg.mxu0
  %2105 = vmatprep.subr.bf16.mxu0 %v1980
  %2106 = vmatpush1.bf16.msra.mxu0 %v1977
  %2107 = vmatprep.subr.bf16.mxu0 0
  %2108 = vmatpush1.bf16.msra.mxu0 0
  %2109 = vmatprep.subr.bf16.mxu0 0
  %2110 = vmatpush1.bf16.msra.mxu0 0
  %2111 = vmatprep.subr.bf16.mxu0 0
  %2112 = vmatpush1.bf16.msra.mxu0 0
  %2113 = vmatprep.subr.bf16.mxu0 0
  %2114 = vmatpush1.bf16.msra.mxu0 0
  %2115 = vmatprep.subr.bf16.mxu0 0
  %2116 = vmatpush1.bf16.msra.mxu0 0
  %2117 = vmatprep.subr.bf16.mxu0 0
  %2118 = vmatpush1.bf16.msra.mxu0 0
  %2119 = vmatprep.subr.bf16.mxu0 0
  %2120 = vmatpush1.bf16.msra.mxu0 0
  %2121 = vmatprep.subr.bf16.mxu0 0
  %2122 = vmatpush1.bf16.msra.mxu0 0
  %2123 = vmatprep.subr.bf16.mxu0 0
  %2124 = vmatpush1.bf16.msra.mxu0 0
  %2125 = vmatprep.subr.bf16.mxu0 0
  %2126 = vmatpush1.bf16.msra.mxu0 0
  %2127 = vmatprep.subr.bf16.mxu0 0
  %2128 = vmatpush1.bf16.msra.mxu0 0
  %2129 = vmatprep.subr.bf16.mxu0 0
  %2130 = vmatpush1.bf16.msra.mxu0 0
  %2131 = vmatprep.subr.bf16.mxu0 0
  %2132 = vmatpush1.bf16.msra.mxu0 0
  %2133 = vmatprep.subr.bf16.mxu0 0
  %2134 = vmatpush1.bf16.msra.mxu0 0
  %2135 = vmatprep.subr.bf16.mxu0 0
  %2136 = vmatpush1.bf16.msra.mxu0 0
  %2137 = vmatprep.mubr.bf16.mxu0 0
  %2138 = vmatmul.mubr.bf16.gmra.mrb[0].mxu0 %v1956
  %v2139 = vpop.f32.mrb[0].mxu0
  %v2140 = vadd.f32 0.0, %v2139
  %v2141 = vpop.f32.mrb[0].mxu0
  %v2142 = vadd.f32 0.0, %v2141
  %v2143 = vpop.f32.mrb[0].mxu0
  %v2144 = vpop.f32.mrb[0].mxu0
  %2145 = vdwg.mxu0
  %v2146 = vadd.f32 %v1918, %v2017
  %v2147 = vadd.f32 %v1919, %v2019
  %v2148 = vadd.f32 %v1920, %v2058
  %v2149 = vadd.f32 %v1921, %v2060
  %v2150 = vadd.f32 %v1922, %v2099
  %v2151 = vadd.f32 %v1923, %v2101
  %v2152 = vadd.f32 %v1924, %v2140
  %v2153 = vadd.f32 %v1925, %v2142
  %s2154 = scalar_lea.vmem %s0, 16
  %v2155 = vld [vmem:[%s2154] sm:$0x3]
  %2156 = vrot.lane.b32.xlu0 %v348, 109
  %v2157 = vpop.permute.xlu0 %2156
  %2158 = vrot.lane.b32.xlu0 %v347, 109
  %v2159 = vpop.permute.xlu0 %2158
  %2160 = vrot.lane.b32.xlu0 %v349, 109
  %v2161 = vpop.permute.xlu0 %2160
  %2162 = vrot.lane.b32.xlu0 %v357, 109
  %v2163 = vpop.permute.xlu0 %2162
  %2164 = vrot.lane.b32.xlu0 %v365, 109
  %v2165 = vpop.permute.xlu0 %2164
  %2166 = vrot.lane.b32.xlu0 %v364, 109
  %v2167 = vpop.permute.xlu0 %2166
  %2168 = vrot.lane.b32.xlu0 %v366, 109
  %v2169 = vpop.permute.xlu0 %2168
  %2170 = vrot.lane.b32.xlu0 %v373, 109
  %v2171 = vpop.permute.xlu0 %2170
  %2172 = vrot.lane.b32.xlu0 %v1471, 109
  %v2173 = vpop.permute.xlu0 %2172
  %vm2174 = vcmask 891904
  %v2175 = vsel %vm2174, %v2157, %v2159
  %v2176 = vsel %vm2174, %v2159, %v2161
  %v2177 = vsel %vm2174, %v2161, %v2163
  %v2178 = vsel %vm2174, %v2163, %v2165
  %v2179 = vsel %vm2174, %v2165, %v2167
  %v2180 = vsel %vm2174, %v2167, %v2169
  %v2181 = vsel %vm2174, %v2169, %v2171
  %v2182 = vsel %vm2174, %v2171, %v2173
  %v2184 = vsel %vm401, %v2155, 0
  %v2187 = vsel %vm405, %v2175, 0
  %v2190 = vsel %vm405, %v2176, 0
  %v2193 = vsel %vm405, %v2177, 0
  %v2196 = vsel %vm405, %v2178, 0
  %v2199 = vsel %vm405, %v2179, 0
  %v2202 = vsel %vm405, %v2180, 0
  %v2205 = vsel %vm405, %v2181, 0
  %v2208 = vsel %vm405, %v2182, 0
  %2210 = vmatprep.subr.bf16.mxu0 %v2190
  %2211 = vmatpush1.bf16.msra.mxu0 %v2187
  %2212 = vmatprep.subr.bf16.mxu0 0
  %2213 = vmatpush1.bf16.msra.mxu0 0
  %2214 = vmatprep.subr.bf16.mxu0 0
  %2215 = vmatpush1.bf16.msra.mxu0 0
  %2216 = vmatprep.subr.bf16.mxu0 0
  %2217 = vmatpush1.bf16.msra.mxu0 0
  %2218 = vmatprep.subr.bf16.mxu0 0
  %2219 = vmatpush1.bf16.msra.mxu0 0
  %2220 = vmatprep.subr.bf16.mxu0 0
  %2221 = vmatpush1.bf16.msra.mxu0 0
  %2222 = vmatprep.subr.bf16.mxu0 0
  %2223 = vmatpush1.bf16.msra.mxu0 0
  %2224 = vmatprep.subr.bf16.mxu0 0
  %2225 = vmatpush1.bf16.msra.mxu0 0
  %2226 = vmatprep.subr.bf16.mxu0 0
  %2227 = vmatpush1.bf16.msra.mxu0 0
  %2228 = vmatprep.subr.bf16.mxu0 0
  %2229 = vmatpush1.bf16.msra.mxu0 0
  %2230 = vmatprep.subr.bf16.mxu0 0
  %2231 = vmatpush1.bf16.msra.mxu0 0
  %2232 = vmatprep.subr.bf16.mxu0 0
  %2233 = vmatpush1.bf16.msra.mxu0 0
  %2234 = vmatprep.subr.bf16.mxu0 0
  %2235 = vmatpush1.bf16.msra.mxu0 0
  %2236 = vmatprep.subr.bf16.mxu0 0
  %2237 = vmatpush1.bf16.msra.mxu0 0
  %2238 = vmatprep.subr.bf16.mxu0 0
  %2239 = vmatpush1.bf16.msra.mxu0 0
  %2240 = vmatprep.subr.bf16.mxu0 0
  %2241 = vmatpush1.bf16.msra.mxu0 0
  %2242 = vmatprep.mubr.bf16.mxu0 0
  %2243 = vmatmul.mubr.bf16.gmra.mrb[0].mxu0 %v2184
  %v2244 = vpop.f32.mrb[0].mxu0
  %v2245 = vadd.f32 0.0, %v2244
  %v2246 = vpop.f32.mrb[0].mxu0
  %v2247 = vadd.f32 0.0, %v2246
  %v2248 = vpop.f32.mrb[0].mxu0
  %v2249 = vpop.f32.mrb[0].mxu0
  %2250 = vdwg.mxu0
  %2251 = vmatprep.subr.bf16.mxu0 %v2196
  %2252 = vmatpush1.bf16.msra.mxu0 %v2193
  %2253 = vmatprep.subr.bf16.mxu0 0
  %2254 = vmatpush1.bf16.msra.mxu0 0
  %2255 = vmatprep.subr.bf16.mxu0 0
  %2256 = vmatpush1.bf16.msra.mxu0 0
  %2257 = vmatprep.subr.bf16.mxu0 0
  %2258 = vmatpush1.bf16.msra.mxu0 0
  %2259 = vmatprep.subr.bf16.mxu0 0
  %2260 = vmatpush1.bf16.msra.mxu0 0
  %2261 = vmatprep.subr.bf16.mxu0 0
  %2262 = vmatpush1.bf16.msra.mxu0 0
  %2263 = vmatprep.subr.bf16.mxu0 0
  %2264 = vmatpush1.bf16.msra.mxu0 0
  %2265 = vmatprep.subr.bf16.mxu0 0
  %2266 = vmatpush1.bf16.msra.mxu0 0
  %2267 = vmatprep.subr.bf16.mxu0 0
  %2268 = vmatpush1.bf16.msra.mxu0 0
  %2269 = vmatprep.subr.bf16.mxu0 0
  %2270 = vmatpush1.bf16.msra.mxu0 0
  %2271 = vmatprep.subr.bf16.mxu0 0
  %2272 = vmatpush1.bf16.msra.mxu0 0
  %2273 = vmatprep.subr.bf16.mxu0 0
  %2274 = vmatpush1.bf16.msra.mxu0 0
  %2275 = vmatprep.subr.bf16.mxu0 0
  %2276 = vmatpush1.bf16.msra.mxu0 0
  %2277 = vmatprep.subr.bf16.mxu0 0
  %2278 = vmatpush1.bf16.msra.mxu0 0
  %2279 = vmatprep.subr.bf16.mxu0 0
  %2280 = vmatpush1.bf16.msra.mxu0 0
  %2281 = vmatprep.subr.bf16.mxu0 0
  %2282 = vmatpush1.bf16.msra.mxu0 0
  %2283 = vmatprep.mubr.bf16.mxu0 0
  %2284 = vmatmul.mubr.bf16.gmra.mrb[0].mxu0 %v2184
  %v2285 = vpop.f32.mrb[0].mxu0
  %v2286 = vadd.f32 0.0, %v2285
  %v2287 = vpop.f32.mrb[0].mxu0
  %v2288 = vadd.f32 0.0, %v2287
  %v2289 = vpop.f32.mrb[0].mxu0
  %v2290 = vpop.f32.mrb[0].mxu0
  %2291 = vdwg.mxu0
  %2292 = vmatprep.subr.bf16.mxu0 %v2202
  %2293 = vmatpush1.bf16.msra.mxu0 %v2199
  %2294 = vmatprep.subr.bf16.mxu0 0
  %2295 = vmatpush1.bf16.msra.mxu0 0
  %2296 = vmatprep.subr.bf16.mxu0 0
  %2297 = vmatpush1.bf16.msra.mxu0 0
  %2298 = vmatprep.subr.bf16.mxu0 0
  %2299 = vmatpush1.bf16.msra.mxu0 0
  %2300 = vmatprep.subr.bf16.mxu0 0
  %2301 = vmatpush1.bf16.msra.mxu0 0
  %2302 = vmatprep.subr.bf16.mxu0 0
  %2303 = vmatpush1.bf16.msra.mxu0 0
  %2304 = vmatprep.subr.bf16.mxu0 0
  %2305 = vmatpush1.bf16.msra.mxu0 0
  %2306 = vmatprep.subr.bf16.mxu0 0
  %2307 = vmatpush1.bf16.msra.mxu0 0
  %2308 = vmatprep.subr.bf16.mxu0 0
  %2309 = vmatpush1.bf16.msra.mxu0 0
  %2310 = vmatprep.subr.bf16.mxu0 0
  %2311 = vmatpush1.bf16.msra.mxu0 0
  %2312 = vmatprep.subr.bf16.mxu0 0
  %2313 = vmatpush1.bf16.msra.mxu0 0
  %2314 = vmatprep.subr.bf16.mxu0 0
  %2315 = vmatpush1.bf16.msra.mxu0 0
  %2316 = vmatprep.subr.bf16.mxu0 0
  %2317 = vmatpush1.bf16.msra.mxu0 0
  %2318 = vmatprep.subr.bf16.mxu0 0
  %2319 = vmatpush1.bf16.msra.mxu0 0
  %2320 = vmatprep.subr.bf16.mxu0 0
  %2321 = vmatpush1.bf16.msra.mxu0 0
  %2322 = vmatprep.subr.bf16.mxu0 0
  %2323 = vmatpush1.bf16.msra.mxu0 0
  %2324 = vmatprep.mubr.bf16.mxu0 0
  %2325 = vmatmul.mubr.bf16.gmra.mrb[0].mxu0 %v2184
  %v2326 = vpop.f32.mrb[0].mxu0
  %v2327 = vadd.f32 0.0, %v2326
  %v2328 = vpop.f32.mrb[0].mxu0
  %v2329 = vadd.f32 0.0, %v2328
  %v2330 = vpop.f32.mrb[0].mxu0
  %v2331 = vpop.f32.mrb[0].mxu0
  %2332 = vdwg.mxu0
  %2333 = vmatprep.subr.bf16.mxu0 %v2208
  %2334 = vmatpush1.bf16.msra.mxu0 %v2205
  %2335 = vmatprep.subr.bf16.mxu0 0
  %2336 = vmatpush1.bf16.msra.mxu0 0
  %2337 = vmatprep.subr.bf16.mxu0 0
  %2338 = vmatpush1.bf16.msra.mxu0 0
  %2339 = vmatprep.subr.bf16.mxu0 0
  %2340 = vmatpush1.bf16.msra.mxu0 0
  %2341 = vmatprep.subr.bf16.mxu0 0
  %2342 = vmatpush1.bf16.msra.mxu0 0
  %2343 = vmatprep.subr.bf16.mxu0 0
  %2344 = vmatpush1.bf16.msra.mxu0 0
  %2345 = vmatprep.subr.bf16.mxu0 0
  %2346 = vmatpush1.bf16.msra.mxu0 0
  %2347 = vmatprep.subr.bf16.mxu0 0
  %2348 = vmatpush1.bf16.msra.mxu0 0
  %2349 = vmatprep.subr.bf16.mxu0 0
  %2350 = vmatpush1.bf16.msra.mxu0 0
  %2351 = vmatprep.subr.bf16.mxu0 0
  %2352 = vmatpush1.bf16.msra.mxu0 0
  %2353 = vmatprep.subr.bf16.mxu0 0
  %2354 = vmatpush1.bf16.msra.mxu0 0
  %2355 = vmatprep.subr.bf16.mxu0 0
  %2356 = vmatpush1.bf16.msra.mxu0 0
  %2357 = vmatprep.subr.bf16.mxu0 0
  %2358 = vmatpush1.bf16.msra.mxu0 0
  %2359 = vmatprep.subr.bf16.mxu0 0
  %2360 = vmatpush1.bf16.msra.mxu0 0
  %2361 = vmatprep.subr.bf16.mxu0 0
  %2362 = vmatpush1.bf16.msra.mxu0 0
  %2363 = vmatprep.subr.bf16.mxu0 0
  %2364 = vmatpush1.bf16.msra.mxu0 0
  %2365 = vmatprep.mubr.bf16.mxu0 0
  %2366 = vmatmul.mubr.bf16.gmra.mrb[0].mxu0 %v2184
  %v2367 = vpop.f32.mrb[0].mxu0
  %v2368 = vadd.f32 0.0, %v2367
  %v2369 = vpop.f32.mrb[0].mxu0
  %v2370 = vadd.f32 0.0, %v2369
  %v2371 = vpop.f32.mrb[0].mxu0
  %v2372 = vpop.f32.mrb[0].mxu0
  %2373 = vdwg.mxu0
  %v2374 = vadd.f32 %v2146, %v2245
  %v2375 = vadd.f32 %v2147, %v2247
  %v2376 = vadd.f32 %v2148, %v2286
  %v2377 = vadd.f32 %v2149, %v2288
  %v2378 = vadd.f32 %v2150, %v2327
  %v2379 = vadd.f32 %v2151, %v2329
  %v2380 = vadd.f32 %v2152, %v2368
  %v2381 = vadd.f32 %v2153, %v2370
  %v2382 = vld [vmem:[%s92] sm:$0x55]
  %v2383 = vld [vmem:[%s92 + $0x8] sm:$0x55]
  %v2384 = vunpack.c.l.bf16 %v2382
  %v2385 = vunpack.c.h.bf16 %v2382
  %v2386 = vunpack.c.l.bf16 %v2383
  %v2387 = vunpack.c.h.bf16 %v2383
  %vm2388 = vcmp.eq.f32.partialorder %v2384, %v2384
  %vm2389 = vcmp.eq.f32.partialorder %v2385, %v2385
  %vm2390 = vcmp.eq.f32.partialorder %v2386, %v2386
  %vm2391 = vcmp.eq.f32.partialorder %v2387, %v2387
  %v2392 = vsel %vm2388, 1, 0
  %v2393 = vsel %vm2389, 1, 0
  %v2394 = vsel %vm2390, 1, 0
  %v2395 = vsel %vm2391, 1, 0
  %v2396 = vlaneseq
  %v2397 = vshrl.u32 %v2396, 7
  %v2398 = vsub.s32 0, %v2397
  %v2399 = vrot.slane %v2392, %v2398
  %v2400 = vlaneseq
  %v2401 = vshrl.u32 %v2400, 7
  %v2402 = vsub.s32 4, %v2401
  %v2403 = vrot.slane %v2392, %v2402
  %v2404 = vlaneseq
  %v2405 = vshrl.u32 %v2404, 7
  %v2406 = vsub.s32 0, %v2405
  %v2407 = vrot.slane %v2393, %v2406
  %v2408 = vlaneseq
  %v2409 = vshrl.u32 %v2408, 7
  %v2410 = vsub.s32 4, %v2409
  %v2411 = vrot.slane %v2393, %v2410
  %v2412 = vlaneseq
  %v2413 = vshrl.u32 %v2412, 7
  %v2414 = vsub.s32 0, %v2413
  %v2415 = vrot.slane %v2394, %v2414
  %v2416 = vlaneseq
  %v2417 = vshrl.u32 %v2416, 7
  %v2418 = vsub.s32 4, %v2417
  %v2419 = vrot.slane %v2394, %v2418
  %v2420 = vlaneseq
  %v2421 = vshrl.u32 %v2420, 7
  %v2422 = vsub.s32 0, %v2421
  %v2423 = vrot.slane %v2395, %v2422
  %v2424 = vlaneseq
  %v2425 = vshrl.u32 %v2424, 7
  %v2426 = vsub.s32 4, %v2425
  %v2427 = vrot.slane %v2395, %v2426
  %v2428 = vlaneseq
  %v2429 = vshrl.u32 %v2428, 7
  %v2430 = vsub.s32 0, %v2429
  %v2431 = vrot.slane %v2399, %v2430
  %v2432 = vlaneseq
  %v2433 = vshrl.u32 %v2432, 7
  %v2434 = vsub.s32 0, %v2433
  %v2435 = vrot.slane %v2403, %v2434
  %v2436 = vlaneseq
  %v2437 = vshrl.u32 %v2436, 7
  %v2438 = vsub.s32 0, %v2437
  %v2439 = vrot.slane %v2407, %v2438
  %v2440 = vlaneseq
  %v2441 = vshrl.u32 %v2440, 7
  %v2442 = vsub.s32 0, %v2441
  %v2443 = vrot.slane %v2411, %v2442
  %v2444 = vlaneseq
  %v2445 = vshrl.u32 %v2444, 7
  %v2446 = vsub.s32 0, %v2445
  %v2447 = vrot.slane %v2415, %v2446
  %v2448 = vlaneseq
  %v2449 = vshrl.u32 %v2448, 7
  %v2450 = vsub.s32 0, %v2449
  %v2451 = vrot.slane %v2419, %v2450
  %v2452 = vlaneseq
  %v2453 = vshrl.u32 %v2452, 7
  %v2454 = vsub.s32 0, %v2453
  %v2455 = vrot.slane %v2423, %v2454
  %v2456 = vlaneseq
  %v2457 = vshrl.u32 %v2456, 7
  %v2458 = vsub.s32 0, %v2457
  %v2459 = vrot.slane %v2427, %v2458
  %vm2460 = vcmp.eq.s32.totalorder %v2431, 1
  %vm2461 = vcmp.eq.s32.totalorder %v2435, 1
  %vm2462 = vcmp.eq.s32.totalorder %v2439, 1
  %vm2463 = vcmp.eq.s32.totalorder %v2443, 1
  %vm2464 = vcmp.eq.s32.totalorder %v2447, 1
  %vm2465 = vcmp.eq.s32.totalorder %v2451, 1
  %vm2466 = vcmp.eq.s32.totalorder %v2455, 1
  %vm2467 = vcmp.eq.s32.totalorder %v2459, 1
  %v2468 = vsel %vm2460, %v2374, nan
  %v2469 = vsel %vm2461, %v2375, nan
  %v2470 = vsel %vm2462, %v2376, nan
  %v2471 = vsel %vm2463, %v2377, nan
  %v2472 = vsel %vm2464, %v2378, nan
  %v2473 = vsel %vm2465, %v2379, nan
  %v2474 = vsel %vm2466, %v2380, nan
  %v2475 = vsel %vm2467, %v2381, nan
  %v2476 = vpack.c.bf16 %v2468, %v2468
  %v2477 = vpack.c.bf16 %v2469, %v2469
  %v2478 = vpack.c.bf16 %v2470, %v2470
  %v2479 = vpack.c.bf16 %v2471, %v2471
  %v2480 = vpack.c.bf16 %v2472, %v2472
  %v2481 = vpack.c.bf16 %v2473, %v2473
  %v2482 = vpack.c.bf16 %v2474, %v2474
  %v2483 = vpack.c.bf16 %v2475, %v2475
  %v2492 = vcombine.low %v2476, %v2477
  %v2493 = vcombine.low %v2478, %v2479
  %v2495 = vunpack.c.l.s4 1983009808
  %v2496 = vunpack.c.0.s8 %v2495
  %v2497 = vlaneseq
  %v2498 = vshrl.u32 %v2497, 7
  %v2499 = vsub.s32 %v2496, %v2498
  %v2500 = vrot.slane %v2492, %v2499
  %v2502 = vunpack.c.l.s4 1983009808
  %v2503 = vunpack.c.0.s8 %v2502
  %v2504 = vlaneseq
  %v2505 = vshrl.u32 %v2504, 7
  %v2506 = vsub.s32 %v2503, %v2505
  %v2507 = vrot.slane %v2493, %v2506
  %v2508 = vcombine.low %v2500, %v2507
  %v2509 = vcombine.low %v2480, %v2481
  %v2510 = vcombine.low %v2482, %v2483
  %v2512 = vunpack.c.l.s4 1983009808
  %v2513 = vunpack.c.0.s8 %v2512
  %v2514 = vlaneseq
  %v2515 = vshrl.u32 %v2514, 7
  %v2516 = vsub.s32 %v2513, %v2515
  %v2517 = vrot.slane %v2509, %v2516
  %v2519 = vunpack.c.l.s4 1983009808
  %v2520 = vunpack.c.0.s8 %v2519
  %v2521 = vlaneseq
  %v2522 = vshrl.u32 %v2521, 7
  %v2523 = vsub.s32 %v2520, %v2522
  %v2524 = vrot.slane %v2510, %v2523
  %v2525 = vcombine.low %v2517, %v2524
  %2528 = vst [vmem:[%s108] sm:$0xff] %v2508
  %2529 = vst [vmem:[%s108 + $0x8] sm:$0xff] %v2525
  %v2530 = vsel %vm2460, %v2374, 0.0
  %v2531 = vsel %vm2461, %v2375, 0.0
  %v2532 = vsel %vm2462, %v2376, 0.0
  %v2533 = vsel %vm2463, %v2377, 0.0
  %v2534 = vsel %vm2464, %v2378, 0.0
  %v2535 = vsel %vm2465, %v2379, 0.0
  %v2536 = vsel %vm2466, %v2380, 0.0
  %v2537 = vsel %vm2467, %v2381, 0.0
  %vm2538 = vcmask 1043456
  %v2539 = vsel %vm2538, %v2530, 0.0
  %v2540 = vsel %vm2538, %v2531, 0.0
  %v2541 = vadd.f32 %v2539, %v2540
  %v2542 = vsel %vm2538, %v2532, 0.0
  %v2543 = vadd.f32 %v2541, %v2542
  %v2544 = vsel %vm2538, %v2533, 0.0
  %v2545 = vadd.f32 %v2543, %v2544
  %v2546 = vsel %vm2538, %v2534, 0.0
  %v2547 = vadd.f32 %v2545, %v2546
  %v2548 = vsel %vm2538, %v2535, 0.0
  %v2549 = vadd.f32 %v2547, %v2548
  %v2550 = vsel %vm2538, %v2536, 0.0
  %v2551 = vadd.f32 %v2549, %v2550
  %v2552 = vsel %vm2538, %v2537, 0.0
  %v2553 = vadd.f32 %v2551, %v2552
  %2554 = vadd.xlane.f32.xlu0 %v2553
  %v2555 = vpop.xlane.xlu0 %2554
  %vm2556 = vcmask 3072
  %2557 = vst.msk [vmem:[%s7] sm:$0xf] %vm2556, %v2555
  %v2558 = vmul.f32 %v2530, %v2530
  %v2559 = vmul.f32 %v2531, %v2531
  %v2560 = vmul.f32 %v2532, %v2532
  %v2561 = vmul.f32 %v2533, %v2533
  %v2562 = vmul.f32 %v2534, %v2534
  %v2563 = vmul.f32 %v2535, %v2535
  %v2564 = vmul.f32 %v2536, %v2536
  %v2565 = vmul.f32 %v2537, %v2537
  %v2566 = vsel %vm2538, %v2558, 0.0
  %v2567 = vsel %vm2538, %v2559, 0.0
  %v2568 = vadd.f32 %v2566, %v2567
  %v2569 = vsel %vm2538, %v2560, 0.0
  %v2570 = vadd.f32 %v2568, %v2569
  %v2571 = vsel %vm2538, %v2561, 0.0
  %v2572 = vadd.f32 %v2570, %v2571
  %v2573 = vsel %vm2538, %v2562, 0.0
  %v2574 = vadd.f32 %v2572, %v2573
  %v2575 = vsel %vm2538, %v2563, 0.0
  %v2576 = vadd.f32 %v2574, %v2575
  %v2577 = vsel %vm2538, %v2564, 0.0
  %v2578 = vadd.f32 %v2576, %v2577
  %v2579 = vsel %vm2538, %v2565, 0.0
  %v2580 = vadd.f32 %v2578, %v2579
  %2581 = vadd.xlane.f32.xlu0 %v2580
  %v2582 = vpop.xlane.xlu0 %2581
  %2583 = vst.msk [vmem:[%s8] sm:$0xf] %vm2556, %v2582
  %s2584 = sadd.s32 0, 1
  %s2585 = smul.u32 8, %s2584
  %p2586 = scmp.lt.s32.totalorder %s2585, 23
  %s2587 = scalar_select %p2586, %s2585, 23
  %s2588 = smul.addr %s2587, 2
  %s2589 = scalar_lea.vmem %s6, %s2588
  // Predicated region
  $region26: #{residual_block.4} parent=0 // pred_check
    _
  $region27: #{residual_block.4} parent=0 // pred_check_branch
    %2591 = sbr.rel (0) target = $region29
  $region28: #{residual_block.4} parent=0 // pred_region
    %s2592 = sadd.s32 0, 1
    %s2593 = smul.u32 8, %s2592
  $region29: #{residual_block.4} parent=0 // pred_fallthru
    _
  // Predicated region
  $region30: #{residual_block.4} parent=0 // pred_check
    _
  $region31: #{residual_block.4} parent=0 // pred_check_branch
    %2595 = sbr.rel (0) target = $region33
  $region32: #{residual_block.4} parent=0 // pred_region
    _
  $region33: #{residual_block.4} parent=0 // pred_fallthru
    _
  // Predicated region
  $region34: #{residual_block.4} parent=0 // pred_check
    _
  $region35: #{residual_block.4} parent=0 // pred_check_branch
    %2597 = sbr.rel (0) target = $region37
  $region36: #{residual_block.4} parent=0 // pred_region
    _
  $region37: #{residual_block.4} parent=0 // pred_fallthru
    _
  // Predicated region
  $region38: #{residual_block.4} parent=0 // pred_check
    _
  $region39: #{residual_block.4} parent=0 // pred_check_branch
    %2599 = sbr.rel (0) target = $region41
  $region40: #{residual_block.4} parent=0 // pred_region
    %s2600 = sadd.s32 0, 1
    %s2601 = smul.u32 8, %s2600
    %p2602 = scmp.lt.s32.totalorder %s2601, 23
    %s2603 = scalar_select %p2602, %s2601, 23
    %s2604 = smul.addr %s2603, 2
    %s2605 = scalar_lea.vmem %s6, %s2604
  $region41: #{residual_block.4} parent=0 // pred_fallthru
    _
  // Predicated region
  $region42: #{residual_block.4} parent=0 // pred_check
    _
  $region43: #{residual_block.4} parent=0 // pred_check_branch
    %2607 = sbr.rel (0) target = $region45
  $region44: #{residual_block.4} parent=0 // pred_region
    _
  $region45: #{residual_block.4} parent=0 // pred_fallthru
    _
  // Predicated region
  $region46: #{residual_block.4} parent=0 // pred_check
    _
  $region47: #{residual_block.4} parent=0 // pred_check_branch
    %2609 = sbr.rel (0) target = $region49
  $region48: #{residual_block.4} parent=0 // pred_region
    _
  $region49: #{residual_block.4} parent=0 // pred_fallthru
    _

</llo_original>
